<compile_context>
chip_gen: v7x
topology: tpu7x:2x2x1
jax: 0.10.0
libtpu: 0.0.40
codegen_flags: <defaults>
</compile_context>

<pallas_src>
import functools

import jax
import jax.numpy as jnp
from jax.experimental import pallas as pl
from jax.experimental.pallas import tpu as pltpu

LRELU_SLOPE = 0.1
TM_MAX = 1024  # lane tile over M = B*Ho*Wo (multiple of 128)


def get_2d_padding(kernel_size, dilation=(1, 1)):
    return ((kernel_size[0] - 1) * dilation[0] // 2,
            (kernel_size[1] - 1) * dilation[1] // 2)


# ----------------------------------------------------------------------------
# Pallas kernel: fused transposed (lane-dense) GEMM + bias (+ LeakyReLU)
#   o (N, TM) = w (N, K) @ a (K, TM) + b (N, 1)
#   N = Cout (small -> sublanes), TM = tile of B*Ho*Wo (lanes, dense stores)
# ----------------------------------------------------------------------------
def _gemm_bias_act_kernel(a_ref, w_ref, b_ref, o_ref, *, apply_act):
    acc = jnp.dot(w_ref[...], a_ref[...], preferred_element_type=jnp.float32)
    acc = acc + b_ref[...]                       # (N, 1) broadcast over lanes
    if apply_act:
        acc = jnp.where(acc >= 0.0, acc, LRELU_SLOPE * acc)
    o_ref[...] = acc.astype(o_ref.dtype)


def gemm_bias_act(a_t, w_t, b, apply_act):
    """Batched lane-dense GEMM.

    a_t: (G, K, M)  im2col'd activations, already transposed (K rows, M lanes)
    w_t: (G, N, K)  weights
    b  : (G, N)     bias
    returns (G, N, M) float32 with optional fused LeakyReLU.
    """
    G, K, M = a_t.shape
    N = w_t.shape[1]

    # Pick the M tile: multiple of 128 (dense lanes) or a single full-extent
    # block when M is small; ragged last block is masked by Pallas.
    if M % 128 == 0:
        TM = min(TM_MAX, M)
    elif M <= TM_MAX:
        TM = M
    else:
        TM = TM_MAX
    grid_m = pl.cdiv(M, TM)

    a_bf = a_t.astype(jnp.bfloat16)              # bf16 MXU inputs
    w_bf = w_t.astype(jnp.bfloat16)
    b3 = b.reshape(G, N, 1).astype(jnp.float32)  # f32 epilogue

    # TODO(synk): for production channel counts (K*N weights in the tens of
    # MiB) add a K reduction axis + f32 VMEM accumulator and vmem_limit_bytes
    # (v7x has only 64 MiB VMEM); at these K (<=432) the whole W block fits.
    return pl.pallas_call(
        functools.partial(_gemm_bias_act_kernel, apply_act=apply_act),
        out_shape=jax.ShapeDtypeStruct((G, N, M), jnp.float32),
        grid=(G, grid_m),
        in_specs=[
            pl.BlockSpec((pl.Squeezed(), K, TM), lambda g, m: (g, 0, m)),
            pl.BlockSpec((pl.Squeezed(), N, K), lambda g, m: (g, 0, 0)),
            pl.BlockSpec((pl.Squeezed(), N, 1), lambda g, m: (g, 0, 0)),
        ],
        out_specs=pl.BlockSpec((pl.Squeezed(), N, TM), lambda g, m: (g, 0, m)),
        compiler_params=pltpu.CompilerParams(
            dimension_semantics=("parallel", "parallel")),
    )(a_bf, w_bf, b3)


# ----------------------------------------------------------------------------
# Conv2d on channel-major (C, B, H, W) activations via im2col + Pallas GEMM.
# The (C, B, H, W) layout makes the GEMM output reshape directly into the next
# layer's input with no transposes.
# ----------------------------------------------------------------------------
def im2col_cbhw(x, KH, KW, stride, dilation, padding):
    """x: (Cin, B, H, W) -> A^T (KH*KW*Cin, B*Ho*Wo) bf16, plus (Ho, Wo)."""
    # TODO(synk): fully fusing the tap loop into the Pallas kernel would avoid
    # materializing the KH*KW-expanded tensor in HBM; kept in bf16 to halve it.
    Cin, B, H, W = x.shape
    sh, sw = stride
    dh, dw = dilation
    ph, pw = padding
    xp = jnp.pad(x.astype(jnp.bfloat16), ((0, 0), (0, 0), (ph, ph), (pw, pw)))
    Hp, Wp = H + 2 * ph, W + 2 * pw
    Ho = (Hp - dh * (KH - 1) - 1) // sh + 1
    Wo = (Wp - dw * (KW - 1) - 1) // sw + 1
    taps = [
        xp[:, :,
           kh * dh: kh * dh + (Ho - 1) * sh + 1: sh,
           kw * dw: kw * dw + (Wo - 1) * sw + 1: sw]
        for kh in range(KH) for kw in range(KW)
    ]
    # (KH*KW, Cin, B, Ho, Wo) -> contiguous reshape; K order = (kh, kw, cin).
    a_t = jnp.stack(taps, axis=0).reshape(KH * KW * Cin, B * Ho * Wo)
    return a_t, Ho, Wo


def weight_to_gemm(weight):
    """(Cout, Cin, KH, KW) -> (Cout, KH*KW*Cin), matching im2col K order."""
    Cout, Cin, KH, KW = weight.shape
    return weight.transpose(0, 2, 3, 1).reshape(Cout, KH * KW * Cin)


def conv2d_cbhw(x, weight, bias, stride=(1, 1), dilation=(1, 1),
                padding=(0, 0), apply_act=False):
    Cout = weight.shape[0]
    B = x.shape[1]
    a_t, Ho, Wo = im2col_cbhw(x, weight.shape[2], weight.shape[3],
                              stride, dilation, padding)
    w_t = weight_to_gemm(weight)
    out = gemm_bias_act(a_t[None], w_t[None], bias[None], apply_act)[0]
    return out.reshape(Cout, B, Ho, Wo)


# ----------------------------------------------------------------------------
# Signal front end (resample + CQT-style complex filterbank)
# ----------------------------------------------------------------------------
def resample_2x(x):
    """x: (B, T) -> (B, 2T)."""
    # TODO(synk): torchaudio.transforms.Resample uses a windowed-sinc polyphase
    # filter; linear 2x interpolation is used as a deterministic stand-in.
    B, T = x.shape
    x_next = jnp.concatenate([x[:, 1:], x[:, -1:]], axis=1)
    mid = 0.5 * (x + x_next)
    return jnp.stack([x, mid], axis=-1).reshape(B, 2 * T)


def make_cqt_basis_t(n_bins, bins_per_octave, sr, n_fft):
    """Transposed complex filterbank: (2*n_bins, n_fft) = [real ; imag]."""
    fmin = 32.70319566257483
    k = jnp.arange(n_bins, dtype=jnp.float32)
    freqs = fmin * (2.0 ** (k / bins_per_octave))
    n = jnp.arange(n_fft, dtype=jnp.float32)
    window = 0.5 - 0.5 * jnp.cos(2.0 * jnp.pi * n / (n_fft - 1))  # Hann
    phase = 2.0 * jnp.pi * freqs[:, None] * n[None, :] / sr       # (n_bins, n_fft)
    real = window[None, :] * jnp.cos(phase)
    imag = -window[None, :] * jnp.sin(phase)
    return jnp.concatenate([real, imag], axis=0)


def cqt_transform(x, n_bins, bins_per_octave, sr, hop, n_fft=64):
    """x: (B, T) -> z: (2, B, Tf, n_bins), channel dim = (real, imag)."""
    # TODO(synk): nnAudio CQT2010v2 (per-octave downsampled filterbanks) is
    # approximated by a single-resolution framed complex filterbank GEMM.
    B, T = x.shape
    pad = n_fft // 2
    xp = jnp.pad(x, ((0, 0), (pad, pad)))                  # pad_mode='constant'
    Tf = T // hop + 1
    # One strided gather replaces the per-frame Python slice loop.
    idx = jnp.arange(n_fft)[:, None] + hop * jnp.arange(Tf)[None, :]
    frames = xp[:, idx]                                    # (B, n_fft, Tf)
    frames_t = frames.transpose(1, 0, 2).reshape(n_fft, B * Tf)   # (K, M)
    basis_t = make_cqt_basis_t(n_bins, bins_per_octave, sr, n_fft)
    out = gemm_bias_act(frames_t[None], basis_t[None],
                        jnp.zeros((1, 2 * n_bins), jnp.float32),
                        apply_act=False)[0]                # (2*n_bins, B*Tf)
    out = out.reshape(2, n_bins, B, Tf)
    return out.transpose(0, 2, 3, 1)                       # (2, B, Tf, n_bins)


# ----------------------------------------------------------------------------
# Parameter construction (arrays only -> jit-friendly pytree)
# ----------------------------------------------------------------------------
def init_conv_params(key, cout, cin, kh, kw):
    k1, k2 = jax.random.split(key)
    scale = 1.0 / jnp.sqrt(float(cin * kh * kw))
    w = jax.random.normal(k1, (cout, cin, kh, kw), jnp.float32) * scale
    b = jax.random.normal(k2, (cout,), jnp.float32) * scale
    # weight_norm at init is the identity (g = ||v||), so w is used as-is.
    return {"w": w, "b": b}


def conv_layer_specs(dilations):
    """(stride, dilation, padding) per conv in self.convs, matching PyTorch."""
    specs = [((1, 1), (1, 1), get_2d_padding((3, 9)))]
    for d in dilations:
        specs.append(((1, 2), (d, 1), get_2d_padding((3, 9), (d, 1))))
    specs.append(((1, 1), (1, 1), get_2d_padding((3, 3))))
    return specs


def build_disc_params(key, filters, max_filters, filters_scale, dilations,
                      in_channels, out_channels, n_octaves):
    n_convs = 1 + len(dilations) + 1
    keys = iter(jax.random.split(key, n_octaves + n_convs + 1))
    params = {"conv_pres": [], "convs": [], "conv_post": None}

    for _ in range(n_octaves):
        params["conv_pres"].append(
            init_conv_params(next(keys), in_channels * 2, in_channels * 2, 3, 9))

    convs = [init_conv_params(next(keys), filters, in_channels * 2, 3, 9)]
    in_chs = min(filters_scale * filters, max_filters)
    for i, _ in enumerate(dilations):
        out_chs = min(filters_scale ** (i + 1) * filters, max_filters)
        convs.append(init_conv_params(next(keys), out_chs, in_chs, 3, 9))
        in_chs = out_chs
    out_chs = min(filters_scale ** (len(dilations) + 1) * filters, max_filters)
    convs.append(init_conv_params(next(keys), out_chs, in_chs, 3, 3))
    params["convs"] = convs
    params["conv_post"] = init_conv_params(next(keys), out_channels, out_chs, 3, 3)
    return params


# ----------------------------------------------------------------------------
# DiscriminatorCQT / MultiScaleSubbandCQTDiscriminator forward
# ----------------------------------------------------------------------------
def disc_forward(params, y, sample_rate, hop_length, n_octaves,
                 bins_per_octave, dilations):
    # y: (B, 1, T)
    x = resample_2x(y[:, 0, :])                   # fs -> 2*fs
    n_bins = bins_per_octave * n_octaves
    z = cqt_transform(x, n_bins, bins_per_octave, sample_rate * 2, hop_length)
    # z: (2, B, Tf, n_bins)  ==  'b c t w' stored channel-major (C, B, H, W).
    B = z.shape[1]

    # conv_pres: identical geometry across octaves -> one batched pallas_call
    # with a leading grid axis over octave.
    pad_pre = get_2d_padding((3, 9))
    a_list, w_list, b_list = [], [], []
    Ho = Wo = None
    for i in range(n_octaves):
        zi = z[:, :, :, i * bins_per_octave:(i + 1) * bins_per_octave]
        a_t, Ho, Wo = im2col_cbhw(zi, 3, 9, (1, 1), (1, 1), pad_pre)
        a_list.append(a_t)
        p = params["conv_pres"][i]
        w_list.append(weight_to_gemm(p["w"]))
        b_list.append(p["b"])
    pre = gemm_bias_act(jnp.stack(a_list), jnp.stack(w_list), jnp.stack(b_list),
                        apply_act=False)                      # (n_oct, 2, M)
    pre = pre.reshape(n_octaves, 2, B, Ho, Wo)
    latent = jnp.concatenate(list(pre), axis=-1)              # (2, B, T, n_bins)

    fmap = []
    for p, (stride, dil, pad) in zip(params["convs"], conv_layer_specs(dilations)):
        latent = conv2d_cbhw(latent, p["w"], p["b"], stride, dil, pad,
                             apply_act=True)                  # conv + LeakyReLU fused
        fmap.append(jnp.transpose(latent, (1, 0, 2, 3)))      # NCHW for caller

    p = params["conv_post"]
    latent = conv2d_cbhw(latent, p["w"], p["b"], (1, 1), (1, 1),
                         get_2d_padding((3, 3)), apply_act=False)
    return jnp.transpose(latent, (1, 0, 2, 3)), fmap


def mssbcqtd_forward(all_params, y, cfg):
    y_ds, fmaps = [], []
    for i, p in enumerate(all_params):
        y_d, fmap = disc_forward(p, y, cfg["sample_rate"], cfg["hop_lengths"][i],
                                 cfg["n_octaves"][i], cfg["bins_per_octaves"][i],
                                 cfg["dilations"])
        y_ds.append(y_d)
        fmaps.extend(fmap)
    return y_ds, fmaps


# ----------------------------------------------------------------------------
if __name__ == "__main__":
    cfg = dict(
        filters=8, max_filters=16, filters_scale=1, dilations=[1, 2],
        in_channels=1, out_channels=1, sample_rate=8000,
        hop_lengths=[64, 32], n_octaves=[2, 2], bins_per_octaves=[8, 4],
    )

    key = jax.random.PRNGKey(0)
    k_y, k_p = jax.random.split(key)
    y = jax.random.normal(k_y, (2, 1, 256), jnp.float32)

    pkeys = jax.random.split(k_p, len(cfg["hop_lengths"]))
    all_params = [
        build_disc_params(pkeys[i], cfg["filters"], cfg["max_filters"],
                          cfg["filters_scale"], cfg["dilations"],
                          cfg["in_channels"], cfg["out_channels"],
                          cfg["n_octaves"][i])
        for i in range(len(cfg["hop_lengths"]))
    ]

    fwd = jax.jit(lambda params, audio: mssbcqtd_forward(params, audio, cfg))
    y_ds, fmaps = fwd(all_params, y)
    jax.block_until_ready((y_ds, fmaps))
    print("KERNEL_OK")
</pallas_src>

<mosaic_0001>
module attributes {stable_mosaic.version = 11 : i64} {
  func.func @_gemm_bias_act_kernel(%arg0: i32, %arg1: i32, %arg2: memref<1x64x34xbf16, #tpu.memory_space<vmem>>, %arg3: memref<1x16x64xbf16, #tpu.memory_space<vmem>>, %arg4: memref<1x16x1xf32, #tpu.memory_space<vmem>>, %arg5: memref<1x16x34xf32, #tpu.memory_space<vmem>>) attributes {dimension_semantics = [#tpu.dimension_semantics<parallel>, #tpu.dimension_semantics<parallel>], iteration_bounds = array<i64: 1, 1>, scalar_prefetch = 0 : i64, scratch_operands = 0 : i64, tpu.core_type = #tpu.core_type<tc>, window_params = [{transform_indices = @transform_0, window_bounds = array<i64: 1, 64, 34>}, {transform_indices = @transform_1, window_bounds = array<i64: 1, 16, 64>}, {transform_indices = @transform_2, window_bounds = array<i64: 1, 16, 1>}, {transform_indices = @transform_3, window_bounds = array<i64: 1, 16, 34>}]} {
    %c0 = arith.constant 0 : index
    %c0_0 = arith.constant 0 : index
    %c0_1 = arith.constant 0 : index
    %0 = vector.load %arg3[%c0, %c0_0, %c0_1] : memref<1x16x64xbf16, #tpu.memory_space<vmem>>, vector<1x16x64xbf16>
    %1 = vector.shape_cast %0 : vector<1x16x64xbf16> to vector<16x64xbf16>
    %c0_2 = arith.constant 0 : index
    %c0_3 = arith.constant 0 : index
    %c0_4 = arith.constant 0 : index
    %2 = vector.load %arg2[%c0_2, %c0_3, %c0_4] : memref<1x64x34xbf16, #tpu.memory_space<vmem>>, vector<1x64x34xbf16>
    %3 = vector.shape_cast %2 : vector<1x64x34xbf16> to vector<64x34xbf16>
    %cst = arith.constant dense<0.000000e+00> : vector<16x34xf32>
    %4 = tpu.matmul %1, %3, %cst {dimension_numbers = #tpu.dot_dimension_numbers<[1], [0], [0], [1], [0, 0, 1, 1], [], []>} : vector<16x64xbf16>, vector<64x34xbf16>, vector<16x34xf32> -> vector<16x34xf32>
    %c0_5 = arith.constant 0 : index
    %c0_6 = arith.constant 0 : index
    %c0_7 = arith.constant 0 : index
    %5 = vector.load %arg4[%c0_5, %c0_6, %c0_7] : memref<1x16x1xf32, #tpu.memory_space<vmem>>, vector<1x16x1xf32>
    %6 = vector.shape_cast %5 : vector<1x16x1xf32> to vector<16x1xf32>
    %7 = vector.broadcast %6 : vector<16x1xf32> to vector<16x34xf32>
    %8 = arith.addf %4, %7 : vector<16x34xf32>
    %c0_8 = arith.constant 0 : index
    %c0_9 = arith.constant 0 : index
    %c0_10 = arith.constant 0 : index
    %9 = vector.load %arg5[%c0_8, %c0_9, %c0_10] : memref<1x16x34xf32, #tpu.memory_space<vmem>>, vector<1x16x34xf32>
    %10 = vector.shape_cast %9 : vector<1x16x34xf32> to vector<16x34xf32>
    %11 = vector.shape_cast %8 : vector<16x34xf32> to vector<1x16x34xf32>
    tpu.vector_store %arg5[%c0_8, %c0_9, %c0_10], %11 {strides = array<i32>} : memref<1x16x34xf32, #tpu.memory_space<vmem>>, vector<1x16x34xf32>,
    return
  }
  func.func @transform_0(%arg0: i32, %arg1: i32) -> (i32, i32, i32) {
    %c0_i32 = arith.constant 0 : i32
    %c0_i32_0 = arith.constant 0 : i32
    return %arg0, %c0_i32, %arg1 : i32, i32, i32
  }
  func.func @transform_1(%arg0: i32, %arg1: i32) -> (i32, i32, i32) {
    %c0_i32 = arith.constant 0 : i32
    %c0_i32_0 = arith.constant 0 : i32
    %c0_i32_1 = arith.constant 0 : i32
    return %arg0, %c0_i32, %c0_i32_0 : i32, i32, i32
  }
  func.func @transform_2(%arg0: i32, %arg1: i32) -> (i32, i32, i32) {
    %c0_i32 = arith.constant 0 : i32
    %c0_i32_0 = arith.constant 0 : i32
    %c0_i32_1 = arith.constant 0 : i32
    return %arg0, %c0_i32, %c0_i32_0 : i32, i32, i32
  }
  func.func @transform_3(%arg0: i32, %arg1: i32) -> (i32, i32, i32) {
    %c0_i32 = arith.constant 0 : i32
    %c0_i32_0 = arith.constant 0 : i32
    return %arg0, %c0_i32, %arg1 : i32, i32, i32
  }
}

module attributes {stable_mosaic.version = 11 : i64} {
  func.func @_gemm_bias_act_kernel(%arg0: i32, %arg1: i32, %arg2: memref<1x54x136xbf16, #tpu.memory_space<vmem>>, %arg3: memref<1x2x54xbf16, #tpu.memory_space<vmem>>, %arg4: memref<1x2x1xf32, #tpu.memory_space<vmem>>, %arg5: memref<1x2x136xf32, #tpu.memory_space<vmem>>) attributes {dimension_semantics = [#tpu.dimension_semantics<parallel>, #tpu.dimension_semantics<parallel>], iteration_bounds = array<i64: 2, 1>, scalar_prefetch = 0 : i64, scratch_operands = 0 : i64, tpu.core_type = #tpu.core_type<tc>, window_params = [{transform_indices = @transform_0, window_bounds = array<i64: 1, 54, 136>}, {transform_indices = @transform_1, window_bounds = array<i64: 1, 2, 54>}, {transform_indices = @transform_2, window_bounds = array<i64: 1, 2, 1>}, {transform_indices = @transform_3, window_bounds = array<i64: 1, 2, 136>}]} {
    %c0 = arith.constant 0 : index
    %c0_0 = arith.constant 0 : index
    %c0_1 = arith.constant 0 : index
    %0 = vector.load %arg3[%c0, %c0_0, %c0_1] : memref<1x2x54xbf16, #tpu.memory_space<vmem>>, vector<1x2x54xbf16>
    %1 = vector.shape_cast %0 : vector<1x2x54xbf16> to vector<2x54xbf16>
    %c0_2 = arith.constant 0 : index
    %c0_3 = arith.constant 0 : index
    %c0_4 = arith.constant 0 : index
    %2 = vector.load %arg2[%c0_2, %c0_3, %c0_4] : memref<1x54x136xbf16, #tpu.memory_space<vmem>>, vector<1x54x136xbf16>
    %3 = vector.shape_cast %2 : vector<1x54x136xbf16> to vector<54x136xbf16>
    %cst = arith.constant dense<0.000000e+00> : vector<2x136xf32>
    %4 = tpu.matmul %1, %3, %cst {dimension_numbers = #tpu.dot_dimension_numbers<[1], [0], [0], [1], [0, 0, 1, 1], [], []>} : vector<2x54xbf16>, vector<54x136xbf16>, vector<2x136xf32> -> vector<2x136xf32>
    %c0_5 = arith.constant 0 : index
    %c0_6 = arith.constant 0 : index
    %c0_7 = arith.constant 0 : index
    %5 = vector.load %arg4[%c0_5, %c0_6, %c0_7] : memref<1x2x1xf32, #tpu.memory_space<vmem>>, vector<1x2x1xf32>
    %6 = vector.shape_cast %5 : vector<1x2x1xf32> to vector<2x1xf32>
    %7 = vector.broadcast %6 : vector<2x1xf32> to vector<2x136xf32>
    %8 = arith.addf %4, %7 : vector<2x136xf32>
    %c0_8 = arith.constant 0 : index
    %c0_9 = arith.constant 0 : index
    %c0_10 = arith.constant 0 : index
    %9 = vector.load %arg5[%c0_8, %c0_9, %c0_10] : memref<1x2x136xf32, #tpu.memory_space<vmem>>, vector<1x2x136xf32>
    %10 = vector.shape_cast %9 : vector<1x2x136xf32> to vector<2x136xf32>
    %11 = vector.shape_cast %8 : vector<2x136xf32> to vector<1x2x136xf32>
    tpu.vector_store %arg5[%c0_8, %c0_9, %c0_10], %11 {strides = array<i32>} : memref<1x2x136xf32, #tpu.memory_space<vmem>>, vector<1x2x136xf32>,
    return
  }
  func.func @transform_0(%arg0: i32, %arg1: i32) -> (i32, i32, i32) {
    %c0_i32 = arith.constant 0 : i32
    %c0_i32_0 = arith.constant 0 : i32
    return %arg0, %c0_i32, %arg1 : i32, i32, i32
  }
  func.func @transform_1(%arg0: i32, %arg1: i32) -> (i32, i32, i32) {
    %c0_i32 = arith.constant 0 : i32
    %c0_i32_0 = arith.constant 0 : i32
    %c0_i32_1 = arith.constant 0 : i32
    return %arg0, %c0_i32, %c0_i32_0 : i32, i32, i32
  }
  func.func @transform_2(%arg0: i32, %arg1: i32) -> (i32, i32, i32) {
    %c0_i32 = arith.constant 0 : i32
    %c0_i32_0 = arith.constant 0 : i32
    %c0_i32_1 = arith.constant 0 : i32
    return %arg0, %c0_i32, %c0_i32_0 : i32, i32, i32
  }
  func.func @transform_3(%arg0: i32, %arg1: i32) -> (i32, i32, i32) {
    %c0_i32 = arith.constant 0 : i32
    %c0_i32_0 = arith.constant 0 : i32
    return %arg0, %c0_i32, %arg1 : i32, i32, i32
  }
}

module attributes {stable_mosaic.version = 11 : i64} {
  func.func @_gemm_bias_act_kernel(%arg0: i32, %arg1: i32, %arg2: memref<1x54x272xbf16, #tpu.memory_space<vmem>>, %arg3: memref<1x8x54xbf16, #tpu.memory_space<vmem>>, %arg4: memref<1x8x1xf32, #tpu.memory_space<vmem>>, %arg5: memref<1x8x272xf32, #tpu.memory_space<vmem>>) attributes {dimension_semantics = [#tpu.dimension_semantics<parallel>, #tpu.dimension_semantics<parallel>], iteration_bounds = array<i64: 1, 1>, scalar_prefetch = 0 : i64, scratch_operands = 0 : i64, tpu.core_type = #tpu.core_type<tc>, window_params = [{transform_indices = @transform_0, window_bounds = array<i64: 1, 54, 272>}, {transform_indices = @transform_1, window_bounds = array<i64: 1, 8, 54>}, {transform_indices = @transform_2, window_bounds = array<i64: 1, 8, 1>}, {transform_indices = @transform_3, window_bounds = array<i64: 1, 8, 272>}]} {
    %c0 = arith.constant 0 : index
    %c0_0 = arith.constant 0 : index
    %c0_1 = arith.constant 0 : index
    %0 = vector.load %arg3[%c0, %c0_0, %c0_1] : memref<1x8x54xbf16, #tpu.memory_space<vmem>>, vector<1x8x54xbf16>
    %1 = vector.shape_cast %0 : vector<1x8x54xbf16> to vector<8x54xbf16>
    %c0_2 = arith.constant 0 : index
    %c0_3 = arith.constant 0 : index
    %c0_4 = arith.constant 0 : index
    %2 = vector.load %arg2[%c0_2, %c0_3, %c0_4] : memref<1x54x272xbf16, #tpu.memory_space<vmem>>, vector<1x54x272xbf16>
    %3 = vector.shape_cast %2 : vector<1x54x272xbf16> to vector<54x272xbf16>
    %cst = arith.constant dense<0.000000e+00> : vector<8x272xf32>
    %4 = tpu.matmul %1, %3, %cst {dimension_numbers = #tpu.dot_dimension_numbers<[1], [0], [0], [1], [0, 0, 1, 1], [], []>} : vector<8x54xbf16>, vector<54x272xbf16>, vector<8x272xf32> -> vector<8x272xf32>
    %c0_5 = arith.constant 0 : index
    %c0_6 = arith.constant 0 : index
    %c0_7 = arith.constant 0 : index
    %5 = vector.load %arg4[%c0_5, %c0_6, %c0_7] : memref<1x8x1xf32, #tpu.memory_space<vmem>>, vector<1x8x1xf32>
    %6 = vector.shape_cast %5 : vector<1x8x1xf32> to vector<8x1xf32>
    %7 = vector.broadcast %6 : vector<8x1xf32> to vector<8x272xf32>
    %8 = arith.addf %4, %7 : vector<8x272xf32>
    %cst_8 = arith.constant 0.000000e+00 : f32
    %9 = vector.broadcast %cst_8 : f32 to vector<8x272xf32>
    %10 = arith.cmpf oge, %8, %9 : vector<8x272xf32>
    %cst_9 = arith.constant 1.000000e-01 : f32
    %11 = vector.broadcast %cst_9 : f32 to vector<8x272xf32>
    %12 = arith.mulf %11, %8 : vector<8x272xf32>
    %13 = arith.select %10, %8, %12 : vector<8x272xi1>, vector<8x272xf32>
    %c0_10 = arith.constant 0 : index
    %c0_11 = arith.constant 0 : index
    %c0_12 = arith.constant 0 : index
    %14 = vector.load %arg5[%c0_10, %c0_11, %c0_12] : memref<1x8x272xf32, #tpu.memory_space<vmem>>, vector<1x8x272xf32>
    %15 = vector.shape_cast %14 : vector<1x8x272xf32> to vector<8x272xf32>
    %16 = vector.shape_cast %13 : vector<8x272xf32> to vector<1x8x272xf32>
    tpu.vector_store %arg5[%c0_10, %c0_11, %c0_12], %16 {strides = array<i32>} : memref<1x8x272xf32, #tpu.memory_space<vmem>>, vector<1x8x272xf32>,
    return
  }
  func.func @transform_0(%arg0: i32, %arg1: i32) -> (i32, i32, i32) {
    %c0_i32 = arith.constant 0 : i32
    %c0_i32_0 = arith.constant 0 : i32
    return %arg0, %c0_i32, %arg1 : i32, i32, i32
  }
  func.func @transform_1(%arg0: i32, %arg1: i32) -> (i32, i32, i32) {
    %c0_i32 = arith.constant 0 : i32
    %c0_i32_0 = arith.constant 0 : i32
    %c0_i32_1 = arith.constant 0 : i32
    return %arg0, %c0_i32, %c0_i32_0 : i32, i32, i32
  }
  func.func @transform_2(%arg0: i32, %arg1: i32) -> (i32, i32, i32) {
    %c0_i32 = arith.constant 0 : i32
    %c0_i32_0 = arith.constant 0 : i32
    %c0_i32_1 = arith.constant 0 : i32
    return %arg0, %c0_i32, %c0_i32_0 : i32, i32, i32
  }
  func.func @transform_3(%arg0: i32, %arg1: i32) -> (i32, i32, i32) {
    %c0_i32 = arith.constant 0 : i32
    %c0_i32_0 = arith.constant 0 : i32
    return %arg0, %c0_i32, %arg1 : i32, i32, i32
  }
}

module attributes {stable_mosaic.version = 11 : i64} {
  func.func @_gemm_bias_act_kernel(%arg0: i32, %arg1: i32, %arg2: memref<1x216x136xbf16, #tpu.memory_space<vmem>>, %arg3: memref<1x8x216xbf16, #tpu.memory_space<vmem>>, %arg4: memref<1x8x1xf32, #tpu.memory_space<vmem>>, %arg5: memref<1x8x136xf32, #tpu.memory_space<vmem>>) attributes {dimension_semantics = [#tpu.dimension_semantics<parallel>, #tpu.dimension_semantics<parallel>], iteration_bounds = array<i64: 1, 1>, scalar_prefetch = 0 : i64, scratch_operands = 0 : i64, tpu.core_type = #tpu.core_type<tc>, window_params = [{transform_indices = @transform_0, window_bounds = array<i64: 1, 216, 136>}, {transform_indices = @transform_1, window_bounds = array<i64: 1, 8, 216>}, {transform_indices = @transform_2, window_bounds = array<i64: 1, 8, 1>}, {transform_indices = @transform_3, window_bounds = array<i64: 1, 8, 136>}]} {
    %c0 = arith.constant 0 : index
    %c0_0 = arith.constant 0 : index
    %c0_1 = arith.constant 0 : index
    %0 = vector.load %arg3[%c0, %c0_0, %c0_1] : memref<1x8x216xbf16, #tpu.memory_space<vmem>>, vector<1x8x216xbf16>
    %1 = vector.shape_cast %0 : vector<1x8x216xbf16> to vector<8x216xbf16>
    %c0_2 = arith.constant 0 : index
    %c0_3 = arith.constant 0 : index
    %c0_4 = arith.constant 0 : index
    %2 = vector.load %arg2[%c0_2, %c0_3, %c0_4] : memref<1x216x136xbf16, #tpu.memory_space<vmem>>, vector<1x216x136xbf16>
    %3 = vector.shape_cast %2 : vector<1x216x136xbf16> to vector<216x136xbf16>
    %cst = arith.constant dense<0.000000e+00> : vector<8x136xf32>
    %4 = tpu.matmul %1, %3, %cst {dimension_numbers = #tpu.dot_dimension_numbers<[1], [0], [0], [1], [0, 0, 1, 1], [], []>} : vector<8x216xbf16>, vector<216x136xbf16>, vector<8x136xf32> -> vector<8x136xf32>
    %c0_5 = arith.constant 0 : index
    %c0_6 = arith.constant 0 : index
    %c0_7 = arith.constant 0 : index
    %5 = vector.load %arg4[%c0_5, %c0_6, %c0_7] : memref<1x8x1xf32, #tpu.memory_space<vmem>>, vector<1x8x1xf32>
    %6 = vector.shape_cast %5 : vector<1x8x1xf32> to vector<8x1xf32>
    %7 = vector.broadcast %6 : vector<8x1xf32> to vector<8x136xf32>
    %8 = arith.addf %4, %7 : vector<8x136xf32>
    %cst_8 = arith.constant 0.000000e+00 : f32
    %9 = vector.broadcast %cst_8 : f32 to vector<8x136xf32>
    %10 = arith.cmpf oge, %8, %9 : vector<8x136xf32>
    %cst_9 = arith.constant 1.000000e-01 : f32
    %11 = vector.broadcast %cst_9 : f32 to vector<8x136xf32>
    %12 = arith.mulf %11, %8 : vector<8x136xf32>
    %13 = arith.select %10, %8, %12 : vector<8x136xi1>, vector<8x136xf32>
    %c0_10 = arith.constant 0 : index
    %c0_11 = arith.constant 0 : index
    %c0_12 = arith.constant 0 : index
    %14 = vector.load %arg5[%c0_10, %c0_11, %c0_12] : memref<1x8x136xf32, #tpu.memory_space<vmem>>, vector<1x8x136xf32>
    %15 = vector.shape_cast %14 : vector<1x8x136xf32> to vector<8x136xf32>
    %16 = vector.shape_cast %13 : vector<8x136xf32> to vector<1x8x136xf32>
    tpu.vector_store %arg5[%c0_10, %c0_11, %c0_12], %16 {strides = array<i32>} : memref<1x8x136xf32, #tpu.memory_space<vmem>>, vector<1x8x136xf32>,
    return
  }
  func.func @transform_0(%arg0: i32, %arg1: i32) -> (i32, i32, i32) {
    %c0_i32 = arith.constant 0 : i32
    %c0_i32_0 = arith.constant 0 : i32
    return %arg0, %c0_i32, %arg1 : i32, i32, i32
  }
  func.func @transform_1(%arg0: i32, %arg1: i32) -> (i32, i32, i32) {
    %c0_i32 = arith.constant 0 : i32
    %c0_i32_0 = arith.constant 0 : i32
    %c0_i32_1 = arith.constant 0 : i32
    return %arg0, %c0_i32, %c0_i32_0 : i32, i32, i32
  }
  func.func @transform_2(%arg0: i32, %arg1: i32) -> (i32, i32, i32) {
    %c0_i32 = arith.constant 0 : i32
    %c0_i32_0 = arith.constant 0 : i32
    %c0_i32_1 = arith.constant 0 : i32
    return %arg0, %c0_i32, %c0_i32_0 : i32, i32, i32
  }
  func.func @transform_3(%arg0: i32, %arg1: i32) -> (i32, i32, i32) {
    %c0_i32 = arith.constant 0 : i32
    %c0_i32_0 = arith.constant 0 : i32
    return %arg0, %c0_i32, %arg1 : i32, i32, i32
  }
}

module attributes {stable_mosaic.version = 11 : i64} {
  func.func @_gemm_bias_act_kernel(%arg0: i32, %arg1: i32, %arg2: memref<1x216x68xbf16, #tpu.memory_space<vmem>>, %arg3: memref<1x8x216xbf16, #tpu.memory_space<vmem>>, %arg4: memref<1x8x1xf32, #tpu.memory_space<vmem>>, %arg5: memref<1x8x68xf32, #tpu.memory_space<vmem>>) attributes {dimension_semantics = [#tpu.dimension_semantics<parallel>, #tpu.dimension_semantics<parallel>], iteration_bounds = array<i64: 1, 1>, scalar_prefetch = 0 : i64, scratch_operands = 0 : i64, tpu.core_type = #tpu.core_type<tc>, window_params = [{transform_indices = @transform_0, window_bounds = array<i64: 1, 216, 68>}, {transform_indices = @transform_1, window_bounds = array<i64: 1, 8, 216>}, {transform_indices = @transform_2, window_bounds = array<i64: 1, 8, 1>}, {transform_indices = @transform_3, window_bounds = array<i64: 1, 8, 68>}]} {
    %c0 = arith.constant 0 : index
    %c0_0 = arith.constant 0 : index
    %c0_1 = arith.constant 0 : index
    %0 = vector.load %arg3[%c0, %c0_0, %c0_1] : memref<1x8x216xbf16, #tpu.memory_space<vmem>>, vector<1x8x216xbf16>
    %1 = vector.shape_cast %0 : vector<1x8x216xbf16> to vector<8x216xbf16>
    %c0_2 = arith.constant 0 : index
    %c0_3 = arith.constant 0 : index
    %c0_4 = arith.constant 0 : index
    %2 = vector.load %arg2[%c0_2, %c0_3, %c0_4] : memref<1x216x68xbf16, #tpu.memory_space<vmem>>, vector<1x216x68xbf16>
    %3 = vector.shape_cast %2 : vector<1x216x68xbf16> to vector<216x68xbf16>
    %cst = arith.constant dense<0.000000e+00> : vector<8x68xf32>
    %4 = tpu.matmul %1, %3, %cst {dimension_numbers = #tpu.dot_dimension_numbers<[1], [0], [0], [1], [0, 0, 1, 1], [], []>} : vector<8x216xbf16>, vector<216x68xbf16>, vector<8x68xf32> -> vector<8x68xf32>
    %c0_5 = arith.constant 0 : index
    %c0_6 = arith.constant 0 : index
    %c0_7 = arith.constant 0 : index
    %5 = vector.load %arg4[%c0_5, %c0_6, %c0_7] : memref<1x8x1xf32, #tpu.memory_space<vmem>>, vector<1x8x1xf32>
    %6 = vector.shape_cast %5 : vector<1x8x1xf32> to vector<8x1xf32>
    %7 = vector.broadcast %6 : vector<8x1xf32> to vector<8x68xf32>
    %8 = arith.addf %4, %7 : vector<8x68xf32>
    %cst_8 = arith.constant 0.000000e+00 : f32
    %9 = vector.broadcast %cst_8 : f32 to vector<8x68xf32>
    %10 = arith.cmpf oge, %8, %9 : vector<8x68xf32>
    %cst_9 = arith.constant 1.000000e-01 : f32
    %11 = vector.broadcast %cst_9 : f32 to vector<8x68xf32>
    %12 = arith.mulf %11, %8 : vector<8x68xf32>
    %13 = arith.select %10, %8, %12 : vector<8x68xi1>, vector<8x68xf32>
    %c0_10 = arith.constant 0 : index
    %c0_11 = arith.constant 0 : index
    %c0_12 = arith.constant 0 : index
    %14 = vector.load %arg5[%c0_10, %c0_11, %c0_12] : memref<1x8x68xf32, #tpu.memory_space<vmem>>, vector<1x8x68xf32>
    %15 = vector.shape_cast %14 : vector<1x8x68xf32> to vector<8x68xf32>
    %16 = vector.shape_cast %13 : vector<8x68xf32> to vector<1x8x68xf32>
    tpu.vector_store %arg5[%c0_10, %c0_11, %c0_12], %16 {strides = array<i32>} : memref<1x8x68xf32, #tpu.memory_space<vmem>>, vector<1x8x68xf32>,
    return
  }
  func.func @transform_0(%arg0: i32, %arg1: i32) -> (i32, i32, i32) {
    %c0_i32 = arith.constant 0 : i32
    %c0_i32_0 = arith.constant 0 : i32
    return %arg0, %c0_i32, %arg1 : i32, i32, i32
  }
  func.func @transform_1(%arg0: i32, %arg1: i32) -> (i32, i32, i32) {
    %c0_i32 = arith.constant 0 : i32
    %c0_i32_0 = arith.constant 0 : i32
    %c0_i32_1 = arith.constant 0 : i32
    return %arg0, %c0_i32, %c0_i32_0 : i32, i32, i32
  }
  func.func @transform_2(%arg0: i32, %arg1: i32) -> (i32, i32, i32) {
    %c0_i32 = arith.constant 0 : i32
    %c0_i32_0 = arith.constant 0 : i32
    %c0_i32_1 = arith.constant 0 : i32
    return %arg0, %c0_i32, %c0_i32_0 : i32, i32, i32
  }
  func.func @transform_3(%arg0: i32, %arg1: i32) -> (i32, i32, i32) {
    %c0_i32 = arith.constant 0 : i32
    %c0_i32_0 = arith.constant 0 : i32
    return %arg0, %c0_i32, %arg1 : i32, i32, i32
  }
}

module attributes {stable_mosaic.version = 11 : i64} {
  func.func @_gemm_bias_act_kernel(%arg0: i32, %arg1: i32, %arg2: memref<1x72x68xbf16, #tpu.memory_space<vmem>>, %arg3: memref<1x8x72xbf16, #tpu.memory_space<vmem>>, %arg4: memref<1x8x1xf32, #tpu.memory_space<vmem>>, %arg5: memref<1x8x68xf32, #tpu.memory_space<vmem>>) attributes {dimension_semantics = [#tpu.dimension_semantics<parallel>, #tpu.dimension_semantics<parallel>], iteration_bounds = array<i64: 1, 1>, scalar_prefetch = 0 : i64, scratch_operands = 0 : i64, tpu.core_type = #tpu.core_type<tc>, window_params = [{transform_indices = @transform_0, window_bounds = array<i64: 1, 72, 68>}, {transform_indices = @transform_1, window_bounds = array<i64: 1, 8, 72>}, {transform_indices = @transform_2, window_bounds = array<i64: 1, 8, 1>}, {transform_indices = @transform_3, window_bounds = array<i64: 1, 8, 68>}]} {
    %c0 = arith.constant 0 : index
    %c0_0 = arith.constant 0 : index
    %c0_1 = arith.constant 0 : index
    %0 = vector.load %arg3[%c0, %c0_0, %c0_1] : memref<1x8x72xbf16, #tpu.memory_space<vmem>>, vector<1x8x72xbf16>
    %1 = vector.shape_cast %0 : vector<1x8x72xbf16> to vector<8x72xbf16>
    %c0_2 = arith.constant 0 : index
    %c0_3 = arith.constant 0 : index
    %c0_4 = arith.constant 0 : index
    %2 = vector.load %arg2[%c0_2, %c0_3, %c0_4] : memref<1x72x68xbf16, #tpu.memory_space<vmem>>, vector<1x72x68xbf16>
    %3 = vector.shape_cast %2 : vector<1x72x68xbf16> to vector<72x68xbf16>
    %cst = arith.constant dense<0.000000e+00> : vector<8x68xf32>
    %4 = tpu.matmul %1, %3, %cst {dimension_numbers = #tpu.dot_dimension_numbers<[1], [0], [0], [1], [0, 0, 1, 1], [], []>} : vector<8x72xbf16>, vector<72x68xbf16>, vector<8x68xf32> -> vector<8x68xf32>
    %c0_5 = arith.constant 0 : index
    %c0_6 = arith.constant 0 : index
    %c0_7 = arith.constant 0 : index
    %5 = vector.load %arg4[%c0_5, %c0_6, %c0_7] : memref<1x8x1xf32, #tpu.memory_space<vmem>>, vector<1x8x1xf32>
    %6 = vector.shape_cast %5 : vector<1x8x1xf32> to vector<8x1xf32>
    %7 = vector.broadcast %6 : vector<8x1xf32> to vector<8x68xf32>
    %8 = arith.addf %4, %7 : vector<8x68xf32>
    %cst_8 = arith.constant 0.000000e+00 : f32
    %9 = vector.broadcast %cst_8 : f32 to vector<8x68xf32>
    %10 = arith.cmpf oge, %8, %9 : vector<8x68xf32>
    %cst_9 = arith.constant 1.000000e-01 : f32
    %11 = vector.broadcast %cst_9 : f32 to vector<8x68xf32>
    %12 = arith.mulf %11, %8 : vector<8x68xf32>
    %13 = arith.select %10, %8, %12 : vector<8x68xi1>, vector<8x68xf32>
    %c0_10 = arith.constant 0 : index
    %c0_11 = arith.constant 0 : index
    %c0_12 = arith.constant 0 : index
    %14 = vector.load %arg5[%c0_10, %c0_11, %c0_12] : memref<1x8x68xf32, #tpu.memory_space<vmem>>, vector<1x8x68xf32>
    %15 = vector.shape_cast %14 : vector<1x8x68xf32> to vector<8x68xf32>
    %16 = vector.shape_cast %13 : vector<8x68xf32> to vector<1x8x68xf32>
    tpu.vector_store %arg5[%c0_10, %c0_11, %c0_12], %16 {strides = array<i32>} : memref<1x8x68xf32, #tpu.memory_space<vmem>>, vector<1x8x68xf32>,
    return
  }
  func.func @transform_0(%arg0: i32, %arg1: i32) -> (i32, i32, i32) {
    %c0_i32 = arith.constant 0 : i32
    %c0_i32_0 = arith.constant 0 : i32
    return %arg0, %c0_i32, %arg1 : i32, i32, i32
  }
  func.func @transform_1(%arg0: i32, %arg1: i32) -> (i32, i32, i32) {
    %c0_i32 = arith.constant 0 : i32
    %c0_i32_0 = arith.constant 0 : i32
    %c0_i32_1 = arith.constant 0 : i32
    return %arg0, %c0_i32, %c0_i32_0 : i32, i32, i32
  }
  func.func @transform_2(%arg0: i32, %arg1: i32) -> (i32, i32, i32) {
    %c0_i32 = arith.constant 0 : i32
    %c0_i32_0 = arith.constant 0 : i32
    %c0_i32_1 = arith.constant 0 : i32
    return %arg0, %c0_i32, %c0_i32_0 : i32, i32, i32
  }
  func.func @transform_3(%arg0: i32, %arg1: i32) -> (i32, i32, i32) {
    %c0_i32 = arith.constant 0 : i32
    %c0_i32_0 = arith.constant 0 : i32
    return %arg0, %c0_i32, %arg1 : i32, i32, i32
  }
}

module attributes {stable_mosaic.version = 11 : i64} {
  func.func @_gemm_bias_act_kernel(%arg0: i32, %arg1: i32, %arg2: memref<1x72x68xbf16, #tpu.memory_space<vmem>>, %arg3: memref<1x1x72xbf16, #tpu.memory_space<vmem>>, %arg4: memref<1x1x1xf32, #tpu.memory_space<vmem>>, %arg5: memref<1x1x68xf32, #tpu.memory_space<vmem>>) attributes {dimension_semantics = [#tpu.dimension_semantics<parallel>, #tpu.dimension_semantics<parallel>], iteration_bounds = array<i64: 1, 1>, scalar_prefetch = 0 : i64, scratch_operands = 0 : i64, tpu.core_type = #tpu.core_type<tc>, window_params = [{transform_indices = @transform_0, window_bounds = array<i64: 1, 72, 68>}, {transform_indices = @transform_1, window_bounds = array<i64: 1, 1, 72>}, {transform_indices = @transform_2, window_bounds = array<i64: 1, 1, 1>}, {transform_indices = @transform_3, window_bounds = array<i64: 1, 1, 68>}]} {
    %c0 = arith.constant 0 : index
    %c0_0 = arith.constant 0 : index
    %c0_1 = arith.constant 0 : index
    %0 = vector.load %arg3[%c0, %c0_0, %c0_1] : memref<1x1x72xbf16, #tpu.memory_space<vmem>>, vector<1x1x72xbf16>
    %1 = vector.shape_cast %0 : vector<1x1x72xbf16> to vector<1x72xbf16>
    %c0_2 = arith.constant 0 : index
    %c0_3 = arith.constant 0 : index
    %c0_4 = arith.constant 0 : index
    %2 = vector.load %arg2[%c0_2, %c0_3, %c0_4] : memref<1x72x68xbf16, #tpu.memory_space<vmem>>, vector<1x72x68xbf16>
    %3 = vector.shape_cast %2 : vector<1x72x68xbf16> to vector<72x68xbf16>
    %cst = arith.constant dense<0.000000e+00> : vector<1x68xf32>
    %4 = tpu.matmul %1, %3, %cst {dimension_numbers = #tpu.dot_dimension_numbers<[1], [0], [0], [1], [0, 0, 1, 1], [], []>} : vector<1x72xbf16>, vector<72x68xbf16>, vector<1x68xf32> -> vector<1x68xf32>
    %c0_5 = arith.constant 0 : index
    %c0_6 = arith.constant 0 : index
    %c0_7 = arith.constant 0 : index
    %5 = vector.load %arg4[%c0_5, %c0_6, %c0_7] : memref<1x1x1xf32, #tpu.memory_space<vmem>>, vector<1x1x1xf32>
    %6 = vector.shape_cast %5 : vector<1x1x1xf32> to vector<1x1xf32>
    %7 = vector.broadcast %6 : vector<1x1xf32> to vector<1x68xf32>
    %8 = arith.addf %4, %7 : vector<1x68xf32>
    %c0_8 = arith.constant 0 : index
    %c0_9 = arith.constant 0 : index
    %c0_10 = arith.constant 0 : index
    %9 = vector.load %arg5[%c0_8, %c0_9, %c0_10] : memref<1x1x68xf32, #tpu.memory_space<vmem>>, vector<1x1x68xf32>
    %10 = vector.shape_cast %9 : vector<1x1x68xf32> to vector<1x68xf32>
    %11 = vector.shape_cast %8 : vector<1x68xf32> to vector<1x1x68xf32>
    tpu.vector_store %arg5[%c0_8, %c0_9, %c0_10], %11 {strides = array<i32>} : memref<1x1x68xf32, #tpu.memory_space<vmem>>, vector<1x1x68xf32>,
    return
  }
  func.func @transform_0(%arg0: i32, %arg1: i32) -> (i32, i32, i32) {
    %c0_i32 = arith.constant 0 : i32
    %c0_i32_0 = arith.constant 0 : i32
    return %arg0, %c0_i32, %arg1 : i32, i32, i32
  }
  func.func @transform_1(%arg0: i32, %arg1: i32) -> (i32, i32, i32) {
    %c0_i32 = arith.constant 0 : i32
    %c0_i32_0 = arith.constant 0 : i32
    %c0_i32_1 = arith.constant 0 : i32
    return %arg0, %c0_i32, %c0_i32_0 : i32, i32, i32
  }
  func.func @transform_2(%arg0: i32, %arg1: i32) -> (i32, i32, i32) {
    %c0_i32 = arith.constant 0 : i32
    %c0_i32_0 = arith.constant 0 : i32
    %c0_i32_1 = arith.constant 0 : i32
    return %arg0, %c0_i32, %c0_i32_0 : i32, i32, i32
  }
  func.func @transform_3(%arg0: i32, %arg1: i32) -> (i32, i32, i32) {
    %c0_i32 = arith.constant 0 : i32
    %c0_i32_0 = arith.constant 0 : i32
    return %arg0, %c0_i32, %arg1 : i32, i32, i32
  }
}

module attributes {stable_mosaic.version = 11 : i64} {
  func.func @_gemm_bias_act_kernel(%arg0: i32, %arg1: i32, %arg2: memref<1x64x18xbf16, #tpu.memory_space<vmem>>, %arg3: memref<1x32x64xbf16, #tpu.memory_space<vmem>>, %arg4: memref<1x32x1xf32, #tpu.memory_space<vmem>>, %arg5: memref<1x32x18xf32, #tpu.memory_space<vmem>>) attributes {dimension_semantics = [#tpu.dimension_semantics<parallel>, #tpu.dimension_semantics<parallel>], iteration_bounds = array<i64: 1, 1>, scalar_prefetch = 0 : i64, scratch_operands = 0 : i64, tpu.core_type = #tpu.core_type<tc>, window_params = [{transform_indices = @transform_0, window_bounds = array<i64: 1, 64, 18>}, {transform_indices = @transform_1, window_bounds = array<i64: 1, 32, 64>}, {transform_indices = @transform_2, window_bounds = array<i64: 1, 32, 1>}, {transform_indices = @transform_3, window_bounds = array<i64: 1, 32, 18>}]} {
    %c0 = arith.constant 0 : index
    %c0_0 = arith.constant 0 : index
    %c0_1 = arith.constant 0 : index
    %0 = vector.load %arg3[%c0, %c0_0, %c0_1] : memref<1x32x64xbf16, #tpu.memory_space<vmem>>, vector<1x32x64xbf16>
    %1 = vector.shape_cast %0 : vector<1x32x64xbf16> to vector<32x64xbf16>
    %c0_2 = arith.constant 0 : index
    %c0_3 = arith.constant 0 : index
    %c0_4 = arith.constant 0 : index
    %2 = vector.load %arg2[%c0_2, %c0_3, %c0_4] : memref<1x64x18xbf16, #tpu.memory_space<vmem>>, vector<1x64x18xbf16>
    %3 = vector.shape_cast %2 : vector<1x64x18xbf16> to vector<64x18xbf16>
    %cst = arith.constant dense<0.000000e+00> : vector<32x18xf32>
    %4 = tpu.matmul %1, %3, %cst {dimension_numbers = #tpu.dot_dimension_numbers<[1], [0], [0], [1], [0, 0, 1, 1], [], []>} : vector<32x64xbf16>, vector<64x18xbf16>, vector<32x18xf32> -> vector<32x18xf32>
    %c0_5 = arith.constant 0 : index
    %c0_6 = arith.constant 0 : index
    %c0_7 = arith.constant 0 : index
    %5 = vector.load %arg4[%c0_5, %c0_6, %c0_7] : memref<1x32x1xf32, #tpu.memory_space<vmem>>, vector<1x32x1xf32>
    %6 = vector.shape_cast %5 : vector<1x32x1xf32> to vector<32x1xf32>
    %7 = vector.broadcast %6 : vector<32x1xf32> to vector<32x18xf32>
    %8 = arith.addf %4, %7 : vector<32x18xf32>
    %c0_8 = arith.constant 0 : index
    %c0_9 = arith.constant 0 : index
    %c0_10 = arith.constant 0 : index
    %9 = vector.load %arg5[%c0_8, %c0_9, %c0_10] : memref<1x32x18xf32, #tpu.memory_space<vmem>>, vector<1x32x18xf32>
    %10 = vector.shape_cast %9 : vector<1x32x18xf32> to vector<32x18xf32>
    %11 = vector.shape_cast %8 : vector<32x18xf32> to vector<1x32x18xf32>
    tpu.vector_store %arg5[%c0_8, %c0_9, %c0_10], %11 {strides = array<i32>} : memref<1x32x18xf32, #tpu.memory_space<vmem>>, vector<1x32x18xf32>,
    return
  }
  func.func @transform_0(%arg0: i32, %arg1: i32) -> (i32, i32, i32) {
    %c0_i32 = arith.constant 0 : i32
    %c0_i32_0 = arith.constant 0 : i32
    return %arg0, %c0_i32, %arg1 : i32, i32, i32
  }
  func.func @transform_1(%arg0: i32, %arg1: i32) -> (i32, i32, i32) {
    %c0_i32 = arith.constant 0 : i32
    %c0_i32_0 = arith.constant 0 : i32
    %c0_i32_1 = arith.constant 0 : i32
    return %arg0, %c0_i32, %c0_i32_0 : i32, i32, i32
  }
  func.func @transform_2(%arg0: i32, %arg1: i32) -> (i32, i32, i32) {
    %c0_i32 = arith.constant 0 : i32
    %c0_i32_0 = arith.constant 0 : i32
    %c0_i32_1 = arith.constant 0 : i32
    return %arg0, %c0_i32, %c0_i32_0 : i32, i32, i32
  }
  func.func @transform_3(%arg0: i32, %arg1: i32) -> (i32, i32, i32) {
    %c0_i32 = arith.constant 0 : i32
    %c0_i32_0 = arith.constant 0 : i32
    return %arg0, %c0_i32, %arg1 : i32, i32, i32
  }
}

module attributes {stable_mosaic.version = 11 : i64} {
  func.func @_gemm_bias_act_kernel(%arg0: i32, %arg1: i32, %arg2: memref<1x54x144xbf16, #tpu.memory_space<vmem>>, %arg3: memref<1x2x54xbf16, #tpu.memory_space<vmem>>, %arg4: memref<1x2x1xf32, #tpu.memory_space<vmem>>, %arg5: memref<1x2x144xf32, #tpu.memory_space<vmem>>) attributes {dimension_semantics = [#tpu.dimension_semantics<parallel>, #tpu.dimension_semantics<parallel>], iteration_bounds = array<i64: 2, 1>, scalar_prefetch = 0 : i64, scratch_operands = 0 : i64, tpu.core_type = #tpu.core_type<tc>, window_params = [{transform_indices = @transform_0, window_bounds = array<i64: 1, 54, 144>}, {transform_indices = @transform_1, window_bounds = array<i64: 1, 2, 54>}, {transform_indices = @transform_2, window_bounds = array<i64: 1, 2, 1>}, {transform_indices = @transform_3, window_bounds = array<i64: 1, 2, 144>}]} {
    %c0 = arith.constant 0 : index
    %c0_0 = arith.constant 0 : index
    %c0_1 = arith.constant 0 : index
    %0 = vector.load %arg3[%c0, %c0_0, %c0_1] : memref<1x2x54xbf16, #tpu.memory_space<vmem>>, vector<1x2x54xbf16>
    %1 = vector.shape_cast %0 : vector<1x2x54xbf16> to vector<2x54xbf16>
    %c0_2 = arith.constant 0 : index
    %c0_3 = arith.constant 0 : index
    %c0_4 = arith.constant 0 : index
    %2 = vector.load %arg2[%c0_2, %c0_3, %c0_4] : memref<1x54x144xbf16, #tpu.memory_space<vmem>>, vector<1x54x144xbf16>
    %3 = vector.shape_cast %2 : vector<1x54x144xbf16> to vector<54x144xbf16>
    %cst = arith.constant dense<0.000000e+00> : vector<2x144xf32>
    %4 = tpu.matmul %1, %3, %cst {dimension_numbers = #tpu.dot_dimension_numbers<[1], [0], [0], [1], [0, 0, 1, 1], [], []>} : vector<2x54xbf16>, vector<54x144xbf16>, vector<2x144xf32> -> vector<2x144xf32>
    %c0_5 = arith.constant 0 : index
    %c0_6 = arith.constant 0 : index
    %c0_7 = arith.constant 0 : index
    %5 = vector.load %arg4[%c0_5, %c0_6, %c0_7] : memref<1x2x1xf32, #tpu.memory_space<vmem>>, vector<1x2x1xf32>
    %6 = vector.shape_cast %5 : vector<1x2x1xf32> to vector<2x1xf32>
    %7 = vector.broadcast %6 : vector<2x1xf32> to vector<2x144xf32>
    %8 = arith.addf %4, %7 : vector<2x144xf32>
    %c0_8 = arith.constant 0 : index
    %c0_9 = arith.constant 0 : index
    %c0_10 = arith.constant 0 : index
    %9 = vector.load %arg5[%c0_8, %c0_9, %c0_10] : memref<1x2x144xf32, #tpu.memory_space<vmem>>, vector<1x2x144xf32>
    %10 = vector.shape_cast %9 : vector<1x2x144xf32> to vector<2x144xf32>
    %11 = vector.shape_cast %8 : vector<2x144xf32> to vector<1x2x144xf32>
    tpu.vector_store %arg5[%c0_8, %c0_9, %c0_10], %11 {strides = array<i32>} : memref<1x2x144xf32, #tpu.memory_space<vmem>>, vector<1x2x144xf32>,
    return
  }
  func.func @transform_0(%arg0: i32, %arg1: i32) -> (i32, i32, i32) {
    %c0_i32 = arith.constant 0 : i32
    %c0_i32_0 = arith.constant 0 : i32
    return %arg0, %c0_i32, %arg1 : i32, i32, i32
  }
  func.func @transform_1(%arg0: i32, %arg1: i32) -> (i32, i32, i32) {
    %c0_i32 = arith.constant 0 : i32
    %c0_i32_0 = arith.constant 0 : i32
    %c0_i32_1 = arith.constant 0 : i32
    return %arg0, %c0_i32, %c0_i32_0 : i32, i32, i32
  }
  func.func @transform_2(%arg0: i32, %arg1: i32) -> (i32, i32, i32) {
    %c0_i32 = arith.constant 0 : i32
    %c0_i32_0 = arith.constant 0 : i32
    %c0_i32_1 = arith.constant 0 : i32
    return %arg0, %c0_i32, %c0_i32_0 : i32, i32, i32
  }
  func.func @transform_3(%arg0: i32, %arg1: i32) -> (i32, i32, i32) {
    %c0_i32 = arith.constant 0 : i32
    %c0_i32_0 = arith.constant 0 : i32
    return %arg0, %c0_i32, %arg1 : i32, i32, i32
  }
}

module attributes {stable_mosaic.version = 11 : i64} {
  func.func @_gemm_bias_act_kernel(%arg0: i32, %arg1: i32, %arg2: memref<1x54x288xbf16, #tpu.memory_space<vmem>>, %arg3: memref<1x8x54xbf16, #tpu.memory_space<vmem>>, %arg4: memref<1x8x1xf32, #tpu.memory_space<vmem>>, %arg5: memref<1x8x288xf32, #tpu.memory_space<vmem>>) attributes {dimension_semantics = [#tpu.dimension_semantics<parallel>, #tpu.dimension_semantics<parallel>], iteration_bounds = array<i64: 1, 1>, scalar_prefetch = 0 : i64, scratch_operands = 0 : i64, tpu.core_type = #tpu.core_type<tc>, window_params = [{transform_indices = @transform_0, window_bounds = array<i64: 1, 54, 288>}, {transform_indices = @transform_1, window_bounds = array<i64: 1, 8, 54>}, {transform_indices = @transform_2, window_bounds = array<i64: 1, 8, 1>}, {transform_indices = @transform_3, window_bounds = array<i64: 1, 8, 288>}]} {
    %c0 = arith.constant 0 : index
    %c0_0 = arith.constant 0 : index
    %c0_1 = arith.constant 0 : index
    %0 = vector.load %arg3[%c0, %c0_0, %c0_1] : memref<1x8x54xbf16, #tpu.memory_space<vmem>>, vector<1x8x54xbf16>
    %1 = vector.shape_cast %0 : vector<1x8x54xbf16> to vector<8x54xbf16>
    %c0_2 = arith.constant 0 : index
    %c0_3 = arith.constant 0 : index
    %c0_4 = arith.constant 0 : index
    %2 = vector.load %arg2[%c0_2, %c0_3, %c0_4] : memref<1x54x288xbf16, #tpu.memory_space<vmem>>, vector<1x54x288xbf16>
    %3 = vector.shape_cast %2 : vector<1x54x288xbf16> to vector<54x288xbf16>
    %cst = arith.constant dense<0.000000e+00> : vector<8x288xf32>
    %4 = tpu.matmul %1, %3, %cst {dimension_numbers = #tpu.dot_dimension_numbers<[1], [0], [0], [1], [0, 0, 1, 1], [], []>} : vector<8x54xbf16>, vector<54x288xbf16>, vector<8x288xf32> -> vector<8x288xf32>
    %c0_5 = arith.constant 0 : index
    %c0_6 = arith.constant 0 : index
    %c0_7 = arith.constant 0 : index
    %5 = vector.load %arg4[%c0_5, %c0_6, %c0_7] : memref<1x8x1xf32, #tpu.memory_space<vmem>>, vector<1x8x1xf32>
    %6 = vector.shape_cast %5 : vector<1x8x1xf32> to vector<8x1xf32>
    %7 = vector.broadcast %6 : vector<8x1xf32> to vector<8x288xf32>
    %8 = arith.addf %4, %7 : vector<8x288xf32>
    %cst_8 = arith.constant 0.000000e+00 : f32
    %9 = vector.broadcast %cst_8 : f32 to vector<8x288xf32>
    %10 = arith.cmpf oge, %8, %9 : vector<8x288xf32>
    %cst_9 = arith.constant 1.000000e-01 : f32
    %11 = vector.broadcast %cst_9 : f32 to vector<8x288xf32>
    %12 = arith.mulf %11, %8 : vector<8x288xf32>
    %13 = arith.select %10, %8, %12 : vector<8x288xi1>, vector<8x288xf32>
    %c0_10 = arith.constant 0 : index
    %c0_11 = arith.constant 0 : index
    %c0_12 = arith.constant 0 : index
    %14 = vector.load %arg5[%c0_10, %c0_11, %c0_12] : memref<1x8x288xf32, #tpu.memory_space<vmem>>, vector<1x8x288xf32>
    %15 = vector.shape_cast %14 : vector<1x8x288xf32> to vector<8x288xf32>
    %16 = vector.shape_cast %13 : vector<8x288xf32> to vector<1x8x288xf32>
    tpu.vector_store %arg5[%c0_10, %c0_11, %c0_12], %16 {strides = array<i32>} : memref<1x8x288xf32, #tpu.memory_space<vmem>>, vector<1x8x288xf32>,
    return
  }
  func.func @transform_0(%arg0: i32, %arg1: i32) -> (i32, i32, i32) {
    %c0_i32 = arith.constant 0 : i32
    %c0_i32_0 = arith.constant 0 : i32
    return %arg0, %c0_i32, %arg1 : i32, i32, i32
  }
  func.func @transform_1(%arg0: i32, %arg1: i32) -> (i32, i32, i32) {
    %c0_i32 = arith.constant 0 : i32
    %c0_i32_0 = arith.constant 0 : i32
    %c0_i32_1 = arith.constant 0 : i32
    return %arg0, %c0_i32, %c0_i32_0 : i32, i32, i32
  }
  func.func @transform_2(%arg0: i32, %arg1: i32) -> (i32, i32, i32) {
    %c0_i32 = arith.constant 0 : i32
    %c0_i32_0 = arith.constant 0 : i32
    %c0_i32_1 = arith.constant 0 : i32
    return %arg0, %c0_i32, %c0_i32_0 : i32, i32, i32
  }
  func.func @transform_3(%arg0: i32, %arg1: i32) -> (i32, i32, i32) {
    %c0_i32 = arith.constant 0 : i32
    %c0_i32_0 = arith.constant 0 : i32
    return %arg0, %c0_i32, %arg1 : i32, i32, i32
  }
}

module attributes {stable_mosaic.version = 11 : i64} {
  func.func @_gemm_bias_act_kernel(%arg0: i32, %arg1: i32, %arg2: memref<1x216x144xbf16, #tpu.memory_space<vmem>>, %arg3: memref<1x8x216xbf16, #tpu.memory_space<vmem>>, %arg4: memref<1x8x1xf32, #tpu.memory_space<vmem>>, %arg5: memref<1x8x144xf32, #tpu.memory_space<vmem>>) attributes {dimension_semantics = [#tpu.dimension_semantics<parallel>, #tpu.dimension_semantics<parallel>], iteration_bounds = array<i64: 1, 1>, scalar_prefetch = 0 : i64, scratch_operands = 0 : i64, tpu.core_type = #tpu.core_type<tc>, window_params = [{transform_indices = @transform_0, window_bounds = array<i64: 1, 216, 144>}, {transform_indices = @transform_1, window_bounds = array<i64: 1, 8, 216>}, {transform_indices = @transform_2, window_bounds = array<i64: 1, 8, 1>}, {transform_indices = @transform_3, window_bounds = array<i64: 1, 8, 144>}]} {
    %c0 = arith.constant 0 : index
    %c0_0 = arith.constant 0 : index
    %c0_1 = arith.constant 0 : index
    %0 = vector.load %arg3[%c0, %c0_0, %c0_1] : memref<1x8x216xbf16, #tpu.memory_space<vmem>>, vector<1x8x216xbf16>
    %1 = vector.shape_cast %0 : vector<1x8x216xbf16> to vector<8x216xbf16>
    %c0_2 = arith.constant 0 : index
    %c0_3 = arith.constant 0 : index
    %c0_4 = arith.constant 0 : index
    %2 = vector.load %arg2[%c0_2, %c0_3, %c0_4] : memref<1x216x144xbf16, #tpu.memory_space<vmem>>, vector<1x216x144xbf16>
    %3 = vector.shape_cast %2 : vector<1x216x144xbf16> to vector<216x144xbf16>
    %cst = arith.constant dense<0.000000e+00> : vector<8x144xf32>
    %4 = tpu.matmul %1, %3, %cst {dimension_numbers = #tpu.dot_dimension_numbers<[1], [0], [0], [1], [0, 0, 1, 1], [], []>} : vector<8x216xbf16>, vector<216x144xbf16>, vector<8x144xf32> -> vector<8x144xf32>
    %c0_5 = arith.constant 0 : index
    %c0_6 = arith.constant 0 : index
    %c0_7 = arith.constant 0 : index
    %5 = vector.load %arg4[%c0_5, %c0_6, %c0_7] : memref<1x8x1xf32, #tpu.memory_space<vmem>>, vector<1x8x1xf32>
    %6 = vector.shape_cast %5 : vector<1x8x1xf32> to vector<8x1xf32>
    %7 = vector.broadcast %6 : vector<8x1xf32> to vector<8x144xf32>
    %8 = arith.addf %4, %7 : vector<8x144xf32>
    %cst_8 = arith.constant 0.000000e+00 : f32
    %9 = vector.broadcast %cst_8 : f32 to vector<8x144xf32>
    %10 = arith.cmpf oge, %8, %9 : vector<8x144xf32>
    %cst_9 = arith.constant 1.000000e-01 : f32
    %11 = vector.broadcast %cst_9 : f32 to vector<8x144xf32>
    %12 = arith.mulf %11, %8 : vector<8x144xf32>
    %13 = arith.select %10, %8, %12 : vector<8x144xi1>, vector<8x144xf32>
    %c0_10 = arith.constant 0 : index
    %c0_11 = arith.constant 0 : index
    %c0_12 = arith.constant 0 : index
    %14 = vector.load %arg5[%c0_10, %c0_11, %c0_12] : memref<1x8x144xf32, #tpu.memory_space<vmem>>, vector<1x8x144xf32>
    %15 = vector.shape_cast %14 : vector<1x8x144xf32> to vector<8x144xf32>
    %16 = vector.shape_cast %13 : vector<8x144xf32> to vector<1x8x144xf32>
    tpu.vector_store %arg5[%c0_10, %c0_11, %c0_12], %16 {strides = array<i32>} : memref<1x8x144xf32, #tpu.memory_space<vmem>>, vector<1x8x144xf32>,
    return
  }
  func.func @transform_0(%arg0: i32, %arg1: i32) -> (i32, i32, i32) {
    %c0_i32 = arith.constant 0 : i32
    %c0_i32_0 = arith.constant 0 : i32
    return %arg0, %c0_i32, %arg1 : i32, i32, i32
  }
  func.func @transform_1(%arg0: i32, %arg1: i32) -> (i32, i32, i32) {
    %c0_i32 = arith.constant 0 : i32
    %c0_i32_0 = arith.constant 0 : i32
    %c0_i32_1 = arith.constant 0 : i32
    return %arg0, %c0_i32, %c0_i32_0 : i32, i32, i32
  }
  func.func @transform_2(%arg0: i32, %arg1: i32) -> (i32, i32, i32) {
    %c0_i32 = arith.constant 0 : i32
    %c0_i32_0 = arith.constant 0 : i32
    %c0_i32_1 = arith.constant 0 : i32
    return %arg0, %c0_i32, %c0_i32_0 : i32, i32, i32
  }
  func.func @transform_3(%arg0: i32, %arg1: i32) -> (i32, i32, i32) {
    %c0_i32 = arith.constant 0 : i32
    %c0_i32_0 = arith.constant 0 : i32
    return %arg0, %c0_i32, %arg1 : i32, i32, i32
  }
}

module attributes {stable_mosaic.version = 11 : i64} {
  func.func @_gemm_bias_act_kernel(%arg0: i32, %arg1: i32, %arg2: memref<1x216x72xbf16, #tpu.memory_space<vmem>>, %arg3: memref<1x8x216xbf16, #tpu.memory_space<vmem>>, %arg4: memref<1x8x1xf32, #tpu.memory_space<vmem>>, %arg5: memref<1x8x72xf32, #tpu.memory_space<vmem>>) attributes {dimension_semantics = [#tpu.dimension_semantics<parallel>, #tpu.dimension_semantics<parallel>], iteration_bounds = array<i64: 1, 1>, scalar_prefetch = 0 : i64, scratch_operands = 0 : i64, tpu.core_type = #tpu.core_type<tc>, window_params = [{transform_indices = @transform_0, window_bounds = array<i64: 1, 216, 72>}, {transform_indices = @transform_1, window_bounds = array<i64: 1, 8, 216>}, {transform_indices = @transform_2, window_bounds = array<i64: 1, 8, 1>}, {transform_indices = @transform_3, window_bounds = array<i64: 1, 8, 72>}]} {
    %c0 = arith.constant 0 : index
    %c0_0 = arith.constant 0 : index
    %c0_1 = arith.constant 0 : index
    %0 = vector.load %arg3[%c0, %c0_0, %c0_1] : memref<1x8x216xbf16, #tpu.memory_space<vmem>>, vector<1x8x216xbf16>
    %1 = vector.shape_cast %0 : vector<1x8x216xbf16> to vector<8x216xbf16>
    %c0_2 = arith.constant 0 : index
    %c0_3 = arith.constant 0 : index
    %c0_4 = arith.constant 0 : index
    %2 = vector.load %arg2[%c0_2, %c0_3, %c0_4] : memref<1x216x72xbf16, #tpu.memory_space<vmem>>, vector<1x216x72xbf16>
    %3 = vector.shape_cast %2 : vector<1x216x72xbf16> to vector<216x72xbf16>
    %cst = arith.constant dense<0.000000e+00> : vector<8x72xf32>
    %4 = tpu.matmul %1, %3, %cst {dimension_numbers = #tpu.dot_dimension_numbers<[1], [0], [0], [1], [0, 0, 1, 1], [], []>} : vector<8x216xbf16>, vector<216x72xbf16>, vector<8x72xf32> -> vector<8x72xf32>
    %c0_5 = arith.constant 0 : index
    %c0_6 = arith.constant 0 : index
    %c0_7 = arith.constant 0 : index
    %5 = vector.load %arg4[%c0_5, %c0_6, %c0_7] : memref<1x8x1xf32, #tpu.memory_space<vmem>>, vector<1x8x1xf32>
    %6 = vector.shape_cast %5 : vector<1x8x1xf32> to vector<8x1xf32>
    %7 = vector.broadcast %6 : vector<8x1xf32> to vector<8x72xf32>
    %8 = arith.addf %4, %7 : vector<8x72xf32>
    %cst_8 = arith.constant 0.000000e+00 : f32
    %9 = vector.broadcast %cst_8 : f32 to vector<8x72xf32>
    %10 = arith.cmpf oge, %8, %9 : vector<8x72xf32>
    %cst_9 = arith.constant 1.000000e-01 : f32
    %11 = vector.broadcast %cst_9 : f32 to vector<8x72xf32>
    %12 = arith.mulf %11, %8 : vector<8x72xf32>
    %13 = arith.select %10, %8, %12 : vector<8x72xi1>, vector<8x72xf32>
    %c0_10 = arith.constant 0 : index
    %c0_11 = arith.constant 0 : index
    %c0_12 = arith.constant 0 : index
    %14 = vector.load %arg5[%c0_10, %c0_11, %c0_12] : memref<1x8x72xf32, #tpu.memory_space<vmem>>, vector<1x8x72xf32>
    %15 = vector.shape_cast %14 : vector<1x8x72xf32> to vector<8x72xf32>
    %16 = vector.shape_cast %13 : vector<8x72xf32> to vector<1x8x72xf32>
    tpu.vector_store %arg5[%c0_10, %c0_11, %c0_12], %16 {strides = array<i32>} : memref<1x8x72xf32, #tpu.memory_space<vmem>>, vector<1x8x72xf32>,
    return
  }
  func.func @transform_0(%arg0: i32, %arg1: i32) -> (i32, i32, i32) {
    %c0_i32 = arith.constant 0 : i32
    %c0_i32_0 = arith.constant 0 : i32
    return %arg0, %c0_i32, %arg1 : i32, i32, i32
  }
  func.func @transform_1(%arg0: i32, %arg1: i32) -> (i32, i32, i32) {
    %c0_i32 = arith.constant 0 : i32
    %c0_i32_0 = arith.constant 0 : i32
    %c0_i32_1 = arith.constant 0 : i32
    return %arg0, %c0_i32, %c0_i32_0 : i32, i32, i32
  }
  func.func @transform_2(%arg0: i32, %arg1: i32) -> (i32, i32, i32) {
    %c0_i32 = arith.constant 0 : i32
    %c0_i32_0 = arith.constant 0 : i32
    %c0_i32_1 = arith.constant 0 : i32
    return %arg0, %c0_i32, %c0_i32_0 : i32, i32, i32
  }
  func.func @transform_3(%arg0: i32, %arg1: i32) -> (i32, i32, i32) {
    %c0_i32 = arith.constant 0 : i32
    %c0_i32_0 = arith.constant 0 : i32
    return %arg0, %c0_i32, %arg1 : i32, i32, i32
  }
}

module attributes {stable_mosaic.version = 11 : i64} {
  func.func @_gemm_bias_act_kernel(%arg0: i32, %arg1: i32, %arg2: memref<1x72x72xbf16, #tpu.memory_space<vmem>>, %arg3: memref<1x8x72xbf16, #tpu.memory_space<vmem>>, %arg4: memref<1x8x1xf32, #tpu.memory_space<vmem>>, %arg5: memref<1x8x72xf32, #tpu.memory_space<vmem>>) attributes {dimension_semantics = [#tpu.dimension_semantics<parallel>, #tpu.dimension_semantics<parallel>], iteration_bounds = array<i64: 1, 1>, scalar_prefetch = 0 : i64, scratch_operands = 0 : i64, tpu.core_type = #tpu.core_type<tc>, window_params = [{transform_indices = @transform_0, window_bounds = array<i64: 1, 72, 72>}, {transform_indices = @transform_1, window_bounds = array<i64: 1, 8, 72>}, {transform_indices = @transform_2, window_bounds = array<i64: 1, 8, 1>}, {transform_indices = @transform_3, window_bounds = array<i64: 1, 8, 72>}]} {
    %c0 = arith.constant 0 : index
    %c0_0 = arith.constant 0 : index
    %c0_1 = arith.constant 0 : index
    %0 = vector.load %arg3[%c0, %c0_0, %c0_1] : memref<1x8x72xbf16, #tpu.memory_space<vmem>>, vector<1x8x72xbf16>
    %1 = vector.shape_cast %0 : vector<1x8x72xbf16> to vector<8x72xbf16>
    %c0_2 = arith.constant 0 : index
    %c0_3 = arith.constant 0 : index
    %c0_4 = arith.constant 0 : index
    %2 = vector.load %arg2[%c0_2, %c0_3, %c0_4] : memref<1x72x72xbf16, #tpu.memory_space<vmem>>, vector<1x72x72xbf16>
    %3 = vector.shape_cast %2 : vector<1x72x72xbf16> to vector<72x72xbf16>
    %cst = arith.constant dense<0.000000e+00> : vector<8x72xf32>
    %4 = tpu.matmul %1, %3, %cst {dimension_numbers = #tpu.dot_dimension_numbers<[1], [0], [0], [1], [0, 0, 1, 1], [], []>} : vector<8x72xbf16>, vector<72x72xbf16>, vector<8x72xf32> -> vector<8x72xf32>
    %c0_5 = arith.constant 0 : index
    %c0_6 = arith.constant 0 : index
    %c0_7 = arith.constant 0 : index
    %5 = vector.load %arg4[%c0_5, %c0_6, %c0_7] : memref<1x8x1xf32, #tpu.memory_space<vmem>>, vector<1x8x1xf32>
    %6 = vector.shape_cast %5 : vector<1x8x1xf32> to vector<8x1xf32>
    %7 = vector.broadcast %6 : vector<8x1xf32> to vector<8x72xf32>
    %8 = arith.addf %4, %7 : vector<8x72xf32>
    %cst_8 = arith.constant 0.000000e+00 : f32
    %9 = vector.broadcast %cst_8 : f32 to vector<8x72xf32>
    %10 = arith.cmpf oge, %8, %9 : vector<8x72xf32>
    %cst_9 = arith.constant 1.000000e-01 : f32
    %11 = vector.broadcast %cst_9 : f32 to vector<8x72xf32>
    %12 = arith.mulf %11, %8 : vector<8x72xf32>
    %13 = arith.select %10, %8, %12 : vector<8x72xi1>, vector<8x72xf32>
    %c0_10 = arith.constant 0 : index
    %c0_11 = arith.constant 0 : index
    %c0_12 = arith.constant 0 : index
    %14 = vector.load %arg5[%c0_10, %c0_11, %c0_12] : memref<1x8x72xf32, #tpu.memory_space<vmem>>, vector<1x8x72xf32>
    %15 = vector.shape_cast %14 : vector<1x8x72xf32> to vector<8x72xf32>
    %16 = vector.shape_cast %13 : vector<8x72xf32> to vector<1x8x72xf32>
    tpu.vector_store %arg5[%c0_10, %c0_11, %c0_12], %16 {strides = array<i32>} : memref<1x8x72xf32, #tpu.memory_space<vmem>>, vector<1x8x72xf32>,
    return
  }
  func.func @transform_0(%arg0: i32, %arg1: i32) -> (i32, i32, i32) {
    %c0_i32 = arith.constant 0 : i32
    %c0_i32_0 = arith.constant 0 : i32
    return %arg0, %c0_i32, %arg1 : i32, i32, i32
  }
  func.func @transform_1(%arg0: i32, %arg1: i32) -> (i32, i32, i32) {
    %c0_i32 = arith.constant 0 : i32
    %c0_i32_0 = arith.constant 0 : i32
    %c0_i32_1 = arith.constant 0 : i32
    return %arg0, %c0_i32, %c0_i32_0 : i32, i32, i32
  }
  func.func @transform_2(%arg0: i32, %arg1: i32) -> (i32, i32, i32) {
    %c0_i32 = arith.constant 0 : i32
    %c0_i32_0 = arith.constant 0 : i32
    %c0_i32_1 = arith.constant 0 : i32
    return %arg0, %c0_i32, %c0_i32_0 : i32, i32, i32
  }
  func.func @transform_3(%arg0: i32, %arg1: i32) -> (i32, i32, i32) {
    %c0_i32 = arith.constant 0 : i32
    %c0_i32_0 = arith.constant 0 : i32
    return %arg0, %c0_i32, %arg1 : i32, i32, i32
  }
}

module attributes {stable_mosaic.version = 11 : i64} {
  func.func @_gemm_bias_act_kernel(%arg0: i32, %arg1: i32, %arg2: memref<1x72x72xbf16, #tpu.memory_space<vmem>>, %arg3: memref<1x1x72xbf16, #tpu.memory_space<vmem>>, %arg4: memref<1x1x1xf32, #tpu.memory_space<vmem>>, %arg5: memref<1x1x72xf32, #tpu.memory_space<vmem>>) attributes {dimension_semantics = [#tpu.dimension_semantics<parallel>, #tpu.dimension_semantics<parallel>], iteration_bounds = array<i64: 1, 1>, scalar_prefetch = 0 : i64, scratch_operands = 0 : i64, tpu.core_type = #tpu.core_type<tc>, window_params = [{transform_indices = @transform_0, window_bounds = array<i64: 1, 72, 72>}, {transform_indices = @transform_1, window_bounds = array<i64: 1, 1, 72>}, {transform_indices = @transform_2, window_bounds = array<i64: 1, 1, 1>}, {transform_indices = @transform_3, window_bounds = array<i64: 1, 1, 72>}]} {
    %c0 = arith.constant 0 : index
    %c0_0 = arith.constant 0 : index
    %c0_1 = arith.constant 0 : index
    %0 = vector.load %arg3[%c0, %c0_0, %c0_1] : memref<1x1x72xbf16, #tpu.memory_space<vmem>>, vector<1x1x72xbf16>
    %1 = vector.shape_cast %0 : vector<1x1x72xbf16> to vector<1x72xbf16>
    %c0_2 = arith.constant 0 : index
    %c0_3 = arith.constant 0 : index
    %c0_4 = arith.constant 0 : index
    %2 = vector.load %arg2[%c0_2, %c0_3, %c0_4] : memref<1x72x72xbf16, #tpu.memory_space<vmem>>, vector<1x72x72xbf16>
    %3 = vector.shape_cast %2 : vector<1x72x72xbf16> to vector<72x72xbf16>
    %cst = arith.constant dense<0.000000e+00> : vector<1x72xf32>
    %4 = tpu.matmul %1, %3, %cst {dimension_numbers = #tpu.dot_dimension_numbers<[1], [0], [0], [1], [0, 0, 1, 1], [], []>} : vector<1x72xbf16>, vector<72x72xbf16>, vector<1x72xf32> -> vector<1x72xf32>
    %c0_5 = arith.constant 0 : index
    %c0_6 = arith.constant 0 : index
    %c0_7 = arith.constant 0 : index
    %5 = vector.load %arg4[%c0_5, %c0_6, %c0_7] : memref<1x1x1xf32, #tpu.memory_space<vmem>>, vector<1x1x1xf32>
    %6 = vector.shape_cast %5 : vector<1x1x1xf32> to vector<1x1xf32>
    %7 = vector.broadcast %6 : vector<1x1xf32> to vector<1x72xf32>
    %8 = arith.addf %4, %7 : vector<1x72xf32>
    %c0_8 = arith.constant 0 : index
    %c0_9 = arith.constant 0 : index
    %c0_10 = arith.constant 0 : index
    %9 = vector.load %arg5[%c0_8, %c0_9, %c0_10] : memref<1x1x72xf32, #tpu.memory_space<vmem>>, vector<1x1x72xf32>
    %10 = vector.shape_cast %9 : vector<1x1x72xf32> to vector<1x72xf32>
    %11 = vector.shape_cast %8 : vector<1x72xf32> to vector<1x1x72xf32>
    tpu.vector_store %arg5[%c0_8, %c0_9, %c0_10], %11 {strides = array<i32>} : memref<1x1x72xf32, #tpu.memory_space<vmem>>, vector<1x1x72xf32>,
    return
  }
  func.func @transform_0(%arg0: i32, %arg1: i32) -> (i32, i32, i32) {
    %c0_i32 = arith.constant 0 : i32
    %c0_i32_0 = arith.constant 0 : i32
    return %arg0, %c0_i32, %arg1 : i32, i32, i32
  }
  func.func @transform_1(%arg0: i32, %arg1: i32) -> (i32, i32, i32) {
    %c0_i32 = arith.constant 0 : i32
    %c0_i32_0 = arith.constant 0 : i32
    %c0_i32_1 = arith.constant 0 : i32
    return %arg0, %c0_i32, %c0_i32_0 : i32, i32, i32
  }
  func.func @transform_2(%arg0: i32, %arg1: i32) -> (i32, i32, i32) {
    %c0_i32 = arith.constant 0 : i32
    %c0_i32_0 = arith.constant 0 : i32
    %c0_i32_1 = arith.constant 0 : i32
    return %arg0, %c0_i32, %c0_i32_0 : i32, i32, i32
  }
  func.func @transform_3(%arg0: i32, %arg1: i32) -> (i32, i32, i32) {
    %c0_i32 = arith.constant 0 : i32
    %c0_i32_0 = arith.constant 0 : i32
    return %arg0, %c0_i32, %arg1 : i32, i32, i32
  }
}

</mosaic_0001>

<llo_original>
// kernel: _lambda_.21
$region0: #{_lambda_.21}
  #allocation0 [shape = 'u32[]', space=smem, size = 0x4, offset = 0x4, fixed_abs, tag = 'smem constant byte address 0x4 - core index']
  #allocation1 [shape = 'u32[144,128]{1,0:T(1,128)}', space=vmem, size = 0x12000, scoped, tag = 'internal scratch']
  %s0 = inlined_call_operand.vmem [shape: bf16[1,64,34], index: 0, kind: input, shape index: {}]
  %s1 = inlined_call_operand.vmem [shape: bf16[1,16,64], index: 1, kind: input, shape index: {}]
  %s2 = inlined_call_operand.vmem [shape: f32[1,16,1], index: 2, kind: input, shape index: {}]
  %s3 = inlined_call_operand.vmem [shape: f32[1,16,34], index: 3, kind: output, shape index: {}]
  %s4 = sld [smem:[#allocation0]]
  $region22: #{_lambda_.21} parent=0
    _
  %s6 = ssub.s32 1, %s4
  %s7 = scalar_select 0, %s6, %s4
  // Predicated region
  $region2: #{_lambda_.21} parent=0 // pred_check
    _
  $region3: #{_lambda_.21} parent=0 // pred_check_branch
    %9 = sbr.rel (0) target = $region5
  $region4: #{_lambda_.21} parent=0 // pred_region
    _
  $region5: #{_lambda_.21} parent=0 // pred_fallthru
    _
  // Predicated region
  $region6: #{_lambda_.21} parent=0 // pred_check
    _
  $region7: #{_lambda_.21} parent=0 // pred_check_branch
    %11 = sbr.rel (0) target = $region9
  $region8: #{_lambda_.21} parent=0 // pred_region
    _
  $region9: #{_lambda_.21} parent=0 // pred_fallthru
    _
  // Predicated region
  $region10: #{_lambda_.21} parent=0 // pred_check
    _
  $region11: #{_lambda_.21} parent=0 // pred_check_branch
    %13 = sbr.rel (0) target = $region13
  $region12: #{_lambda_.21} parent=0 // pred_region
    _
  $region13: #{_lambda_.21} parent=0 // pred_fallthru
    _
  %v15 = vld [vmem:[%s1] sm:$0xf]
  %v16 = vld [vmem:[%s1 + $0x4] sm:$0xf]
  %v17 = vld [vmem:[%s0] sm:$0xf]
  %v18 = vld [vmem:[%s0 + $0x4] sm:$0xf]
  %v19 = vld [vmem:[%s0 + $0x8] sm:$0xf]
  %v20 = vld [vmem:[%s0 + $0xc] sm:$0xf]
  %v21 = vld [vmem:[%s0 + $0x10] sm:$0xf]
  %v22 = vld [vmem:[%s0 + $0x14] sm:$0xf]
  %v23 = vld [vmem:[%s0 + $0x18] sm:$0xf]
  %v24 = vld [vmem:[%s0 + $0x1c] sm:$0xf]
  %v25 = vld [vmem:[%s2] sm:$0xff]
  %v26 = vld [vmem:[%s2 + $0x8] sm:$0xff]
  %28 = vset.pattern.permute.xlu0 0
  %29 = vperm.xlu0 %28, %v25
  %v30 = vpop.permute.xlu0 %29
  %33 = vset.pattern.permute.xlu0 0
  %34 = vperm.xlu0 %33, %v26
  %v35 = vpop.permute.xlu0 %34
  %v39 = vunpack.c.l.b16 %v15
  %v40 = vunpack.c.l.b16 %v16
  %v41 = vpack.c.b16 %v40, %v39
  %v50 = vunpack.c.l.b16 %v17
  %v51 = vunpack.c.l.b16 %v18
  %v52 = vunpack.c.l.b16 %v19
  %v53 = vunpack.c.l.b16 %v20
  %v54 = vunpack.c.l.b16 %v21
  %v55 = vunpack.c.l.b16 %v22
  %v56 = vunpack.c.l.b16 %v23
  %v57 = vunpack.c.l.b16 %v24
  %v58 = vpack.c.b16 %v51, %v50
  %v59 = vpack.c.b16 %v53, %v52
  %v60 = vpack.c.b16 %v55, %v54
  %v61 = vpack.c.b16 %v57, %v56
  %vm66 = vcmask 523264
  %v68 = vsel %vm66, %v41, 0
  %70 = vmatprep.subr.bf16.mxu0 0
  %71 = vmatpush1.bf16.msra.mxu0 %v58
  %72 = vmatprep.subr.bf16.mxu0 0
  %73 = vmatpush1.bf16.msra.mxu0 %v59
  %74 = vmatprep.subr.bf16.mxu0 0
  %75 = vmatpush1.bf16.msra.mxu0 %v60
  %76 = vmatprep.subr.bf16.mxu0 0
  %77 = vmatpush1.bf16.msra.mxu0 %v61
  %78 = vmatprep.subr.bf16.mxu0 0
  %79 = vmatpush1.bf16.msra.mxu0 0
  %80 = vmatprep.subr.bf16.mxu0 0
  %81 = vmatpush1.bf16.msra.mxu0 0
  %82 = vmatprep.subr.bf16.mxu0 0
  %83 = vmatpush1.bf16.msra.mxu0 0
  %84 = vmatprep.subr.bf16.mxu0 0
  %85 = vmatpush1.bf16.msra.mxu0 0
  %86 = vmatprep.subr.bf16.mxu0 0
  %87 = vmatpush1.bf16.msra.mxu0 0
  %88 = vmatprep.subr.bf16.mxu0 0
  %89 = vmatpush1.bf16.msra.mxu0 0
  %90 = vmatprep.subr.bf16.mxu0 0
  %91 = vmatpush1.bf16.msra.mxu0 0
  %92 = vmatprep.subr.bf16.mxu0 0
  %93 = vmatpush1.bf16.msra.mxu0 0
  %94 = vmatprep.subr.bf16.mxu0 0
  %95 = vmatpush1.bf16.msra.mxu0 0
  %96 = vmatprep.subr.bf16.mxu0 0
  %97 = vmatpush1.bf16.msra.mxu0 0
  %98 = vmatprep.subr.bf16.mxu0 0
  %99 = vmatpush1.bf16.msra.mxu0 0
  %100 = vmatprep.subr.bf16.mxu0 0
  %101 = vmatpush1.bf16.msra.mxu0 0
  %102 = vmatprep.mubr.bf16.mxu0 0
  %103 = vmatmul.mubr.bf16.gmra.mrb[0].mxu0 %v68
  %v104 = vpop.f32.mrb[0].mxu0
  %v105 = vadd.f32 %v30, %v104
  %v106 = vpop.f32.mrb[0].mxu0
  %v107 = vpop.f32.mrb[0].mxu0
  %v108 = vadd.f32 %v35, %v107
  %v109 = vpop.f32.mrb[0].mxu0
  %110 = vdwg.mxu0
  %vm111 = vcmask 277504
  %112 = vst.msk [vmem:[%s3] sm:$0xff] %vm111, %v105
  %113 = vst.msk [vmem:[%s3 + $0x8] sm:$0xff] %vm111, %v108
  // Predicated region
  $region14: #{_lambda_.21} parent=0 // pred_check
    _
  $region15: #{_lambda_.21} parent=0 // pred_check_branch
    %115 = sbr.rel (0) target = $region17
  $region16: #{_lambda_.21} parent=0 // pred_region
    _
  $region17: #{_lambda_.21} parent=0 // pred_fallthru
    _
  // Predicated region
  $region18: #{_lambda_.21} parent=0 // pred_check
    _
  $region19: #{_lambda_.21} parent=0 // pred_check_branch
    %117 = sbr.rel (0) target = $region21
  $region20: #{_lambda_.21} parent=0 // pred_region
    _
  $region21: #{_lambda_.21} parent=0 // pred_fallthru
    _

// kernel: squeeze.1
$region0: #{squeeze.1}
  %s0 = inlined_call_operand.vmem [shape: bf16[1,2,136], index: 0, kind: input, shape index: {}]
  %s1 = inlined_call_operand.vmem [shape: bf16[2,2,17,4], index: 1, kind: output, shape index: {}]
  $region1: #{squeeze.1} parent=0
    #allocation0 [shape = 'u8[49152]{0}', space=vmem, size = 0xc000, scoped, tag = 'scoped mem for output reshape']
    #allocation1 [shape = 'u8[8192]{0}', space=vmem, size = 0x2000, scoped, tag = 'scoped mem for input reshape']
    %s3 = smul.u32 1, 2
    %s4 = sshllo.u32 0, %s3
    %s5 = scalar_lea.vmem %s0, 1
    %s6 = sshrl.u32 %s4, 1
    %s7 = sor.u32 %s4, %s6
    %s8 = sand.u32 %s7, 85
    %s9 = sshrl.u32 %s8, 1
    %s10 = sor.u32 %s8, %s9
    %s11 = sand.u32 51, %s10
    %s12 = sshrl.u32 %s11, 2
    %s13 = sor.u32 %s11, %s12
    %s14 = sand.u32 15, %s13
    %v15 = vld [vmem:[%s5] sm:%s14]
    %v16 = vunpack.c.l.bf16 %v15
    %v17 = vunpack.c.h.bf16 %v15
    %s18 = scalar_lea.vmem [#allocation1], 8
    %19 = vst [vmem:[%s18] sm:%s4] %v16
    %s20 = sshrl.u32 %s4, 1
    %s21 = sor.u32 %s4, %s20
    %s22 = sand.u32 %s21, 85
    %s23 = sshrl.u32 %s22, 1
    %s24 = sor.u32 %s22, %s23
    %s25 = sand.u32 51, %s24
    %s26 = sshrl.u32 %s25, 2
    %s27 = sor.u32 %s25, %s26
    %s28 = sand.u32 15, %s27
    %v29 = vld [vmem:[%s0] sm:%s28]
    %v30 = vunpack.c.l.bf16 %v29
    %v31 = vunpack.c.h.bf16 %v29
    %32 = vst [vmem:[#allocation1] sm:%s4] %v30
    %v33 = vld [vmem:[#allocation1] sm:$0x3]
    %vm34 = vcmask 31744
    %35 = vst.msk [vmem:[#allocation0] ss:$48 sm:$0x3] %vm34, %v33
    %s36 = scalar_lea.vmem [#allocation1], 8
    %v37 = vld [vmem:[%s36] sm:$0x3]
    %vm38 = vcmask 31744
    %s39 = scalar_lea.vmem [#allocation0], 39
    %40 = vst.msk [vmem:[%s39] ss:$48 sm:$0x3] %vm38, %v37
    %v41 = vld.sshfl [vmem:[#allocation1] sm:$0xff pattern:$0x99999180]
    %42 = vrot.lane.b32.xlu0 %v41, 124
    %v43 = vpop.permute.xlu0 %42
    %vm44 = vcmask 31744
    %s45 = scalar_lea.vmem [#allocation0], 1
    %46 = vst.msk [vmem:[%s45] ss:$39 sm:$0x3] %vm44, %v43
    %s47 = scalar_lea.vmem [#allocation0], 4294967267
    %48 = vst.msk [vmem:[%s47] ss:$39 sm:$0xc] %vm44, %v43
    %v49 = vld [vmem:[#allocation1] sm:$0x3]
    %50 = vrot.lane.b32.xlu0 %v49, 120
    %v51 = vpop.permute.xlu0 %50
    %vm52 = vcmask 31744
    %s53 = scalar_lea.vmem [#allocation0], 2
    %54 = vst.msk [vmem:[%s53] ss:$48 sm:$0x3] %vm52, %v51
    %v55 = vld [vmem:[#allocation1] sm:$0x3]
    %56 = vrot.lane.b32.xlu0 %v55, 116
    %v57 = vpop.permute.xlu0 %56
    %vm58 = vcmask 31744
    %s59 = scalar_lea.vmem [#allocation0], 3
    %60 = vst.msk [vmem:[%s59] ss:$48 sm:$0x3] %vm58, %v57
    %v61 = vld [vmem:[#allocation1] sm:$0x3]
    %62 = vrot.lane.b32.xlu0 %v61, 112
    %v63 = vpop.permute.xlu0 %62
    %vm64 = vcmask 31744
    %s65 = scalar_lea.vmem [#allocation0], 4
    %66 = vst.msk [vmem:[%s65] ss:$48 sm:$0x3] %vm64, %v63
    %v67 = vld [vmem:[#allocation1] sm:$0x3]
    %68 = vrot.lane.b32.xlu0 %v67, 108
    %v69 = vpop.permute.xlu0 %68
    %vm70 = vcmask 31744
    %s71 = scalar_lea.vmem [#allocation0], 5
    %72 = vst.msk [vmem:[%s71] ss:$48 sm:$0x3] %vm70, %v69
    %v73 = vld [vmem:[#allocation1] sm:$0x3]
    %74 = vrot.lane.b32.xlu0 %v73, 104
    %v75 = vpop.permute.xlu0 %74
    %vm76 = vcmask 31744
    %s77 = scalar_lea.vmem [#allocation0], 6
    %78 = vst.msk [vmem:[%s77] ss:$48 sm:$0x3] %vm76, %v75
    %v79 = vld [vmem:[#allocation1] sm:$0x3]
    %80 = vrot.lane.b32.xlu0 %v79, 100
    %v81 = vpop.permute.xlu0 %80
    %vm82 = vcmask 31744
    %s83 = scalar_lea.vmem [#allocation0], 7
    %84 = vst.msk [vmem:[%s83] ss:$48 sm:$0x3] %vm82, %v81
    %v85 = vld [vmem:[#allocation1] sm:$0x3]
    %86 = vrot.lane.b32.xlu0 %v85, 96
    %v87 = vpop.permute.xlu0 %86
    %vm88 = vcmask 31744
    %s89 = scalar_lea.vmem [#allocation0], 8
    %90 = vst.msk [vmem:[%s89] ss:$48 sm:$0x3] %vm88, %v87
    %v91 = vld [vmem:[#allocation1] sm:$0x3]
    %92 = vrot.lane.b32.xlu0 %v91, 92
    %v93 = vpop.permute.xlu0 %92
    %vm94 = vcmask 31744
    %s95 = scalar_lea.vmem [#allocation0], 9
    %96 = vst.msk [vmem:[%s95] ss:$48 sm:$0x3] %vm94, %v93
    %v97 = vld [vmem:[#allocation1] sm:$0x3]
    %98 = vrot.lane.b32.xlu0 %v97, 88
    %v99 = vpop.permute.xlu0 %98
    %vm100 = vcmask 31744
    %s101 = scalar_lea.vmem [#allocation0], 10
    %102 = vst.msk [vmem:[%s101] ss:$48 sm:$0x3] %vm100, %v99
    %v103 = vld [vmem:[#allocation1] sm:$0x3]
    %104 = vrot.lane.b32.xlu0 %v103, 84
    %v105 = vpop.permute.xlu0 %104
    %vm106 = vcmask 31744
    %s107 = scalar_lea.vmem [#allocation0], 11
    %108 = vst.msk [vmem:[%s107] ss:$48 sm:$0x3] %vm106, %v105
    %v109 = vld [vmem:[#allocation1] sm:$0x3]
    %110 = vrot.lane.b32.xlu0 %v109, 80
    %v111 = vpop.permute.xlu0 %110
    %vm112 = vcmask 31744
    %s113 = scalar_lea.vmem [#allocation0], 12
    %114 = vst.msk [vmem:[%s113] ss:$48 sm:$0x3] %vm112, %v111
    %v115 = vld [vmem:[#allocation1] sm:$0x3]
    %116 = vrot.lane.b32.xlu0 %v115, 76
    %v117 = vpop.permute.xlu0 %116
    %vm118 = vcmask 31744
    %s119 = scalar_lea.vmem [#allocation0], 13
    %120 = vst.msk [vmem:[%s119] ss:$48 sm:$0x3] %vm118, %v117
    %v121 = vld [vmem:[#allocation1] sm:$0x3]
    %122 = vrot.lane.b32.xlu0 %v121, 72
    %v123 = vpop.permute.xlu0 %122
    %vm124 = vcmask 31744
    %s125 = scalar_lea.vmem [#allocation0], 14
    %126 = vst.msk [vmem:[%s125] ss:$48 sm:$0x3] %vm124, %v123
    %v127 = vld [vmem:[#allocation1] sm:$0x3]
    %128 = vrot.lane.b32.xlu0 %v127, 68
    %v129 = vpop.permute.xlu0 %128
    %vm130 = vcmask 31744
    %s131 = scalar_lea.vmem [#allocation0], 15
    %132 = vst.msk [vmem:[%s131] ss:$48 sm:$0x3] %vm130, %v129
    %s133 = scalar_lea.vmem [#allocation1], 1
    %s134 = smov 3
    %v135 = vld [vmem:[%s133] ss:$-1 sm:%s134]
    %136 = vrot.lane.b32.xlu0 %v135, 64
    %v137 = vpop.permute.xlu0 %136
    %vm138 = vcmask 31744
    %s139 = scalar_lea.vmem [#allocation0], 64
    %140 = vst.msk [vmem:[%s139] ss:$-48 sm:$0x3] %vm138, %v137
    %s141 = scalar_lea.vmem [#allocation1], 1
    %s142 = smov 3
    %v143 = vld [vmem:[%s141] ss:$-1 sm:%s142]
    %144 = vrot.lane.b32.xlu0 %v143, 60
    %v145 = vpop.permute.xlu0 %144
    %vm146 = vcmask 31744
    %s147 = scalar_lea.vmem [#allocation0], 72
    %148 = vst.msk [vmem:[%s147] ss:$-48 sm:$0x3] %vm146, %v145
    %s149 = scalar_lea.vmem [#allocation1], 1
    %s150 = smov 3
    %v151 = vld [vmem:[%s149] ss:$-1 sm:%s150]
    %152 = vrot.lane.b32.xlu0 %v151, 56
    %v153 = vpop.permute.xlu0 %152
    %vm154 = vcmask 31744
    %s155 = scalar_lea.vmem [#allocation0], 73
    %156 = vst.msk [vmem:[%s155] ss:$-48 sm:$0x3] %vm154, %v153
    %s157 = scalar_lea.vmem [#allocation1], 1
    %s158 = smov 3
    %v159 = vld [vmem:[%s157] ss:$-1 sm:%s158]
    %160 = vrot.lane.b32.xlu0 %v159, 52
    %v161 = vpop.permute.xlu0 %160
    %vm162 = vcmask 31744
    %s163 = scalar_lea.vmem [#allocation0], 74
    %164 = vst.msk [vmem:[%s163] ss:$-48 sm:$0x3] %vm162, %v161
    %s165 = scalar_lea.vmem [#allocation1], 1
    %s166 = smov 3
    %v167 = vld [vmem:[%s165] ss:$-1 sm:%s166]
    %168 = vrot.lane.b32.xlu0 %v167, 48
    %v169 = vpop.permute.xlu0 %168
    %vm170 = vcmask 31744
    %s171 = scalar_lea.vmem [#allocation0], 75
    %172 = vst.msk [vmem:[%s171] ss:$-48 sm:$0x3] %vm170, %v169
    %s173 = scalar_lea.vmem [#allocation1], 1
    %s174 = smov 3
    %v175 = vld [vmem:[%s173] ss:$-1 sm:%s174]
    %176 = vrot.lane.b32.xlu0 %v175, 44
    %v177 = vpop.permute.xlu0 %176
    %vm178 = vcmask 31744
    %s179 = scalar_lea.vmem [#allocation0], 76
    %180 = vst.msk [vmem:[%s179] ss:$-48 sm:$0x3] %vm178, %v177
    %s181 = scalar_lea.vmem [#allocation1], 1
    %s182 = smov 3
    %v183 = vld [vmem:[%s181] ss:$-1 sm:%s182]
    %184 = vrot.lane.b32.xlu0 %v183, 40
    %v185 = vpop.permute.xlu0 %184
    %vm186 = vcmask 31744
    %s187 = scalar_lea.vmem [#allocation0], 77
    %188 = vst.msk [vmem:[%s187] ss:$-48 sm:$0x3] %vm186, %v185
    %s189 = scalar_lea.vmem [#allocation1], 1
    %s190 = smov 3
    %v191 = vld [vmem:[%s189] ss:$-1 sm:%s190]
    %192 = vrot.lane.b32.xlu0 %v191, 36
    %v193 = vpop.permute.xlu0 %192
    %vm194 = vcmask 31744
    %s195 = scalar_lea.vmem [#allocation0], 78
    %196 = vst.msk [vmem:[%s195] ss:$-48 sm:$0x3] %vm194, %v193
    %s197 = scalar_lea.vmem [#allocation1], 1
    %s198 = smov 3
    %v199 = vld [vmem:[%s197] ss:$-1 sm:%s198]
    %200 = vrot.lane.b32.xlu0 %v199, 32
    %v201 = vpop.permute.xlu0 %200
    %vm202 = vcmask 31744
    %s203 = scalar_lea.vmem [#allocation0], 79
    %204 = vst.msk [vmem:[%s203] ss:$-48 sm:$0x3] %vm202, %v201
    %v205 = vld [vmem:[#allocation1] sm:$0x3]
    %206 = vrot.lane.b32.xlu0 %v205, 28
    %v207 = vpop.permute.xlu0 %206
    %vm208 = vcmask 31744
    %s209 = scalar_lea.vmem [#allocation0], 32
    %210 = vst.msk [vmem:[%s209] ss:$48 sm:$0x3] %vm208, %v207
    %v211 = vld [vmem:[#allocation1] sm:$0x3]
    %212 = vrot.lane.b32.xlu0 %v211, 24
    %v213 = vpop.permute.xlu0 %212
    %vm214 = vcmask 31744
    %s215 = scalar_lea.vmem [#allocation0], 33
    %216 = vst.msk [vmem:[%s215] ss:$48 sm:$0x3] %vm214, %v213
    %v217 = vld [vmem:[#allocation1] sm:$0x3]
    %218 = vrot.lane.b32.xlu0 %v217, 20
    %v219 = vpop.permute.xlu0 %218
    %vm220 = vcmask 31744
    %s221 = scalar_lea.vmem [#allocation0], 34
    %222 = vst.msk [vmem:[%s221] ss:$48 sm:$0x3] %vm220, %v219
    %v223 = vld [vmem:[#allocation1] sm:$0x3]
    %224 = vrot.lane.b32.xlu0 %v223, 16
    %v225 = vpop.permute.xlu0 %224
    %vm226 = vcmask 31744
    %s227 = scalar_lea.vmem [#allocation0], 35
    %228 = vst.msk [vmem:[%s227] ss:$48 sm:$0x3] %vm226, %v225
    %v229 = vld [vmem:[#allocation1] sm:$0x3]
    %230 = vrot.lane.b32.xlu0 %v229, 12
    %v231 = vpop.permute.xlu0 %230
    %vm232 = vcmask 31744
    %s233 = scalar_lea.vmem [#allocation0], 36
    %234 = vst.msk [vmem:[%s233] ss:$48 sm:$0x3] %vm232, %v231
    %v235 = vld [vmem:[#allocation1] sm:$0x3]
    %236 = vrot.lane.b32.xlu0 %v235, 8
    %v237 = vpop.permute.xlu0 %236
    %vm238 = vcmask 31744
    %s239 = scalar_lea.vmem [#allocation0], 37
    %240 = vst.msk [vmem:[%s239] ss:$48 sm:$0x3] %vm238, %v237
    %v241 = vld [vmem:[#allocation1] sm:$0x3]
    %242 = vrot.lane.b32.xlu0 %v241, 4
    %v243 = vpop.permute.xlu0 %242
    %vm244 = vcmask 31744
    %s245 = scalar_lea.vmem [#allocation0], 38
    %246 = vst.msk [vmem:[%s245] ss:$48 sm:$0x3] %vm244, %v243
    %s248 = smul.u32 4, 2
    %s249 = sshllo.u32 0, %s248
    %s250 = sshrl.u32 %s248, 1
    %v251 = vld [vmem:[#allocation0] sm:%s249]
    %v252 = vpack.c.bf16 0.0, %v251
    %s253 = sshllo.u32 0, %s250
    %254 = vst [vmem:[%s1] sm:%s253] %v252
    %s255 = scalar_lea.vmem [#allocation0], 8
    %v256 = vld [vmem:[%s255] sm:%s249]
    %v257 = vpack.c.bf16 0.0, %v256
    %s258 = sshllo.u32 0, %s250
    %s259 = scalar_lea.vmem %s1, 4
    %260 = vst [vmem:[%s259] sm:%s258] %v257
    %s261 = scalar_lea.vmem [#allocation0], 16
    %v262 = vld [vmem:[%s261] sm:%s249]
    %v263 = vpack.c.bf16 0.0, %v262
    %s264 = sshllo.u32 0, %s250
    %s265 = smul.addr 4, 2
    %s266 = scalar_lea.vmem %s1, %s265
    %267 = vst [vmem:[%s266] sm:%s264] %v263
    %s268 = scalar_lea.vmem [#allocation0], 24
    %v269 = vld [vmem:[%s268] sm:%s249]
    %v270 = vpack.c.bf16 0.0, %v269
    %s271 = sshllo.u32 0, %s250
    %s272 = smul.addr 4, 3
    %s273 = scalar_lea.vmem %s1, %s272
    %274 = vst [vmem:[%s273] sm:%s271] %v270
    %s275 = scalar_lea.vmem [#allocation0], 32
    %v276 = vld [vmem:[%s275] sm:%s249]
    %v277 = vpack.c.bf16 0.0, %v276
    %s278 = sshllo.u32 0, %s250
    %s279 = smul.addr 4, 4
    %s280 = scalar_lea.vmem %s1, %s279
    %281 = vst [vmem:[%s280] sm:%s278] %v277
    %s282 = scalar_lea.vmem [#allocation0], 40
    %v283 = vld [vmem:[%s282] sm:%s249]
    %v284 = vpack.c.bf16 0.0, %v283
    %s285 = sshllo.u32 0, %s250
    %s286 = smul.addr 4, 5
    %s287 = scalar_lea.vmem %s1, %s286
    %288 = vst [vmem:[%s287] sm:%s285] %v284
    %s289 = scalar_lea.vmem [#allocation0], 48
    %v290 = vld [vmem:[%s289] sm:%s249]
    %v291 = vpack.c.bf16 0.0, %v290
    %s292 = sshllo.u32 0, %s250
    %s293 = smul.addr 4, 6
    %s294 = scalar_lea.vmem %s1, %s293
    %295 = vst [vmem:[%s294] sm:%s292] %v291
    %s296 = scalar_lea.vmem [#allocation0], 56
    %v297 = vld [vmem:[%s296] sm:%s249]
    %v298 = vpack.c.bf16 0.0, %v297
    %s299 = sshllo.u32 0, %s250
    %s300 = smul.addr 4, 7
    %s301 = scalar_lea.vmem %s1, %s300
    %302 = vst [vmem:[%s301] sm:%s299] %v298
    %s303 = scalar_lea.vmem [#allocation0], 64
    %v304 = vld [vmem:[%s303] sm:%s249]
    %v305 = vpack.c.bf16 0.0, %v304
    %s306 = sshllo.u32 0, %s250
    %s307 = smul.addr 4, 8
    %s308 = scalar_lea.vmem %s1, %s307
    %309 = vst [vmem:[%s308] sm:%s306] %v305
    %s310 = scalar_lea.vmem [#allocation0], 72
    %v311 = vld [vmem:[%s310] sm:%s249]
    %v312 = vpack.c.bf16 0.0, %v311
    %s313 = sshllo.u32 0, %s250
    %s314 = smul.addr 4, 9
    %s315 = scalar_lea.vmem %s1, %s314
    %316 = vst [vmem:[%s315] sm:%s313] %v312
    %s317 = scalar_lea.vmem [#allocation0], 80
    %v318 = vld [vmem:[%s317] sm:%s249]
    %v319 = vpack.c.bf16 0.0, %v318
    %s320 = sshllo.u32 0, %s250
    %s321 = smul.addr 4, 10
    %s322 = scalar_lea.vmem %s1, %s321
    %323 = vst [vmem:[%s322] sm:%s320] %v319
    %s324 = scalar_lea.vmem [#allocation0], 88
    %v325 = vld [vmem:[%s324] sm:%s249]
    %v326 = vpack.c.bf16 0.0, %v325
    %s327 = sshllo.u32 0, %s250
    %s328 = smul.addr 4, 11
    %s329 = scalar_lea.vmem %s1, %s328
    %330 = vst [vmem:[%s329] sm:%s327] %v326

// kernel: _lambda_.22
$region0: #{_lambda_.22}
  #allocation0 [shape = 'u32[]', space=smem, size = 0x4, offset = 0x4, fixed_abs, tag = 'smem constant byte address 0x4 - core index']
  #allocation1 [shape = 'u32[144,128]{1,0:T(1,128)}', space=vmem, size = 0x12000, scoped, tag = 'internal scratch']
  %s0 = inlined_call_operand.vmem [shape: bf16[2,54,136], index: 0, kind: input, shape index: {}]
  %s1 = inlined_call_operand.vmem [shape: bf16[2,2,54], index: 1, kind: input, shape index: {}]
  %s2 = inlined_call_operand.vmem [shape: f32[2,2,1], index: 2, kind: input, shape index: {}]
  %s3 = inlined_call_operand.vmem [shape: f32[2,2,136], index: 3, kind: output, shape index: {}]
  %s4 = sld [smem:[#allocation0]]
  $region45: #{_lambda_.22} parent=0
    _
  %s6 = ssub.s32 1, %s4
  %s7 = scalar_select 0, %s6, %s4
  loop: start=0, step=1, limit=4
  $region2: #{_lambda_.22} parent=0 // loop_pre_header
    _
  $region3: #{_lambda_.22} parent=0 // loop_header
    %s9 = sphi 0, %s13
    %p10 = scmp.ge.s32.totalorder %s9, 4
    %s16 = sphi 0, %s28
    %s17 = sphi 0, %s24
    %s18 = sphi 0, %s16
    %s19 = sphi 0, %s17
    %s20 = sphi 0, %s18
    %s21 = sphi 0, %s19
    %s33 = sphi 0, %s35
    %s36 = sphi 0, %s33
    %s37 = sphi 0, %s36
    %s53 = sphi 0, %s37
    %s59 = sphi 0, %s61
    %s62 = sphi 0, %s59
    %s63 = sphi 0, %s62
    %s79 = sphi 0, %s63
    %s85 = sphi 0, %s87
    %s88 = sphi 0, %s85
    %s89 = sphi 0, %s88
    %s105 = sphi 0, %s89
    %s113 = sphi 0, %s115
    %s116 = sphi 0, %s113
    %s117 = sphi 0, %s116
    %s133 = sphi 0, %s117
  $region4: #{_lambda_.22} parent=0 // loop_header_branch
    %12 = sbr.rel (%p10) target = $region8
  $region5: #{_lambda_.22} parent=0 // loop_body
    %s14 = ssub.s32 %s9, 1
    %s15 = ssub.s32 %s9, 2
    %s22 = sadd.s32 1, %s17
    %p23 = scmp.ge.s32.totalorder %s22, 1
    %s24 = scalar_select %p23, 0, %s22
    %s25 = sadd.s32 1, %s16
    %s26 = scalar_select %p23, %s25, %s16
    %p27 = scmp.ge.s32.totalorder %s26, 2
    %s28 = scalar_select %p27, 0, %s26
    %s29 = ssub.s32 %s16, %s28
    %s30 = ssub.s32 %s17, %s24
    %s31 = sor.u32 %s29, %s30
    %p32 = scmp.eq.s32.totalorder %s31, 0
    %s34 = sadd.s32 %s33, 1
    %s35 = scalar_select %p32, %s33, %s34
    %p38 = pneg %p32
    %p39 = scmp.eq.s32.totalorder %s9, 1
    %p40 = por %p38, %p39
    %p41 = scmp.ne.s32.totalorder %s33, %s36
    %p42 = scmp.eq.s32.totalorder %s9, 0
    %p43 = por %p41, %p42
    %p44 = scmp.ne.s32.totalorder %s33, %s36
    %p45 = scmp.eq.s32.totalorder %s14, 1
    %p46 = por %p44, %p45
    %p47 = scmp.ne.s32.totalorder %s36, %s37
    %p48 = scmp.eq.s32.totalorder %s14, 0
    %p49 = por %p47, %p48
    %p50 = scmp.ne.s32.totalorder %s36, %s37
    %p51 = scmp.eq.s32.totalorder %s15, 1
    %p52 = por %p50, %p51
    %p54 = scmp.ne.s32.totalorder %s37, %s53
    %p55 = scmp.eq.s32.totalorder %s15, 0
    %p56 = por %p54, %p55
    %s57 = ssub.s32 %s16, %s28
    %p58 = scmp.eq.s32.totalorder %s57, 0
    %s60 = sadd.s32 %s59, 1
    %s61 = scalar_select %p58, %s59, %s60
    %p64 = pneg %p58
    %p65 = scmp.eq.s32.totalorder %s9, 1
    %p66 = por %p64, %p65
    %p67 = scmp.ne.s32.totalorder %s59, %s62
    %p68 = scmp.eq.s32.totalorder %s9, 0
    %p69 = por %p67, %p68
    %p70 = scmp.ne.s32.totalorder %s59, %s62
    %p71 = scmp.eq.s32.totalorder %s14, 1
    %p72 = por %p70, %p71
    %p73 = scmp.ne.s32.totalorder %s62, %s63
    %p74 = scmp.eq.s32.totalorder %s14, 0
    %p75 = por %p73, %p74
    %p76 = scmp.ne.s32.totalorder %s62, %s63
    %p77 = scmp.eq.s32.totalorder %s15, 1
    %p78 = por %p76, %p77
    %p80 = scmp.ne.s32.totalorder %s63, %s79
    %p81 = scmp.eq.s32.totalorder %s15, 0
    %p82 = por %p80, %p81
    %s83 = ssub.s32 %s16, %s28
    %p84 = scmp.eq.s32.totalorder %s83, 0
    %s86 = sadd.s32 %s85, 1
    %s87 = scalar_select %p84, %s85, %s86
    %p90 = pneg %p84
    %p91 = scmp.eq.s32.totalorder %s9, 1
    %p92 = por %p90, %p91
    %p93 = scmp.ne.s32.totalorder %s85, %s88
    %p94 = scmp.eq.s32.totalorder %s9, 0
    %p95 = por %p93, %p94
    %p96 = scmp.ne.s32.totalorder %s85, %s88
    %p97 = scmp.eq.s32.totalorder %s14, 1
    %p98 = por %p96, %p97
    %p99 = scmp.ne.s32.totalorder %s88, %s89
    %p100 = scmp.eq.s32.totalorder %s14, 0
    %p101 = por %p99, %p100
    %p102 = scmp.ne.s32.totalorder %s88, %s89
    %p103 = scmp.eq.s32.totalorder %s15, 1
    %p104 = por %p102, %p103
    %p106 = scmp.ne.s32.totalorder %s89, %s105
    %p107 = scmp.eq.s32.totalorder %s15, 0
    %p108 = por %p106, %p107
    %s109 = ssub.s32 %s16, %s28
    %s110 = ssub.s32 %s17, %s24
    %s111 = sor.u32 %s109, %s110
    %p112 = scmp.eq.s32.totalorder %s111, 0
    %s114 = sadd.s32 %s113, 1
    %s115 = scalar_select %p112, %s113, %s114
    %p118 = pneg %p112
    %p119 = scmp.eq.s32.totalorder %s9, 1
    %p120 = por %p118, %p119
    %p121 = scmp.ne.s32.totalorder %s113, %s116
    %p122 = scmp.eq.s32.totalorder %s9, 0
    %p123 = por %p121, %p122
    %p124 = scmp.ne.s32.totalorder %s113, %s116
    %p125 = scmp.eq.s32.totalorder %s14, 1
    %p126 = por %p124, %p125
    %p127 = scmp.ne.s32.totalorder %s116, %s117
    %p128 = scmp.eq.s32.totalorder %s14, 0
    %p129 = por %p127, %p128
    %p130 = scmp.ne.s32.totalorder %s116, %s117
    %p131 = scmp.eq.s32.totalorder %s15, 1
    %p132 = por %p130, %p131
    %p134 = scmp.ne.s32.totalorder %s117, %s133
    %p135 = scmp.eq.s32.totalorder %s15, 0
    %p136 = por %p134, %p135
    %p137 = scmp.le.s32.totalorder 1, %s9
    %p138 = scmp.lt.s32.totalorder %s9, 3
    %p139 = pnand %p137, %p138
    %p140 = pneg %p139
    // Predicated region
    $region9: #{_lambda_.22} parent=5 // pred_check
      _
    $region10: #{_lambda_.22} parent=5 // pred_check_branch
      %142 = sbr.rel (%p139) target = $region12
    $region11: #{_lambda_.22} parent=5 // pred_region
      %s143 = ssub.s32 %s9, 1
    $region12: #{_lambda_.22} parent=5 // pred_fallthru
      _
    %p144 = scmp.lt.s32.totalorder %s9, 2
    // Predicated region
    $region13: #{_lambda_.22} parent=5 // pred_check
      %p145 = pneg %p144
    $region14: #{_lambda_.22} parent=5 // pred_check_branch
      %147 = sbr.rel (%p145) target = $region16
    $region15: #{_lambda_.22} parent=5 // pred_region
      // Predicated region
      $region17: #{_lambda_.22} parent=15 // pred_check
        %p148 = pneg %p43
      $region18: #{_lambda_.22} parent=15 // pred_check_branch
        %150 = sbr.rel (%p148) target = $region20
      $region19: #{_lambda_.22} parent=15 // pred_region
        %s151 = smul.u32 2, %s17
        %p152 = scmp.lt.s32.totalorder %s16, 1
        %s153 = scalar_select %p152, %s16, 1
        %p154 = scmp.lt.s32.totalorder %s151, 1
        %s155 = scalar_select %p154, %s151, 1
        %s156 = smul.addr %s153, 14
        %s157 = sadd.s32 %s155, %s156
        %s158 = smul.addr %s157, 4
        %s159 = scalar_lea.vmem %s0, %s158
        %s160 = smul.u32 2, %s17
      $region20: #{_lambda_.22} parent=15 // pred_fallthru
        _
      // Predicated region
      $region21: #{_lambda_.22} parent=15 // pred_check
        %p161 = pneg %p69
      $region22: #{_lambda_.22} parent=15 // pred_check_branch
        %163 = sbr.rel (%p161) target = $region24
      $region23: #{_lambda_.22} parent=15 // pred_region
        %p164 = scmp.lt.s32.totalorder %s16, 1
        %s165 = scalar_select %p164, %s16, 1
        %s166 = scalar_lea.vmem %s1, %s165
      $region24: #{_lambda_.22} parent=15 // pred_fallthru
        _
      // Predicated region
      $region25: #{_lambda_.22} parent=15 // pred_check
        %p167 = pneg %p95
      $region26: #{_lambda_.22} parent=15 // pred_check_branch
        %169 = sbr.rel (%p167) target = $region28
      $region27: #{_lambda_.22} parent=15 // pred_region
        %p170 = scmp.lt.s32.totalorder %s16, 1
        %s171 = scalar_select %p170, %s16, 1
        %s172 = smul.addr %s171, 2
        %s173 = scalar_lea.vmem %s2, %s172
      $region28: #{_lambda_.22} parent=15 // pred_fallthru
        _
    $region16: #{_lambda_.22} parent=5 // pred_fallthru
      _
    %p174 = scmp.le.s32.totalorder 1, %s9
    %p175 = scmp.lt.s32.totalorder %s9, 3
    %p176 = pnand %p174, %p175
    %p177 = pneg %p176
    // Predicated region
    $region29: #{_lambda_.22} parent=5 // pred_check
      _
    $region30: #{_lambda_.22} parent=5 // pred_check_branch
      %179 = sbr.rel (%p176) target = $region32
    $region31: #{_lambda_.22} parent=5 // pred_region
      %s180 = ssub.s32 %s9, 1
      %s181 = smul.u32 2, %s19
      %p182 = scmp.lt.s32.totalorder %s18, 1
      %s183 = scalar_select %p182, %s18, 1
      %p184 = scmp.lt.s32.totalorder %s181, 1
      %s185 = scalar_select %p184, %s181, 1
      %s186 = smul.addr %s183, 14
      %s187 = sadd.s32 %s185, %s186
      %s188 = smul.addr %s187, 4
      %s189 = scalar_lea.vmem %s0, %s188
      %p190 = pneg %p49
      %p191 = pneg %p46
      %p192 = scmp.lt.s32.totalorder %s18, 1
      %s193 = scalar_select %p192, %s18, 1
      %s194 = scalar_lea.vmem %s1, %s193
      %p195 = pneg %p75
      %p196 = pneg %p72
      %p197 = scmp.lt.s32.totalorder %s18, 1
      %s198 = scalar_select %p197, %s18, 1
      %s199 = smul.addr %s198, 2
      %s200 = scalar_lea.vmem %s2, %s199
      %p201 = pneg %p101
      %p202 = pneg %p98
      %p203 = pneg %p129
      %p204 = pneg %p126
      %s205 = smul.u32 2, %s19
      %p206 = scmp.lt.s32.totalorder %s18, 1
      %s207 = scalar_select %p206, %s18, 1
      %p208 = scmp.lt.s32.totalorder %s205, 1
      %s209 = scalar_select %p208, %s205, 1
      %s210 = smul.addr %s207, 2
      %s211 = sadd.s32 %s209, %s210
      %s212 = smul.addr %s211, 2
      %s213 = scalar_lea.vmem %s3, %s212
      %s214 = smul.u32 2, %s19
      %p215 = scmp.lt.s32.totalorder %s18, 1
      %s216 = scalar_select %p215, %s18, 1
      %p217 = scmp.lt.s32.totalorder %s214, 1
      %s218 = scalar_select %p217, %s214, 1
      %s219 = smul.addr %s216, 14
      %s220 = sadd.s32 %s218, %s219
      %s221 = smul.addr %s220, 4
      %s222 = scalar_lea.vmem %s0, %s221
      %s223 = smul.u32 2, %s19
      %p224 = scmp.lt.s32.totalorder %s18, 1
      %s225 = scalar_select %p224, %s18, 1
      %s226 = scalar_lea.vmem %s1, %s225
      %p227 = scmp.lt.s32.totalorder %s18, 1
      %s228 = scalar_select %p227, %s18, 1
      %s229 = smul.addr %s228, 2
      %s230 = scalar_lea.vmem %s2, %s229
      %s231 = smul.u32 2, %s19
      %p232 = scmp.lt.s32.totalorder %s18, 1
      %s233 = scalar_select %p232, %s18, 1
      %p234 = scmp.lt.s32.totalorder %s231, 1
      %s235 = scalar_select %p234, %s231, 1
      %s236 = smul.addr %s233, 2
      %s237 = sadd.s32 %s235, %s236
      %s238 = smul.addr %s237, 2
      %s239 = scalar_lea.vmem %s3, %s238
      %s240 = smul.u32 2, %s19
      %v242 = vld [vmem:[%s226] sm:$0x1]
      %v243 = vld [vmem:[%s222] sm:$0xff]
      %v244 = vld [vmem:[%s222 + $0x8] sm:$0xff]
      %v245 = vld [vmem:[%s222 + $0x10] sm:$0xff]
      %v246 = vld [vmem:[%s222 + $0x18] sm:$0xff]
      %v247 = vld [vmem:[%s222 + $0x20] sm:$0xff]
      %v248 = vld [vmem:[%s222 + $0x28] sm:$0xff]
      %v249 = vld [vmem:[%s222 + $0x30] sm:$0x77]
      %v250 = vld [vmem:[%s230] sm:$0x3]
      %252 = vset.pattern.permute.xlu0 0
      %253 = vperm.xlu0 %252, %v250
      %v254 = vpop.permute.xlu0 %253
      %v263 = vunpack.c.l.b16 %v243
      %v264 = vunpack.c.h.b16 %v243
      %v265 = vunpack.c.l.b16 %v244
      %v266 = vunpack.c.h.b16 %v244
      %v267 = vunpack.c.l.b16 %v245
      %v268 = vunpack.c.h.b16 %v245
      %v269 = vunpack.c.l.b16 %v246
      %v270 = vunpack.c.h.b16 %v246
      %v271 = vunpack.c.l.b16 %v247
      %v272 = vunpack.c.h.b16 %v247
      %v273 = vunpack.c.l.b16 %v248
      %v274 = vunpack.c.h.b16 %v248
      %v275 = vunpack.c.l.b16 %v249
      %v276 = vunpack.c.h.b16 %v249
      %v277 = vpack.c.b16 %v265, %v263
      %v278 = vpack.c.b16 %v266, %v264
      %v279 = vpack.c.b16 %v269, %v267
      %v280 = vpack.c.b16 %v270, %v268
      %v281 = vpack.c.b16 %v273, %v271
      %v282 = vpack.c.b16 %v274, %v272
      %v283 = vpack.c.b16 %v275, %v275
      %v284 = vpack.c.b16 %v276, %v276
      %vm291 = vcmask 441344
      %v293 = vsel %vm291, %v242, 0
      %vm295 = vcmask 1042432
      %v297 = vsel %vm295, %v283, 0
      %v300 = vsel %vm295, %v284, 0
      %302 = vmatprep.subr.bf16.mxu0 %v278
      %303 = vmatpush1.bf16.msra.mxu0 %v277
      %304 = vmatprep.subr.bf16.mxu0 %v280
      %305 = vmatpush1.bf16.msra.mxu0 %v279
      %306 = vmatprep.subr.bf16.mxu0 %v282
      %307 = vmatpush1.bf16.msra.mxu0 %v281
      %308 = vmatprep.subr.bf16.mxu0 %v300
      %309 = vmatpush1.bf16.msra.mxu0 %v297
      %310 = vmatprep.subr.bf16.mxu0 0
      %311 = vmatpush1.bf16.msra.mxu0 0
      %312 = vmatprep.subr.bf16.mxu0 0
      %313 = vmatpush1.bf16.msra.mxu0 0
      %314 = vmatprep.subr.bf16.mxu0 0
      %315 = vmatpush1.bf16.msra.mxu0 0
      %316 = vmatprep.subr.bf16.mxu0 0
      %317 = vmatpush1.bf16.msra.mxu0 0
      %318 = vmatprep.subr.bf16.mxu0 0
      %319 = vmatpush1.bf16.msra.mxu0 0
      %320 = vmatprep.subr.bf16.mxu0 0
      %321 = vmatpush1.bf16.msra.mxu0 0
      %322 = vmatprep.subr.bf16.mxu0 0
      %323 = vmatpush1.bf16.msra.mxu0 0
      %324 = vmatprep.subr.bf16.mxu0 0
      %325 = vmatpush1.bf16.msra.mxu0 0
      %326 = vmatprep.subr.bf16.mxu0 0
      %327 = vmatpush1.bf16.msra.mxu0 0
      %328 = vmatprep.subr.bf16.mxu0 0
      %329 = vmatpush1.bf16.msra.mxu0 0
      %330 = vmatprep.subr.bf16.mxu0 0
      %331 = vmatpush1.bf16.msra.mxu0 0
      %332 = vmatprep.subr.bf16.mxu0 0
      %333 = vmatpush1.bf16.msra.mxu0 0
      %334 = vmatprep.mubr.bf16.mxu0 0
      %335 = vmatmul.mubr.bf16.gmra.mrb[0].mxu0 %v293
      %v336 = vpop.f32.mrb[0].mxu0
      %v337 = vadd.f32 %v254, %v336
      %v338 = vpop.f32.mrb[0].mxu0
      %v339 = vadd.f32 %v254, %v338
      %v340 = vpop.f32.mrb[0].mxu0
      %v341 = vpop.f32.mrb[0].mxu0
      %342 = vdwg.mxu0
      %v345 = vcombine.low %v337, %v339
      %v347 = vunpack.c.l.s4 1983009808
      %v348 = vunpack.c.0.s8 %v347
      %v349 = vlaneseq
      %v350 = vshrl.u32 %v349, 7
      %v351 = vsub.s32 %v348, %v350
      %v352 = vrot.slane %v345, %v351
      %vm354 = vcmask 1041408
      %vm355 = vcmask 60418
      %vm356 = vmor %vm355, %vm354
      %357 = vst.msk [vmem:[%s239] sm:$0xf] %vm356, %v352
      %s358 = smul.u32 2, %s19
      %p359 = scmp.lt.s32.totalorder %s18, 1
      %s360 = scalar_select %p359, %s18, 1
      %p361 = scmp.lt.s32.totalorder %s358, 1
      %s362 = scalar_select %p361, %s358, 1
      %s363 = smul.addr %s360, 2
      %s364 = sadd.s32 %s362, %s363
      %s365 = smul.addr %s364, 2
      %s366 = scalar_lea.vmem %s3, %s365
      // Predicated region
      $region33: #{_lambda_.22} parent=31 // pred_check
        %p367 = pneg %p126
      $region34: #{_lambda_.22} parent=31 // pred_check_branch
        %369 = sbr.rel (%p367) target = $region36
      $region35: #{_lambda_.22} parent=31 // pred_region
        %s370 = smul.u32 2, %s19
      $region36: #{_lambda_.22} parent=31 // pred_fallthru
        _
    $region32: #{_lambda_.22} parent=5 // pred_fallthru
      _
    %p371 = scmp.le.s32.totalorder 2, %s9
    // Predicated region
    $region37: #{_lambda_.22} parent=5 // pred_check
      %p372 = pneg %p371
    $region38: #{_lambda_.22} parent=5 // pred_check_branch
      %374 = sbr.rel (%p372) target = $region40
    $region39: #{_lambda_.22} parent=5 // pred_region
      %s375 = ssub.s32 %s9, 2
      // Predicated region
      $region41: #{_lambda_.22} parent=39 // pred_check
        %p376 = pneg %p132
      $region42: #{_lambda_.22} parent=39 // pred_check_branch
        %378 = sbr.rel (%p376) target = $region44
      $region43: #{_lambda_.22} parent=39 // pred_region
        %s379 = smul.u32 2, %s21
        %p380 = scmp.lt.s32.totalorder %s20, 1
        %s381 = scalar_select %p380, %s20, 1
        %p382 = scmp.lt.s32.totalorder %s379, 1
        %s383 = scalar_select %p382, %s379, 1
        %s384 = smul.addr %s381, 2
        %s385 = sadd.s32 %s383, %s384
        %s386 = smul.addr %s385, 2
        %s387 = scalar_lea.vmem %s3, %s386
      $region44: #{_lambda_.22} parent=39 // pred_fallthru
        _
    $region40: #{_lambda_.22} parent=5 // pred_fallthru
      _
  $region6: #{_lambda_.22} parent=0 // loop_footer
    %s13 = sadd.s32 1, %s9
  $region7: #{_lambda_.22} parent=0 // loop_footer_branch
    %8 = sbr.rel target = $region3
  $region8: #{_lambda_.22} parent=0 // loop_exit
    _

// kernel: squeeze.35
$region0: #{squeeze.35}
  %s0 = inlined_call_operand.vmem [shape: f32[1,8,272], index: 0, kind: input, shape index: {}]
  %s1 = inlined_call_operand.vmem [shape: f32[8,2,17,8], index: 1, kind: output, shape index: {}]
  %v2 = vld [vmem:[%s0] sm:$0xff]
  %vm3 = vcmask 64512
  %4 = vst.msk [vmem:[%s1] ss:$48 sm:$0x3] %vm3, %v2
  %5 = vst.msk [vmem:[%s1] ss:$48 sm:$0xc] %vm3, %v2
  %6 = vst.msk [vmem:[%s1] ss:$48 sm:$0x30] %vm3, %v2
  %7 = vst.msk [vmem:[%s1] ss:$48 sm:$0xc0] %vm3, %v2
  %s8 = scalar_lea.vmem %s0, 8
  %v9 = vld [vmem:[%s8] sm:$0xff]
  %vm10 = vcmask 64512
  %s11 = scalar_lea.vmem %s1, 16
  %12 = vst.msk [vmem:[%s11] ss:$48 sm:$0x3] %vm10, %v9
  %s13 = scalar_lea.vmem %s1, 16
  %14 = vst.msk [vmem:[%s13] ss:$48 sm:$0xc] %vm10, %v9
  %s15 = scalar_lea.vmem %s1, 16
  %16 = vst.msk [vmem:[%s15] ss:$48 sm:$0x30] %vm10, %v9
  %s17 = scalar_lea.vmem %s1, 16
  %18 = vst.msk [vmem:[%s17] ss:$48 sm:$0xc0] %vm10, %v9
  %s19 = scalar_lea.vmem %s0, 16
  %v20 = vld [vmem:[%s19] sm:$0xff]
  %vm21 = vcmask 64512
  %s22 = scalar_lea.vmem %s1, 39
  %23 = vst.msk [vmem:[%s22] ss:$48 sm:$0x3] %vm21, %v20
  %s24 = scalar_lea.vmem %s1, 39
  %25 = vst.msk [vmem:[%s24] ss:$48 sm:$0xc] %vm21, %v20
  %s26 = scalar_lea.vmem %s1, 39
  %27 = vst.msk [vmem:[%s26] ss:$48 sm:$0x30] %vm21, %v20
  %s28 = scalar_lea.vmem %s1, 39
  %29 = vst.msk [vmem:[%s28] ss:$48 sm:$0xc0] %vm21, %v20
  %v30 = vld.sshfl [vmem:[%s0] sm:$0xff pattern:$0xa3b28190]
  %31 = vrot.lane.b32.xlu0 %v30, 120
  %v32 = vpop.permute.xlu0 %31
  %vm33 = vcmask 64512
  %s34 = scalar_lea.vmem %s1, 1
  %35 = vst.msk [vmem:[%s34] ss:$71 sm:$0x3] %vm33, %v32
  %s36 = scalar_lea.vmem %s1, 99
  %37 = vst.msk [vmem:[%s36] ss:$-25 sm:$0xc] %vm33, %v32
  %s38 = scalar_lea.vmem %s1, 4294967109
  %39 = vst.msk [vmem:[%s38] ss:$71 sm:$0x30] %vm33, %v32
  %s40 = scalar_lea.vmem %s1, 295
  %41 = vst.msk [vmem:[%s40] ss:$-25 sm:$0xc0] %vm33, %v32
  %s42 = scalar_lea.vmem %s0, 4
  %v43 = vld.sshfl [vmem:[%s42] sm:$0xff pattern:$0xa3b28190]
  %44 = vrot.lane.b32.xlu0 %v43, 120
  %v45 = vpop.permute.xlu0 %44
  %vm46 = vcmask 64512
  %s47 = scalar_lea.vmem %s1, 193
  %48 = vst.msk [vmem:[%s47] ss:$71 sm:$0x3] %vm46, %v45
  %s49 = scalar_lea.vmem %s1, 291
  %50 = vst.msk [vmem:[%s49] ss:$-25 sm:$0xc] %vm46, %v45
  %s51 = scalar_lea.vmem %s1, 5
  %52 = vst.msk [vmem:[%s51] ss:$71 sm:$0x30] %vm46, %v45
  %s53 = scalar_lea.vmem %s1, 487
  %54 = vst.msk [vmem:[%s53] ss:$-25 sm:$0xc0] %vm46, %v45
  %s55 = scalar_lea.vmem %s0, 16
  %v56 = vld [vmem:[%s55] sm:$0xff]
  %57 = vrot.lane.b32.xlu0 %v56, 120
  %v58 = vpop.permute.xlu0 %57
  %vm59 = vcmask 64512
  %s60 = scalar_lea.vmem %s1, 40
  %61 = vst.msk [vmem:[%s60] ss:$48 sm:$0x3] %vm59, %v58
  %s62 = scalar_lea.vmem %s1, 40
  %63 = vst.msk [vmem:[%s62] ss:$48 sm:$0xc] %vm59, %v58
  %s64 = scalar_lea.vmem %s1, 40
  %65 = vst.msk [vmem:[%s64] ss:$48 sm:$0x30] %vm59, %v58
  %s66 = scalar_lea.vmem %s1, 40
  %67 = vst.msk [vmem:[%s66] ss:$48 sm:$0xc0] %vm59, %v58
  %v68 = vld.sshfl [vmem:[%s0] sm:$0xff pattern:$0xa3b28190]
  %69 = vrot.lane.b32.xlu0 %v68, 112
  %v70 = vpop.permute.xlu0 %69
  %vm71 = vcmask 64512
  %s72 = scalar_lea.vmem %s1, 2
  %73 = vst.msk [vmem:[%s72] ss:$71 sm:$0x3] %vm71, %v70
  %s74 = scalar_lea.vmem %s1, 100
  %75 = vst.msk [vmem:[%s74] ss:$-25 sm:$0xc] %vm71, %v70
  %s76 = scalar_lea.vmem %s1, 4294967110
  %77 = vst.msk [vmem:[%s76] ss:$71 sm:$0x30] %vm71, %v70
  %s78 = scalar_lea.vmem %s1, 296
  %79 = vst.msk [vmem:[%s78] ss:$-25 sm:$0xc0] %vm71, %v70
  %s80 = scalar_lea.vmem %s0, 4
  %v81 = vld.sshfl [vmem:[%s80] sm:$0xff pattern:$0xa3b28190]
  %82 = vrot.lane.b32.xlu0 %v81, 112
  %v83 = vpop.permute.xlu0 %82
  %vm84 = vcmask 64512
  %s85 = scalar_lea.vmem %s1, 194
  %86 = vst.msk [vmem:[%s85] ss:$71 sm:$0x3] %vm84, %v83
  %s87 = scalar_lea.vmem %s1, 292
  %88 = vst.msk [vmem:[%s87] ss:$-25 sm:$0xc] %vm84, %v83
  %s89 = scalar_lea.vmem %s1, 6
  %90 = vst.msk [vmem:[%s89] ss:$71 sm:$0x30] %vm84, %v83
  %s91 = scalar_lea.vmem %s1, 488
  %92 = vst.msk [vmem:[%s91] ss:$-25 sm:$0xc0] %vm84, %v83
  %v93 = vld.sshfl [vmem:[%s0] sm:$0xff pattern:$0xa3b28190]
  %94 = vrot.lane.b32.xlu0 %v93, 104
  %v95 = vpop.permute.xlu0 %94
  %vm96 = vcmask 64512
  %s97 = scalar_lea.vmem %s1, 3
  %98 = vst.msk [vmem:[%s97] ss:$71 sm:$0x3] %vm96, %v95
  %s99 = scalar_lea.vmem %s1, 101
  %100 = vst.msk [vmem:[%s99] ss:$-25 sm:$0xc] %vm96, %v95
  %s101 = scalar_lea.vmem %s1, 4294967111
  %102 = vst.msk [vmem:[%s101] ss:$71 sm:$0x30] %vm96, %v95
  %s103 = scalar_lea.vmem %s1, 297
  %104 = vst.msk [vmem:[%s103] ss:$-25 sm:$0xc0] %vm96, %v95
  %s105 = scalar_lea.vmem %s0, 4
  %v106 = vld.sshfl [vmem:[%s105] sm:$0xff pattern:$0xa3b28190]
  %107 = vrot.lane.b32.xlu0 %v106, 104
  %v108 = vpop.permute.xlu0 %107
  %vm109 = vcmask 64512
  %s110 = scalar_lea.vmem %s1, 195
  %111 = vst.msk [vmem:[%s110] ss:$71 sm:$0x3] %vm109, %v108
  %s112 = scalar_lea.vmem %s1, 293
  %113 = vst.msk [vmem:[%s112] ss:$-25 sm:$0xc] %vm109, %v108
  %s114 = scalar_lea.vmem %s1, 7
  %115 = vst.msk [vmem:[%s114] ss:$71 sm:$0x30] %vm109, %v108
  %s116 = scalar_lea.vmem %s1, 489
  %117 = vst.msk [vmem:[%s116] ss:$-25 sm:$0xc0] %vm109, %v108
  %v118 = vld.sshfl [vmem:[%s0] sm:$0xff pattern:$0xa3b28190]
  %119 = vrot.lane.b32.xlu0 %v118, 96
  %v120 = vpop.permute.xlu0 %119
  %vm121 = vcmask 64512
  %s122 = scalar_lea.vmem %s1, 4
  %123 = vst.msk [vmem:[%s122] ss:$71 sm:$0x3] %vm121, %v120
  %s124 = scalar_lea.vmem %s1, 102
  %125 = vst.msk [vmem:[%s124] ss:$-25 sm:$0xc] %vm121, %v120
  %s126 = scalar_lea.vmem %s1, 4294967112
  %127 = vst.msk [vmem:[%s126] ss:$71 sm:$0x30] %vm121, %v120
  %s128 = scalar_lea.vmem %s1, 298
  %129 = vst.msk [vmem:[%s128] ss:$-25 sm:$0xc0] %vm121, %v120
  %s130 = scalar_lea.vmem %s0, 4
  %v131 = vld.sshfl [vmem:[%s130] sm:$0xff pattern:$0xa3b28190]
  %132 = vrot.lane.b32.xlu0 %v131, 96
  %v133 = vpop.permute.xlu0 %132
  %vm134 = vcmask 64512
  %s135 = scalar_lea.vmem %s1, 196
  %136 = vst.msk [vmem:[%s135] ss:$71 sm:$0x3] %vm134, %v133
  %s137 = scalar_lea.vmem %s1, 294
  %138 = vst.msk [vmem:[%s137] ss:$-25 sm:$0xc] %vm134, %v133
  %s139 = scalar_lea.vmem %s1, 8
  %140 = vst.msk [vmem:[%s139] ss:$71 sm:$0x30] %vm134, %v133
  %s141 = scalar_lea.vmem %s1, 490
  %142 = vst.msk [vmem:[%s141] ss:$-25 sm:$0xc0] %vm134, %v133
  %v143 = vld.sshfl [vmem:[%s0] sm:$0xff pattern:$0xa3b28190]
  %144 = vrot.lane.b32.xlu0 %v143, 88
  %v145 = vpop.permute.xlu0 %144
  %vm146 = vcmask 64512
  %s147 = scalar_lea.vmem %s1, 5
  %148 = vst.msk [vmem:[%s147] ss:$71 sm:$0x3] %vm146, %v145
  %s149 = scalar_lea.vmem %s1, 103
  %150 = vst.msk [vmem:[%s149] ss:$-25 sm:$0xc] %vm146, %v145
  %s151 = scalar_lea.vmem %s1, 4294967113
  %152 = vst.msk [vmem:[%s151] ss:$71 sm:$0x30] %vm146, %v145
  %s153 = scalar_lea.vmem %s1, 299
  %154 = vst.msk [vmem:[%s153] ss:$-25 sm:$0xc0] %vm146, %v145
  %s155 = scalar_lea.vmem %s0, 4
  %v156 = vld.sshfl [vmem:[%s155] sm:$0xff pattern:$0xa3b28190]
  %157 = vrot.lane.b32.xlu0 %v156, 88
  %v158 = vpop.permute.xlu0 %157
  %vm159 = vcmask 64512
  %s160 = scalar_lea.vmem %s1, 197
  %161 = vst.msk [vmem:[%s160] ss:$71 sm:$0x3] %vm159, %v158
  %s162 = scalar_lea.vmem %s1, 295
  %163 = vst.msk [vmem:[%s162] ss:$-25 sm:$0xc] %vm159, %v158
  %s164 = scalar_lea.vmem %s1, 9
  %165 = vst.msk [vmem:[%s164] ss:$71 sm:$0x30] %vm159, %v158
  %s166 = scalar_lea.vmem %s1, 491
  %167 = vst.msk [vmem:[%s166] ss:$-25 sm:$0xc0] %vm159, %v158
  %v168 = vld.sshfl [vmem:[%s0] sm:$0xff pattern:$0xa3b28190]
  %169 = vrot.lane.b32.xlu0 %v168, 80
  %v170 = vpop.permute.xlu0 %169
  %vm171 = vcmask 64512
  %s172 = scalar_lea.vmem %s1, 6
  %173 = vst.msk [vmem:[%s172] ss:$71 sm:$0x3] %vm171, %v170
  %s174 = scalar_lea.vmem %s1, 104
  %175 = vst.msk [vmem:[%s174] ss:$-25 sm:$0xc] %vm171, %v170
  %s176 = scalar_lea.vmem %s1, 4294967114
  %177 = vst.msk [vmem:[%s176] ss:$71 sm:$0x30] %vm171, %v170
  %s178 = scalar_lea.vmem %s1, 300
  %179 = vst.msk [vmem:[%s178] ss:$-25 sm:$0xc0] %vm171, %v170
  %s180 = scalar_lea.vmem %s0, 4
  %v181 = vld.sshfl [vmem:[%s180] sm:$0xff pattern:$0xa3b28190]
  %182 = vrot.lane.b32.xlu0 %v181, 80
  %v183 = vpop.permute.xlu0 %182
  %vm184 = vcmask 64512
  %s185 = scalar_lea.vmem %s1, 198
  %186 = vst.msk [vmem:[%s185] ss:$71 sm:$0x3] %vm184, %v183
  %s187 = scalar_lea.vmem %s1, 296
  %188 = vst.msk [vmem:[%s187] ss:$-25 sm:$0xc] %vm184, %v183
  %s189 = scalar_lea.vmem %s1, 10
  %190 = vst.msk [vmem:[%s189] ss:$71 sm:$0x30] %vm184, %v183
  %s191 = scalar_lea.vmem %s1, 492
  %192 = vst.msk [vmem:[%s191] ss:$-25 sm:$0xc0] %vm184, %v183
  %v193 = vld.sshfl [vmem:[%s0] sm:$0xff pattern:$0xa3b28190]
  %194 = vrot.lane.b32.xlu0 %v193, 72
  %v195 = vpop.permute.xlu0 %194
  %vm196 = vcmask 64512
  %s197 = scalar_lea.vmem %s1, 7
  %198 = vst.msk [vmem:[%s197] ss:$71 sm:$0x3] %vm196, %v195
  %s199 = scalar_lea.vmem %s1, 105
  %200 = vst.msk [vmem:[%s199] ss:$-25 sm:$0xc] %vm196, %v195
  %s201 = scalar_lea.vmem %s1, 4294967115
  %202 = vst.msk [vmem:[%s201] ss:$71 sm:$0x30] %vm196, %v195
  %s203 = scalar_lea.vmem %s1, 301
  %204 = vst.msk [vmem:[%s203] ss:$-25 sm:$0xc0] %vm196, %v195
  %s205 = scalar_lea.vmem %s0, 4
  %v206 = vld.sshfl [vmem:[%s205] sm:$0xff pattern:$0xa3b28190]
  %207 = vrot.lane.b32.xlu0 %v206, 72
  %v208 = vpop.permute.xlu0 %207
  %vm209 = vcmask 64512
  %s210 = scalar_lea.vmem %s1, 199
  %211 = vst.msk [vmem:[%s210] ss:$71 sm:$0x3] %vm209, %v208
  %s212 = scalar_lea.vmem %s1, 297
  %213 = vst.msk [vmem:[%s212] ss:$-25 sm:$0xc] %vm209, %v208
  %s214 = scalar_lea.vmem %s1, 11
  %215 = vst.msk [vmem:[%s214] ss:$71 sm:$0x30] %vm209, %v208
  %s216 = scalar_lea.vmem %s1, 493
  %217 = vst.msk [vmem:[%s216] ss:$-25 sm:$0xc0] %vm209, %v208
  %v218 = vld.sshfl [vmem:[%s0] sm:$0xff pattern:$0xa3b28190]
  %219 = vrot.lane.b32.xlu0 %v218, 64
  %v220 = vpop.permute.xlu0 %219
  %vm221 = vcmask 64512
  %s222 = scalar_lea.vmem %s1, 8
  %223 = vst.msk [vmem:[%s222] ss:$71 sm:$0x3] %vm221, %v220
  %s224 = scalar_lea.vmem %s1, 106
  %225 = vst.msk [vmem:[%s224] ss:$-25 sm:$0xc] %vm221, %v220
  %s226 = scalar_lea.vmem %s1, 4294967116
  %227 = vst.msk [vmem:[%s226] ss:$71 sm:$0x30] %vm221, %v220
  %s228 = scalar_lea.vmem %s1, 302
  %229 = vst.msk [vmem:[%s228] ss:$-25 sm:$0xc0] %vm221, %v220
  %s230 = scalar_lea.vmem %s0, 4
  %v231 = vld.sshfl [vmem:[%s230] sm:$0xff pattern:$0xa3b28190]
  %232 = vrot.lane.b32.xlu0 %v231, 64
  %v233 = vpop.permute.xlu0 %232
  %vm234 = vcmask 64512
  %s235 = scalar_lea.vmem %s1, 200
  %236 = vst.msk [vmem:[%s235] ss:$71 sm:$0x3] %vm234, %v233
  %s237 = scalar_lea.vmem %s1, 298
  %238 = vst.msk [vmem:[%s237] ss:$-25 sm:$0xc] %vm234, %v233
  %s239 = scalar_lea.vmem %s1, 12
  %240 = vst.msk [vmem:[%s239] ss:$71 sm:$0x30] %vm234, %v233
  %s241 = scalar_lea.vmem %s1, 494
  %242 = vst.msk [vmem:[%s241] ss:$-25 sm:$0xc0] %vm234, %v233
  %v243 = vld.sshfl [vmem:[%s0] sm:$0xff pattern:$0x3b2a1908]
  %244 = vrot.lane.b32.xlu0 %v243, 56
  %v245 = vpop.permute.xlu0 %244
  %vm246 = vcmask 64512
  %s247 = scalar_lea.vmem %s1, 32
  %248 = vst.msk [vmem:[%s247] ss:$-23 sm:$0x3] %vm246, %v245
  %s249 = scalar_lea.vmem %s1, 126
  %250 = vst.msk [vmem:[%s249] ss:$-23 sm:$0xc] %vm246, %v245
  %s251 = scalar_lea.vmem %s1, 220
  %252 = vst.msk [vmem:[%s251] ss:$-23 sm:$0x30] %vm246, %v245
  %s253 = scalar_lea.vmem %s1, 314
  %254 = vst.msk [vmem:[%s253] ss:$-23 sm:$0xc0] %vm246, %v245
  %s255 = scalar_lea.vmem %s0, 4
  %v256 = vld.sshfl [vmem:[%s255] sm:$0xff pattern:$0x3b2a1908]
  %257 = vrot.lane.b32.xlu0 %v256, 56
  %v258 = vpop.permute.xlu0 %257
  %vm259 = vcmask 64512
  %s260 = scalar_lea.vmem %s1, 224
  %261 = vst.msk [vmem:[%s260] ss:$-23 sm:$0x3] %vm259, %v258
  %s262 = scalar_lea.vmem %s1, 318
  %263 = vst.msk [vmem:[%s262] ss:$-23 sm:$0xc] %vm259, %v258
  %s264 = scalar_lea.vmem %s1, 412
  %265 = vst.msk [vmem:[%s264] ss:$-23 sm:$0x30] %vm259, %v258
  %s266 = scalar_lea.vmem %s1, 506
  %267 = vst.msk [vmem:[%s266] ss:$-23 sm:$0xc0] %vm259, %v258
  %v268 = vld.sshfl [vmem:[%s0] sm:$0xff pattern:$0x3b2a1908]
  %269 = vrot.lane.b32.xlu0 %v268, 48
  %v270 = vpop.permute.xlu0 %269
  %vm271 = vcmask 64512
  %s272 = scalar_lea.vmem %s1, 33
  %273 = vst.msk [vmem:[%s272] ss:$-23 sm:$0x3] %vm271, %v270
  %s274 = scalar_lea.vmem %s1, 127
  %275 = vst.msk [vmem:[%s274] ss:$-23 sm:$0xc] %vm271, %v270
  %s276 = scalar_lea.vmem %s1, 221
  %277 = vst.msk [vmem:[%s276] ss:$-23 sm:$0x30] %vm271, %v270
  %s278 = scalar_lea.vmem %s1, 315
  %279 = vst.msk [vmem:[%s278] ss:$-23 sm:$0xc0] %vm271, %v270
  %s280 = scalar_lea.vmem %s0, 4
  %v281 = vld.sshfl [vmem:[%s280] sm:$0xff pattern:$0x3b2a1908]
  %282 = vrot.lane.b32.xlu0 %v281, 48
  %v283 = vpop.permute.xlu0 %282
  %vm284 = vcmask 64512
  %s285 = scalar_lea.vmem %s1, 225
  %286 = vst.msk [vmem:[%s285] ss:$-23 sm:$0x3] %vm284, %v283
  %s287 = scalar_lea.vmem %s1, 319
  %288 = vst.msk [vmem:[%s287] ss:$-23 sm:$0xc] %vm284, %v283
  %s289 = scalar_lea.vmem %s1, 413
  %290 = vst.msk [vmem:[%s289] ss:$-23 sm:$0x30] %vm284, %v283
  %s291 = scalar_lea.vmem %s1, 507
  %292 = vst.msk [vmem:[%s291] ss:$-23 sm:$0xc0] %vm284, %v283
  %v293 = vld.sshfl [vmem:[%s0] sm:$0xff pattern:$0x3b2a1908]
  %294 = vrot.lane.b32.xlu0 %v293, 40
  %v295 = vpop.permute.xlu0 %294
  %vm296 = vcmask 64512
  %s297 = scalar_lea.vmem %s1, 34
  %298 = vst.msk [vmem:[%s297] ss:$-23 sm:$0x3] %vm296, %v295
  %s299 = scalar_lea.vmem %s1, 128
  %300 = vst.msk [vmem:[%s299] ss:$-23 sm:$0xc] %vm296, %v295
  %s301 = scalar_lea.vmem %s1, 222
  %302 = vst.msk [vmem:[%s301] ss:$-23 sm:$0x30] %vm296, %v295
  %s303 = scalar_lea.vmem %s1, 316
  %304 = vst.msk [vmem:[%s303] ss:$-23 sm:$0xc0] %vm296, %v295
  %s305 = scalar_lea.vmem %s0, 4
  %v306 = vld.sshfl [vmem:[%s305] sm:$0xff pattern:$0x3b2a1908]
  %307 = vrot.lane.b32.xlu0 %v306, 40
  %v308 = vpop.permute.xlu0 %307
  %vm309 = vcmask 64512
  %s310 = scalar_lea.vmem %s1, 226
  %311 = vst.msk [vmem:[%s310] ss:$-23 sm:$0x3] %vm309, %v308
  %s312 = scalar_lea.vmem %s1, 320
  %313 = vst.msk [vmem:[%s312] ss:$-23 sm:$0xc] %vm309, %v308
  %s314 = scalar_lea.vmem %s1, 414
  %315 = vst.msk [vmem:[%s314] ss:$-23 sm:$0x30] %vm309, %v308
  %s316 = scalar_lea.vmem %s1, 508
  %317 = vst.msk [vmem:[%s316] ss:$-23 sm:$0xc0] %vm309, %v308
  %v318 = vld.sshfl [vmem:[%s0] sm:$0xff pattern:$0x3b2a1908]
  %319 = vrot.lane.b32.xlu0 %v318, 32
  %v320 = vpop.permute.xlu0 %319
  %vm321 = vcmask 64512
  %s322 = scalar_lea.vmem %s1, 35
  %323 = vst.msk [vmem:[%s322] ss:$-23 sm:$0x3] %vm321, %v320
  %s324 = scalar_lea.vmem %s1, 129
  %325 = vst.msk [vmem:[%s324] ss:$-23 sm:$0xc] %vm321, %v320
  %s326 = scalar_lea.vmem %s1, 223
  %327 = vst.msk [vmem:[%s326] ss:$-23 sm:$0x30] %vm321, %v320
  %s328 = scalar_lea.vmem %s1, 317
  %329 = vst.msk [vmem:[%s328] ss:$-23 sm:$0xc0] %vm321, %v320
  %s330 = scalar_lea.vmem %s0, 4
  %v331 = vld.sshfl [vmem:[%s330] sm:$0xff pattern:$0x3b2a1908]
  %332 = vrot.lane.b32.xlu0 %v331, 32
  %v333 = vpop.permute.xlu0 %332
  %vm334 = vcmask 64512
  %s335 = scalar_lea.vmem %s1, 227
  %336 = vst.msk [vmem:[%s335] ss:$-23 sm:$0x3] %vm334, %v333
  %s337 = scalar_lea.vmem %s1, 321
  %338 = vst.msk [vmem:[%s337] ss:$-23 sm:$0xc] %vm334, %v333
  %s339 = scalar_lea.vmem %s1, 415
  %340 = vst.msk [vmem:[%s339] ss:$-23 sm:$0x30] %vm334, %v333
  %s341 = scalar_lea.vmem %s1, 509
  %342 = vst.msk [vmem:[%s341] ss:$-23 sm:$0xc0] %vm334, %v333
  %v343 = vld.sshfl [vmem:[%s0] sm:$0xff pattern:$0x3b2a1908]
  %344 = vrot.lane.b32.xlu0 %v343, 24
  %v345 = vpop.permute.xlu0 %344
  %vm346 = vcmask 64512
  %s347 = scalar_lea.vmem %s1, 36
  %348 = vst.msk [vmem:[%s347] ss:$-23 sm:$0x3] %vm346, %v345
  %s349 = scalar_lea.vmem %s1, 130
  %350 = vst.msk [vmem:[%s349] ss:$-23 sm:$0xc] %vm346, %v345
  %s351 = scalar_lea.vmem %s1, 224
  %352 = vst.msk [vmem:[%s351] ss:$-23 sm:$0x30] %vm346, %v345
  %s353 = scalar_lea.vmem %s1, 318
  %354 = vst.msk [vmem:[%s353] ss:$-23 sm:$0xc0] %vm346, %v345
  %s355 = scalar_lea.vmem %s0, 4
  %v356 = vld.sshfl [vmem:[%s355] sm:$0xff pattern:$0x3b2a1908]
  %357 = vrot.lane.b32.xlu0 %v356, 24
  %v358 = vpop.permute.xlu0 %357
  %vm359 = vcmask 64512
  %s360 = scalar_lea.vmem %s1, 228
  %361 = vst.msk [vmem:[%s360] ss:$-23 sm:$0x3] %vm359, %v358
  %s362 = scalar_lea.vmem %s1, 322
  %363 = vst.msk [vmem:[%s362] ss:$-23 sm:$0xc] %vm359, %v358
  %s364 = scalar_lea.vmem %s1, 416
  %365 = vst.msk [vmem:[%s364] ss:$-23 sm:$0x30] %vm359, %v358
  %s366 = scalar_lea.vmem %s1, 510
  %367 = vst.msk [vmem:[%s366] ss:$-23 sm:$0xc0] %vm359, %v358
  %v368 = vld.sshfl [vmem:[%s0] sm:$0xff pattern:$0x3b2a1908]
  %369 = vrot.lane.b32.xlu0 %v368, 16
  %v370 = vpop.permute.xlu0 %369
  %vm371 = vcmask 64512
  %s372 = scalar_lea.vmem %s1, 37
  %373 = vst.msk [vmem:[%s372] ss:$-23 sm:$0x3] %vm371, %v370
  %s374 = scalar_lea.vmem %s1, 131
  %375 = vst.msk [vmem:[%s374] ss:$-23 sm:$0xc] %vm371, %v370
  %s376 = scalar_lea.vmem %s1, 225
  %377 = vst.msk [vmem:[%s376] ss:$-23 sm:$0x30] %vm371, %v370
  %s378 = scalar_lea.vmem %s1, 319
  %379 = vst.msk [vmem:[%s378] ss:$-23 sm:$0xc0] %vm371, %v370
  %s380 = scalar_lea.vmem %s0, 4
  %v381 = vld.sshfl [vmem:[%s380] sm:$0xff pattern:$0x3b2a1908]
  %382 = vrot.lane.b32.xlu0 %v381, 16
  %v383 = vpop.permute.xlu0 %382
  %vm384 = vcmask 64512
  %s385 = scalar_lea.vmem %s1, 229
  %386 = vst.msk [vmem:[%s385] ss:$-23 sm:$0x3] %vm384, %v383
  %s387 = scalar_lea.vmem %s1, 323
  %388 = vst.msk [vmem:[%s387] ss:$-23 sm:$0xc] %vm384, %v383
  %s389 = scalar_lea.vmem %s1, 417
  %390 = vst.msk [vmem:[%s389] ss:$-23 sm:$0x30] %vm384, %v383
  %s391 = scalar_lea.vmem %s1, 511
  %392 = vst.msk [vmem:[%s391] ss:$-23 sm:$0xc0] %vm384, %v383
  %v393 = vld.sshfl [vmem:[%s0] sm:$0xff pattern:$0x3b2a1908]
  %394 = vrot.lane.b32.xlu0 %v393, 8
  %v395 = vpop.permute.xlu0 %394
  %vm396 = vcmask 64512
  %s397 = scalar_lea.vmem %s1, 38
  %398 = vst.msk [vmem:[%s397] ss:$-23 sm:$0x3] %vm396, %v395
  %s399 = scalar_lea.vmem %s1, 132
  %400 = vst.msk [vmem:[%s399] ss:$-23 sm:$0xc] %vm396, %v395
  %s401 = scalar_lea.vmem %s1, 226
  %402 = vst.msk [vmem:[%s401] ss:$-23 sm:$0x30] %vm396, %v395
  %s403 = scalar_lea.vmem %s1, 320
  %404 = vst.msk [vmem:[%s403] ss:$-23 sm:$0xc0] %vm396, %v395
  %s405 = scalar_lea.vmem %s0, 4
  %v406 = vld.sshfl [vmem:[%s405] sm:$0xff pattern:$0x3b2a1908]
  %407 = vrot.lane.b32.xlu0 %v406, 8
  %v408 = vpop.permute.xlu0 %407
  %vm409 = vcmask 64512
  %s410 = scalar_lea.vmem %s1, 230
  %411 = vst.msk [vmem:[%s410] ss:$-23 sm:$0x3] %vm409, %v408
  %s412 = scalar_lea.vmem %s1, 324
  %413 = vst.msk [vmem:[%s412] ss:$-23 sm:$0xc] %vm409, %v408
  %s414 = scalar_lea.vmem %s1, 418
  %415 = vst.msk [vmem:[%s414] ss:$-23 sm:$0x30] %vm409, %v408
  %s416 = scalar_lea.vmem %s1, 512
  %417 = vst.msk [vmem:[%s416] ss:$-23 sm:$0xc0] %vm409, %v408

// kernel: _lambda_.23
$region0: #{_lambda_.23}
  #allocation0 [shape = 'u32[]', space=smem, size = 0x4, offset = 0x4, fixed_abs, tag = 'smem constant byte address 0x4 - core index']
  #allocation1 [shape = 'u32[144,128]{1,0:T(1,128)}', space=vmem, size = 0x12000, scoped, tag = 'internal scratch']
  %s0 = inlined_call_operand.vmem [shape: bf16[1,54,272], index: 0, kind: input, shape index: {}]
  %s1 = inlined_call_operand.vmem [shape: bf16[1,8,54], index: 1, kind: input, shape index: {}]
  %s2 = inlined_call_operand.vmem [shape: f32[1,8,1], index: 2, kind: input, shape index: {}]
  %s3 = inlined_call_operand.vmem [shape: f32[1,8,272], index: 3, kind: output, shape index: {}]
  %s4 = sld [smem:[#allocation0]]
  $region22: #{_lambda_.23} parent=0
    _
  %s6 = ssub.s32 1, %s4
  %s7 = scalar_select 0, %s6, %s4
  // Predicated region
  $region2: #{_lambda_.23} parent=0 // pred_check
    _
  $region3: #{_lambda_.23} parent=0 // pred_check_branch
    %9 = sbr.rel (0) target = $region5
  $region4: #{_lambda_.23} parent=0 // pred_region
    _
  $region5: #{_lambda_.23} parent=0 // pred_fallthru
    _
  // Predicated region
  $region6: #{_lambda_.23} parent=0 // pred_check
    _
  $region7: #{_lambda_.23} parent=0 // pred_check_branch
    %11 = sbr.rel (0) target = $region9
  $region8: #{_lambda_.23} parent=0 // pred_region
    _
  $region9: #{_lambda_.23} parent=0 // pred_fallthru
    _
  // Predicated region
  $region10: #{_lambda_.23} parent=0 // pred_check
    _
  $region11: #{_lambda_.23} parent=0 // pred_check_branch
    %13 = sbr.rel (0) target = $region13
  $region12: #{_lambda_.23} parent=0 // pred_region
    _
  $region13: #{_lambda_.23} parent=0 // pred_fallthru
    _
  %v15 = vld [vmem:[%s1] sm:$0xf]
  %v16 = vld [vmem:[%s0] sm:$0xff]
  %v17 = vld [vmem:[%s0 + $0x8] sm:$0xf]
  %v18 = vld [vmem:[%s0 + $0xc] sm:$0xff]
  %v19 = vld [vmem:[%s0 + $0x14] sm:$0xf]
  %v20 = vld [vmem:[%s0 + $0x18] sm:$0xff]
  %v21 = vld [vmem:[%s0 + $0x20] sm:$0xf]
  %v22 = vld [vmem:[%s0 + $0x24] sm:$0xff]
  %v23 = vld [vmem:[%s0 + $0x2c] sm:$0xf]
  %v24 = vld [vmem:[%s0 + $0x30] sm:$0xff]
  %v25 = vld [vmem:[%s0 + $0x38] sm:$0xf]
  %v26 = vld [vmem:[%s0 + $0x3c] sm:$0xff]
  %v27 = vld [vmem:[%s0 + $0x44] sm:$0xf]
  %v28 = vld [vmem:[%s0 + $0x48] sm:$0x77]
  %v29 = vld [vmem:[%s0 + $0x50] sm:$0x7]
  %v30 = vld [vmem:[%s2] sm:$0xff]
  %32 = vset.pattern.permute.xlu0 0
  %33 = vperm.xlu0 %32, %v30
  %v34 = vpop.permute.xlu0 %33
  %v50 = vunpack.c.l.b16 %v16
  %v51 = vunpack.c.h.b16 %v16
  %v52 = vunpack.c.l.b16 %v17
  %v53 = vunpack.c.l.b16 %v18
  %v54 = vunpack.c.h.b16 %v18
  %v55 = vunpack.c.l.b16 %v19
  %v56 = vunpack.c.l.b16 %v20
  %v57 = vunpack.c.h.b16 %v20
  %v58 = vunpack.c.l.b16 %v21
  %v59 = vunpack.c.l.b16 %v22
  %v60 = vunpack.c.h.b16 %v22
  %v61 = vunpack.c.l.b16 %v23
  %v62 = vunpack.c.l.b16 %v24
  %v63 = vunpack.c.h.b16 %v24
  %v64 = vunpack.c.l.b16 %v25
  %v65 = vunpack.c.l.b16 %v26
  %v66 = vunpack.c.h.b16 %v26
  %v67 = vunpack.c.l.b16 %v27
  %v68 = vunpack.c.l.b16 %v28
  %v69 = vunpack.c.h.b16 %v28
  %v70 = vunpack.c.l.b16 %v29
  %v71 = vpack.c.b16 %v53, %v50
  %v72 = vpack.c.b16 %v54, %v51
  %v73 = vpack.c.b16 %v55, %v52
  %v74 = vpack.c.b16 %v59, %v56
  %v75 = vpack.c.b16 %v60, %v57
  %v76 = vpack.c.b16 %v61, %v58
  %v77 = vpack.c.b16 %v65, %v62
  %v78 = vpack.c.b16 %v66, %v63
  %v79 = vpack.c.b16 %v67, %v64
  %v80 = vpack.c.b16 %v68, %v68
  %v81 = vpack.c.b16 %v69, %v69
  %v82 = vpack.c.b16 %v70, %v70
  %vm92 = vcmask 441344
  %v94 = vsel %vm92, %v15, 0
  %vm96 = vcmask 1042432
  %v98 = vsel %vm96, %v80, 0
  %v101 = vsel %vm96, %v81, 0
  %v104 = vsel %vm96, %v82, 0
  %106 = vmatprep.subr.bf16.mxu0 %v72
  %107 = vmatpush1.bf16.msra.mxu0 %v71
  %108 = vmatprep.subr.bf16.mxu0 %v75
  %109 = vmatpush1.bf16.msra.mxu0 %v74
  %110 = vmatprep.subr.bf16.mxu0 %v78
  %111 = vmatpush1.bf16.msra.mxu0 %v77
  %112 = vmatprep.subr.bf16.mxu0 %v101
  %113 = vmatpush1.bf16.msra.mxu0 %v98
  %114 = vmatprep.subr.bf16.mxu0 0
  %115 = vmatpush1.bf16.msra.mxu0 0
  %116 = vmatprep.subr.bf16.mxu0 0
  %117 = vmatpush1.bf16.msra.mxu0 0
  %118 = vmatprep.subr.bf16.mxu0 0
  %119 = vmatpush1.bf16.msra.mxu0 0
  %120 = vmatprep.subr.bf16.mxu0 0
  %121 = vmatpush1.bf16.msra.mxu0 0
  %122 = vmatprep.subr.bf16.mxu0 0
  %123 = vmatpush1.bf16.msra.mxu0 0
  %124 = vmatprep.subr.bf16.mxu0 0
  %125 = vmatpush1.bf16.msra.mxu0 0
  %126 = vmatprep.subr.bf16.mxu0 0
  %127 = vmatpush1.bf16.msra.mxu0 0
  %128 = vmatprep.subr.bf16.mxu0 0
  %129 = vmatpush1.bf16.msra.mxu0 0
  %130 = vmatprep.subr.bf16.mxu0 0
  %131 = vmatpush1.bf16.msra.mxu0 0
  %132 = vmatprep.subr.bf16.mxu0 0
  %133 = vmatpush1.bf16.msra.mxu0 0
  %134 = vmatprep.subr.bf16.mxu0 0
  %135 = vmatpush1.bf16.msra.mxu0 0
  %136 = vmatprep.subr.bf16.mxu0 0
  %137 = vmatpush1.bf16.msra.mxu0 0
  %138 = vmatprep.mubr.bf16.mxu0 0
  %139 = vmatmul.mubr.bf16.gmra.mrb[0].mxu0 %v94
  %v140 = vpop.f32.mrb[0].mxu0
  %v141 = vadd.f32 %v34, %v140
  %v142 = vpop.f32.mrb[0].mxu0
  %v143 = vadd.f32 %v34, %v142
  %v144 = vpop.f32.mrb[0].mxu0
  %v145 = vpop.f32.mrb[0].mxu0
  %146 = vdwg.mxu0
  %147 = vmatprep.subr.bf16.mxu0 0
  %148 = vmatpush1.bf16.msra.mxu0 %v73
  %149 = vmatprep.subr.bf16.mxu0 0
  %150 = vmatpush1.bf16.msra.mxu0 %v76
  %151 = vmatprep.subr.bf16.mxu0 0
  %152 = vmatpush1.bf16.msra.mxu0 %v79
  %153 = vmatprep.subr.bf16.mxu0 0
  %154 = vmatpush1.bf16.msra.mxu0 %v104
  %155 = vmatprep.subr.bf16.mxu0 0
  %156 = vmatpush1.bf16.msra.mxu0 0
  %157 = vmatprep.subr.bf16.mxu0 0
  %158 = vmatpush1.bf16.msra.mxu0 0
  %159 = vmatprep.subr.bf16.mxu0 0
  %160 = vmatpush1.bf16.msra.mxu0 0
  %161 = vmatprep.subr.bf16.mxu0 0
  %162 = vmatpush1.bf16.msra.mxu0 0
  %163 = vmatprep.subr.bf16.mxu0 0
  %164 = vmatpush1.bf16.msra.mxu0 0
  %165 = vmatprep.subr.bf16.mxu0 0
  %166 = vmatpush1.bf16.msra.mxu0 0
  %167 = vmatprep.subr.bf16.mxu0 0
  %168 = vmatpush1.bf16.msra.mxu0 0
  %169 = vmatprep.subr.bf16.mxu0 0
  %170 = vmatpush1.bf16.msra.mxu0 0
  %171 = vmatprep.subr.bf16.mxu0 0
  %172 = vmatpush1.bf16.msra.mxu0 0
  %173 = vmatprep.subr.bf16.mxu0 0
  %174 = vmatpush1.bf16.msra.mxu0 0
  %175 = vmatprep.subr.bf16.mxu0 0
  %176 = vmatpush1.bf16.msra.mxu0 0
  %177 = vmatprep.subr.bf16.mxu0 0
  %178 = vmatpush1.bf16.msra.mxu0 0
  %179 = vmatprep.mubr.bf16.mxu0 0
  %180 = vmatmul.mubr.bf16.gmra.mrb[0].mxu0 %v94
  %v181 = vpop.f32.mrb[0].mxu0
  %v182 = vadd.f32 %v34, %v181
  %v183 = vpop.f32.mrb[0].mxu0
  %v184 = vpop.f32.mrb[0].mxu0
  %v185 = vpop.f32.mrb[0].mxu0
  %186 = vdwg.mxu0
  %vm187 = vcmp.ge.f32.partialorder %v141, 0.0
  %vm188 = vcmp.ge.f32.partialorder %v143, 0.0
  %vm189 = vcmp.ge.f32.partialorder %v182, 0.0
  %v190 = vmul.f32 %v141, 0.1
  %v191 = vmul.f32 %v143, 0.1
  %v192 = vmul.f32 %v182, 0.1
  %v193 = vsel %vm187, %v141, %v190
  %v194 = vsel %vm188, %v143, %v191
  %v195 = vsel %vm189, %v182, %v192
  %196 = vst [vmem:[%s3] sm:$0xff] %v193
  %197 = vst [vmem:[%s3 + $0x8] sm:$0xff] %v194
  %vm198 = vcmask 130048
  %199 = vst.msk [vmem:[%s3 + $0x10] sm:$0xff] %vm198, %v195
  // Predicated region
  $region14: #{_lambda_.23} parent=0 // pred_check
    _
  $region15: #{_lambda_.23} parent=0 // pred_check_branch
    %201 = sbr.rel (0) target = $region17
  $region16: #{_lambda_.23} parent=0 // pred_region
    _
  $region17: #{_lambda_.23} parent=0 // pred_fallthru
    _
  // Predicated region
  $region18: #{_lambda_.23} parent=0 // pred_check
    _
  $region19: #{_lambda_.23} parent=0 // pred_check_branch
    %203 = sbr.rel (0) target = $region21
  $region20: #{_lambda_.23} parent=0 // pred_region
    _
  $region21: #{_lambda_.23} parent=0 // pred_fallthru
    _

// kernel: _lambda_.24
$region0: #{_lambda_.24}
  #allocation0 [shape = 'u32[]', space=smem, size = 0x4, offset = 0x4, fixed_abs, tag = 'smem constant byte address 0x4 - core index']
  #allocation1 [shape = 'u32[144,128]{1,0:T(1,128)}', space=vmem, size = 0x12000, scoped, tag = 'internal scratch']
  %s0 = inlined_call_operand.vmem [shape: bf16[1,216,136], index: 0, kind: input, shape index: {}]
  %s1 = inlined_call_operand.vmem [shape: bf16[1,8,216], index: 1, kind: input, shape index: {}]
  %s2 = inlined_call_operand.vmem [shape: f32[1,8,1], index: 2, kind: input, shape index: {}]
  %s3 = inlined_call_operand.vmem [shape: f32[1,8,136], index: 3, kind: output, shape index: {}]
  %s4 = sld [smem:[#allocation0]]
  $region22: #{_lambda_.24} parent=0
    _
  %s6 = ssub.s32 1, %s4
  %s7 = scalar_select 0, %s6, %s4
  // Predicated region
  $region2: #{_lambda_.24} parent=0 // pred_check
    _
  $region3: #{_lambda_.24} parent=0 // pred_check_branch
    %9 = sbr.rel (0) target = $region5
  $region4: #{_lambda_.24} parent=0 // pred_region
    _
  $region5: #{_lambda_.24} parent=0 // pred_fallthru
    _
  // Predicated region
  $region6: #{_lambda_.24} parent=0 // pred_check
    _
  $region7: #{_lambda_.24} parent=0 // pred_check_branch
    %11 = sbr.rel (0) target = $region9
  $region8: #{_lambda_.24} parent=0 // pred_region
    _
  $region9: #{_lambda_.24} parent=0 // pred_fallthru
    _
  // Predicated region
  $region10: #{_lambda_.24} parent=0 // pred_check
    _
  $region11: #{_lambda_.24} parent=0 // pred_check_branch
    %13 = sbr.rel (0) target = $region13
  $region12: #{_lambda_.24} parent=0 // pred_region
    _
  $region13: #{_lambda_.24} parent=0 // pred_fallthru
    _
  %v15 = vld [vmem:[%s1] sm:$0xff]
  %v16 = vld [vmem:[%s0] sm:$0xff]
  %v17 = vld [vmem:[%s0 + $0x8] sm:$0xff]
  %v18 = vld [vmem:[%s0 + $0x10] sm:$0xff]
  %v19 = vld [vmem:[%s0 + $0x18] sm:$0xff]
  %v20 = vld [vmem:[%s0 + $0x20] sm:$0xff]
  %v21 = vld [vmem:[%s0 + $0x28] sm:$0xff]
  %v22 = vld [vmem:[%s0 + $0x30] sm:$0xff]
  %v23 = vld [vmem:[%s0 + $0x38] sm:$0xff]
  %v24 = vld [vmem:[%s0 + $0x40] sm:$0xff]
  %v25 = vld [vmem:[%s0 + $0x48] sm:$0xff]
  %v26 = vld [vmem:[%s0 + $0x50] sm:$0xff]
  %v27 = vld [vmem:[%s0 + $0x58] sm:$0xff]
  %v28 = vld [vmem:[%s0 + $0x60] sm:$0xff]
  %v29 = vld [vmem:[%s0 + $0x68] sm:$0xff]
  %v30 = vld [vmem:[%s0 + $0x70] sm:$0xff]
  %v31 = vld [vmem:[%s0 + $0x78] sm:$0xff]
  %v32 = vld [vmem:[%s0 + $0x80] sm:$0xff]
  %v33 = vld [vmem:[%s0 + $0x88] sm:$0xff]
  %v34 = vld [vmem:[%s0 + $0x90] sm:$0xff]
  %v35 = vld [vmem:[%s0 + $0x98] sm:$0xff]
  %v36 = vld [vmem:[%s0 + $0xa0] sm:$0xff]
  %v37 = vld [vmem:[%s0 + $0xa8] sm:$0xff]
  %v38 = vld [vmem:[%s0 + $0xb0] sm:$0xff]
  %v39 = vld [vmem:[%s0 + $0xb8] sm:$0xff]
  %v40 = vld [vmem:[%s0 + $0xc0] sm:$0xff]
  %v41 = vld [vmem:[%s0 + $0xc8] sm:$0xff]
  %v42 = vld [vmem:[%s0 + $0xd0] sm:$0xff]
  %v43 = vld [vmem:[%s2] sm:$0xff]
  %45 = vset.pattern.permute.xlu0 0
  %46 = vperm.xlu0 %45, %v43
  %v47 = vpop.permute.xlu0 %46
  %v50 = vunpack.c.l.b16 %v15
  %v51 = vunpack.c.h.b16 %v15
  %v52 = vpack.c.b16 %v50, %v50
  %v53 = vpack.c.b16 %v51, %v51
  %v82 = vunpack.c.l.b16 %v16
  %v83 = vunpack.c.h.b16 %v16
  %v84 = vunpack.c.l.b16 %v17
  %v85 = vunpack.c.h.b16 %v17
  %v86 = vunpack.c.l.b16 %v18
  %v87 = vunpack.c.h.b16 %v18
  %v88 = vunpack.c.l.b16 %v19
  %v89 = vunpack.c.h.b16 %v19
  %v90 = vunpack.c.l.b16 %v20
  %v91 = vunpack.c.h.b16 %v20
  %v92 = vunpack.c.l.b16 %v21
  %v93 = vunpack.c.h.b16 %v21
  %v94 = vunpack.c.l.b16 %v22
  %v95 = vunpack.c.h.b16 %v22
  %v96 = vunpack.c.l.b16 %v23
  %v97 = vunpack.c.h.b16 %v23
  %v98 = vunpack.c.l.b16 %v24
  %v99 = vunpack.c.h.b16 %v24
  %v100 = vunpack.c.l.b16 %v25
  %v101 = vunpack.c.h.b16 %v25
  %v102 = vunpack.c.l.b16 %v26
  %v103 = vunpack.c.h.b16 %v26
  %v104 = vunpack.c.l.b16 %v27
  %v105 = vunpack.c.h.b16 %v27
  %v106 = vunpack.c.l.b16 %v28
  %v107 = vunpack.c.h.b16 %v28
  %v108 = vunpack.c.l.b16 %v29
  %v109 = vunpack.c.h.b16 %v29
  %v110 = vunpack.c.l.b16 %v30
  %v111 = vunpack.c.h.b16 %v30
  %v112 = vunpack.c.l.b16 %v31
  %v113 = vunpack.c.h.b16 %v31
  %v114 = vunpack.c.l.b16 %v32
  %v115 = vunpack.c.h.b16 %v32
  %v116 = vunpack.c.l.b16 %v33
  %v117 = vunpack.c.h.b16 %v33
  %v118 = vunpack.c.l.b16 %v34
  %v119 = vunpack.c.h.b16 %v34
  %v120 = vunpack.c.l.b16 %v35
  %v121 = vunpack.c.h.b16 %v35
  %v122 = vunpack.c.l.b16 %v36
  %v123 = vunpack.c.h.b16 %v36
  %v124 = vunpack.c.l.b16 %v37
  %v125 = vunpack.c.h.b16 %v37
  %v126 = vunpack.c.l.b16 %v38
  %v127 = vunpack.c.h.b16 %v38
  %v128 = vunpack.c.l.b16 %v39
  %v129 = vunpack.c.h.b16 %v39
  %v130 = vunpack.c.l.b16 %v40
  %v131 = vunpack.c.h.b16 %v40
  %v132 = vunpack.c.l.b16 %v41
  %v133 = vunpack.c.h.b16 %v41
  %v134 = vunpack.c.l.b16 %v42
  %v135 = vunpack.c.h.b16 %v42
  %v136 = vpack.c.b16 %v84, %v82
  %v137 = vpack.c.b16 %v85, %v83
  %v138 = vpack.c.b16 %v88, %v86
  %v139 = vpack.c.b16 %v89, %v87
  %v140 = vpack.c.b16 %v92, %v90
  %v141 = vpack.c.b16 %v93, %v91
  %v142 = vpack.c.b16 %v96, %v94
  %v143 = vpack.c.b16 %v97, %v95
  %v144 = vpack.c.b16 %v100, %v98
  %v145 = vpack.c.b16 %v101, %v99
  %v146 = vpack.c.b16 %v104, %v102
  %v147 = vpack.c.b16 %v105, %v103
  %v148 = vpack.c.b16 %v108, %v106
  %v149 = vpack.c.b16 %v109, %v107
  %v150 = vpack.c.b16 %v112, %v110
  %v151 = vpack.c.b16 %v113, %v111
  %v152 = vpack.c.b16 %v116, %v114
  %v153 = vpack.c.b16 %v117, %v115
  %v154 = vpack.c.b16 %v120, %v118
  %v155 = vpack.c.b16 %v121, %v119
  %v156 = vpack.c.b16 %v124, %v122
  %v157 = vpack.c.b16 %v125, %v123
  %v158 = vpack.c.b16 %v128, %v126
  %v159 = vpack.c.b16 %v129, %v127
  %v160 = vpack.c.b16 %v132, %v130
  %v161 = vpack.c.b16 %v133, %v131
  %v162 = vpack.c.b16 %v134, %v134
  %v163 = vpack.c.b16 %v135, %v135
  %vm190 = vcmask 719872
  %v192 = vsel %vm190, %v53, 0
  %vm194 = vcmask 1043456
  %v196 = vsel %vm194, %v162, 0
  %v199 = vsel %vm194, %v163, 0
  %201 = vmatprep.subr.bf16.mxu0 %v137
  %202 = vmatpush1.bf16.msra.mxu0 %v136
  %203 = vmatprep.subr.bf16.mxu0 %v139
  %204 = vmatpush1.bf16.msra.mxu0 %v138
  %205 = vmatprep.subr.bf16.mxu0 %v141
  %206 = vmatpush1.bf16.msra.mxu0 %v140
  %207 = vmatprep.subr.bf16.mxu0 %v143
  %208 = vmatpush1.bf16.msra.mxu0 %v142
  %209 = vmatprep.subr.bf16.mxu0 %v145
  %210 = vmatpush1.bf16.msra.mxu0 %v144
  %211 = vmatprep.subr.bf16.mxu0 %v147
  %212 = vmatpush1.bf16.msra.mxu0 %v146
  %213 = vmatprep.subr.bf16.mxu0 %v149
  %214 = vmatpush1.bf16.msra.mxu0 %v148
  %215 = vmatprep.subr.bf16.mxu0 %v151
  %216 = vmatpush1.bf16.msra.mxu0 %v150
  %217 = vmatprep.subr.bf16.mxu0 %v153
  %218 = vmatpush1.bf16.msra.mxu0 %v152
  %219 = vmatprep.subr.bf16.mxu0 %v155
  %220 = vmatpush1.bf16.msra.mxu0 %v154
  %221 = vmatprep.subr.bf16.mxu0 %v157
  %222 = vmatpush1.bf16.msra.mxu0 %v156
  %223 = vmatprep.subr.bf16.mxu0 %v159
  %224 = vmatpush1.bf16.msra.mxu0 %v158
  %225 = vmatprep.subr.bf16.mxu0 %v161
  %226 = vmatpush1.bf16.msra.mxu0 %v160
  %227 = vmatprep.subr.bf16.mxu0 %v199
  %228 = vmatpush1.bf16.msra.mxu0 %v196
  %229 = vmatprep.subr.bf16.mxu0 0
  %230 = vmatpush1.bf16.msra.mxu0 0
  %231 = vmatprep.subr.bf16.mxu0 0
  %232 = vmatpush1.bf16.msra.mxu0 0
  %233 = vmatprep.mubr.bf16.mxu0 %v192
  %234 = vmatmul.mubr.bf16.gmra.mrb[0].mxu0 %v52
  %v235 = vpop.f32.mrb[0].mxu0
  %v236 = vadd.f32 %v47, %v235
  %v237 = vpop.f32.mrb[0].mxu0
  %v238 = vadd.f32 %v47, %v237
  %v239 = vpop.f32.mrb[0].mxu0
  %v240 = vpop.f32.mrb[0].mxu0
  %241 = vdwg.mxu0
  %vm242 = vcmp.ge.f32.partialorder %v236, 0.0
  %vm243 = vcmp.ge.f32.partialorder %v238, 0.0
  %v244 = vmul.f32 %v236, 0.1
  %v245 = vmul.f32 %v238, 0.1
  %v246 = vsel %vm242, %v236, %v244
  %v247 = vsel %vm243, %v238, %v245
  %248 = vst [vmem:[%s3] sm:$0xff] %v246
  %vm249 = vcmask 64512
  %250 = vst.msk [vmem:[%s3 + $0x8] sm:$0xff] %vm249, %v247
  // Predicated region
  $region14: #{_lambda_.24} parent=0 // pred_check
    _
  $region15: #{_lambda_.24} parent=0 // pred_check_branch
    %252 = sbr.rel (0) target = $region17
  $region16: #{_lambda_.24} parent=0 // pred_region
    _
  $region17: #{_lambda_.24} parent=0 // pred_fallthru
    _
  // Predicated region
  $region18: #{_lambda_.24} parent=0 // pred_check
    _
  $region19: #{_lambda_.24} parent=0 // pred_check_branch
    %254 = sbr.rel (0) target = $region21
  $region20: #{_lambda_.24} parent=0 // pred_region
    _
  $region21: #{_lambda_.24} parent=0 // pred_fallthru
    _

// kernel: _lambda_.25
$region0: #{_lambda_.25}
  #allocation0 [shape = 'u32[]', space=smem, size = 0x4, offset = 0x4, fixed_abs, tag = 'smem constant byte address 0x4 - core index']
  #allocation1 [shape = 'u32[144,128]{1,0:T(1,128)}', space=vmem, size = 0x12000, scoped, tag = 'internal scratch']
  %s0 = inlined_call_operand.vmem [shape: bf16[1,216,68], index: 0, kind: input, shape index: {}]
  %s1 = inlined_call_operand.vmem [shape: bf16[1,8,216], index: 1, kind: input, shape index: {}]
  %s2 = inlined_call_operand.vmem [shape: f32[1,8,1], index: 2, kind: input, shape index: {}]
  %s3 = inlined_call_operand.vmem [shape: f32[1,8,68], index: 3, kind: output, shape index: {}]
  %s4 = sld [smem:[#allocation0]]
  $region22: #{_lambda_.25} parent=0
    _
  %s6 = ssub.s32 1, %s4
  %s7 = scalar_select 0, %s6, %s4
  // Predicated region
  $region2: #{_lambda_.25} parent=0 // pred_check
    _
  $region3: #{_lambda_.25} parent=0 // pred_check_branch
    %9 = sbr.rel (0) target = $region5
  $region4: #{_lambda_.25} parent=0 // pred_region
    _
  $region5: #{_lambda_.25} parent=0 // pred_fallthru
    _
  // Predicated region
  $region6: #{_lambda_.25} parent=0 // pred_check
    _
  $region7: #{_lambda_.25} parent=0 // pred_check_branch
    %11 = sbr.rel (0) target = $region9
  $region8: #{_lambda_.25} parent=0 // pred_region
    _
  $region9: #{_lambda_.25} parent=0 // pred_fallthru
    _
  // Predicated region
  $region10: #{_lambda_.25} parent=0 // pred_check
    _
  $region11: #{_lambda_.25} parent=0 // pred_check_branch
    %13 = sbr.rel (0) target = $region13
  $region12: #{_lambda_.25} parent=0 // pred_region
    _
  $region13: #{_lambda_.25} parent=0 // pred_fallthru
    _
  %v15 = vld [vmem:[%s1] sm:$0xff]
  %v16 = vld [vmem:[%s0] sm:$0xf]
  %v17 = vld [vmem:[%s0 + $0x4] sm:$0xf]
  %v18 = vld [vmem:[%s0 + $0x8] sm:$0xf]
  %v19 = vld [vmem:[%s0 + $0xc] sm:$0xf]
  %v20 = vld [vmem:[%s0 + $0x10] sm:$0xf]
  %v21 = vld [vmem:[%s0 + $0x14] sm:$0xf]
  %v22 = vld [vmem:[%s0 + $0x18] sm:$0xf]
  %v23 = vld [vmem:[%s0 + $0x1c] sm:$0xf]
  %v24 = vld [vmem:[%s0 + $0x20] sm:$0xf]
  %v25 = vld [vmem:[%s0 + $0x24] sm:$0xf]
  %v26 = vld [vmem:[%s0 + $0x28] sm:$0xf]
  %v27 = vld [vmem:[%s0 + $0x2c] sm:$0xf]
  %v28 = vld [vmem:[%s0 + $0x30] sm:$0xf]
  %v29 = vld [vmem:[%s0 + $0x34] sm:$0xf]
  %v30 = vld [vmem:[%s0 + $0x38] sm:$0xf]
  %v31 = vld [vmem:[%s0 + $0x3c] sm:$0xf]
  %v32 = vld [vmem:[%s0 + $0x40] sm:$0xf]
  %v33 = vld [vmem:[%s0 + $0x44] sm:$0xf]
  %v34 = vld [vmem:[%s0 + $0x48] sm:$0xf]
  %v35 = vld [vmem:[%s0 + $0x4c] sm:$0xf]
  %v36 = vld [vmem:[%s0 + $0x50] sm:$0xf]
  %v37 = vld [vmem:[%s0 + $0x54] sm:$0xf]
  %v38 = vld [vmem:[%s0 + $0x58] sm:$0xf]
  %v39 = vld [vmem:[%s0 + $0x5c] sm:$0xf]
  %v40 = vld [vmem:[%s0 + $0x60] sm:$0xf]
  %v41 = vld [vmem:[%s0 + $0x64] sm:$0xf]
  %v42 = vld [vmem:[%s0 + $0x68] sm:$0xf]
  %v43 = vld [vmem:[%s2] sm:$0xff]
  %45 = vset.pattern.permute.xlu0 0
  %46 = vperm.xlu0 %45, %v43
  %v47 = vpop.permute.xlu0 %46
  %v50 = vunpack.c.l.b16 %v15
  %v51 = vunpack.c.h.b16 %v15
  %v52 = vpack.c.b16 %v50, %v50
  %v53 = vpack.c.b16 %v51, %v51
  %v82 = vunpack.c.l.b16 %v16
  %v83 = vunpack.c.l.b16 %v17
  %v84 = vunpack.c.l.b16 %v18
  %v85 = vunpack.c.l.b16 %v19
  %v86 = vunpack.c.l.b16 %v20
  %v87 = vunpack.c.l.b16 %v21
  %v88 = vunpack.c.l.b16 %v22
  %v89 = vunpack.c.l.b16 %v23
  %v90 = vunpack.c.l.b16 %v24
  %v91 = vunpack.c.l.b16 %v25
  %v92 = vunpack.c.l.b16 %v26
  %v93 = vunpack.c.l.b16 %v27
  %v94 = vunpack.c.l.b16 %v28
  %v95 = vunpack.c.l.b16 %v29
  %v96 = vunpack.c.l.b16 %v30
  %v97 = vunpack.c.l.b16 %v31
  %v98 = vunpack.c.l.b16 %v32
  %v99 = vunpack.c.l.b16 %v33
  %v100 = vunpack.c.l.b16 %v34
  %v101 = vunpack.c.l.b16 %v35
  %v102 = vunpack.c.l.b16 %v36
  %v103 = vunpack.c.l.b16 %v37
  %v104 = vunpack.c.l.b16 %v38
  %v105 = vunpack.c.l.b16 %v39
  %v106 = vunpack.c.l.b16 %v40
  %v107 = vunpack.c.l.b16 %v41
  %v108 = vunpack.c.l.b16 %v42
  %v109 = vpack.c.b16 %v83, %v82
  %v110 = vpack.c.b16 %v85, %v84
  %v111 = vpack.c.b16 %v87, %v86
  %v112 = vpack.c.b16 %v89, %v88
  %v113 = vpack.c.b16 %v91, %v90
  %v114 = vpack.c.b16 %v93, %v92
  %v115 = vpack.c.b16 %v95, %v94
  %v116 = vpack.c.b16 %v97, %v96
  %v117 = vpack.c.b16 %v99, %v98
  %v118 = vpack.c.b16 %v101, %v100
  %v119 = vpack.c.b16 %v103, %v102
  %v120 = vpack.c.b16 %v105, %v104
  %v121 = vpack.c.b16 %v107, %v106
  %v122 = vpack.c.b16 %v108, %v108
  %vm136 = vcmask 719872
  %v138 = vsel %vm136, %v53, 0
  %vm140 = vcmask 1043456
  %v142 = vsel %vm140, %v122, 0
  %144 = vmatprep.subr.bf16.mxu0 0
  %145 = vmatpush1.bf16.msra.mxu0 %v109
  %146 = vmatprep.subr.bf16.mxu0 0
  %147 = vmatpush1.bf16.msra.mxu0 %v110
  %148 = vmatprep.subr.bf16.mxu0 0
  %149 = vmatpush1.bf16.msra.mxu0 %v111
  %150 = vmatprep.subr.bf16.mxu0 0
  %151 = vmatpush1.bf16.msra.mxu0 %v112
  %152 = vmatprep.subr.bf16.mxu0 0
  %153 = vmatpush1.bf16.msra.mxu0 %v113
  %154 = vmatprep.subr.bf16.mxu0 0
  %155 = vmatpush1.bf16.msra.mxu0 %v114
  %156 = vmatprep.subr.bf16.mxu0 0
  %157 = vmatpush1.bf16.msra.mxu0 %v115
  %158 = vmatprep.subr.bf16.mxu0 0
  %159 = vmatpush1.bf16.msra.mxu0 %v116
  %160 = vmatprep.subr.bf16.mxu0 0
  %161 = vmatpush1.bf16.msra.mxu0 %v117
  %162 = vmatprep.subr.bf16.mxu0 0
  %163 = vmatpush1.bf16.msra.mxu0 %v118
  %164 = vmatprep.subr.bf16.mxu0 0
  %165 = vmatpush1.bf16.msra.mxu0 %v119
  %166 = vmatprep.subr.bf16.mxu0 0
  %167 = vmatpush1.bf16.msra.mxu0 %v120
  %168 = vmatprep.subr.bf16.mxu0 0
  %169 = vmatpush1.bf16.msra.mxu0 %v121
  %170 = vmatprep.subr.bf16.mxu0 0
  %171 = vmatpush1.bf16.msra.mxu0 %v142
  %172 = vmatprep.subr.bf16.mxu0 0
  %173 = vmatpush1.bf16.msra.mxu0 0
  %174 = vmatprep.subr.bf16.mxu0 0
  %175 = vmatpush1.bf16.msra.mxu0 0
  %176 = vmatprep.mubr.bf16.mxu0 %v138
  %177 = vmatmul.mubr.bf16.gmra.mrb[0].mxu0 %v52
  %v178 = vpop.f32.mrb[0].mxu0
  %v179 = vadd.f32 %v47, %v178
  %v180 = vpop.f32.mrb[0].mxu0
  %v181 = vpop.f32.mrb[0].mxu0
  %v182 = vpop.f32.mrb[0].mxu0
  %183 = vdwg.mxu0
  %vm184 = vcmp.ge.f32.partialorder %v179, 0.0
  %v185 = vmul.f32 %v179, 0.1
  %v186 = vsel %vm184, %v179, %v185
  %vm187 = vcmask 556032
  %188 = vst.msk [vmem:[%s3] sm:$0xff] %vm187, %v186
  // Predicated region
  $region14: #{_lambda_.25} parent=0 // pred_check
    _
  $region15: #{_lambda_.25} parent=0 // pred_check_branch
    %190 = sbr.rel (0) target = $region17
  $region16: #{_lambda_.25} parent=0 // pred_region
    _
  $region17: #{_lambda_.25} parent=0 // pred_fallthru
    _
  // Predicated region
  $region18: #{_lambda_.25} parent=0 // pred_check
    _
  $region19: #{_lambda_.25} parent=0 // pred_check_branch
    %192 = sbr.rel (0) target = $region21
  $region20: #{_lambda_.25} parent=0 // pred_region
    _
  $region21: #{_lambda_.25} parent=0 // pred_fallthru
    _

// kernel: squeeze.37
$region0: #{squeeze.37}
  %s0 = inlined_call_operand.vmem [shape: f32[1,8,68], index: 0, kind: input, shape index: {}]
  %s1 = inlined_call_operand.vmem [shape: f32[8,2,17,2], index: 1, kind: output, shape index: {}]
  $region1: #{squeeze.37} parent=0
    #allocation0 [shape = 'u8[139264]{0}', space=vmem, size = 0x22000, scoped, tag = 'scoped mem for output reshape']
    %v2 = vld [vmem:[%s0] sm:$0xff]
    %vm3 = vcmask 64512
    %4 = vst.msk [vmem:[#allocation0] sm:$0x3] %vm3, %v2
    %s5 = scalar_lea.vmem [#allocation0], 6
    %6 = vst.msk [vmem:[%s5] sm:$0xc] %vm3, %v2
    %s7 = scalar_lea.vmem [#allocation0], 12
    %8 = vst.msk [vmem:[%s7] sm:$0x30] %vm3, %v2
    %s9 = scalar_lea.vmem [#allocation0], 18
    %10 = vst.msk [vmem:[%s9] sm:$0xc0] %vm3, %v2
    %s11 = scalar_lea.vmem %s0, 8
    %v12 = vld [vmem:[%s11] sm:$0xff]
    %vm13 = vcmask 64512
    %s14 = scalar_lea.vmem [#allocation0], 32
    %15 = vst.msk [vmem:[%s14] sm:$0x3] %vm13, %v12
    %s16 = scalar_lea.vmem [#allocation0], 38
    %17 = vst.msk [vmem:[%s16] sm:$0xc] %vm13, %v12
    %s18 = scalar_lea.vmem [#allocation0], 44
    %19 = vst.msk [vmem:[%s18] sm:$0x30] %vm13, %v12
    %s20 = scalar_lea.vmem [#allocation0], 50
    %21 = vst.msk [vmem:[%s20] sm:$0xc0] %vm13, %v12
    %s22 = scalar_lea.vmem %s0, 16
    %v23 = vld [vmem:[%s22] sm:$0xff]
    %vm24 = vcmask 64512
    %s25 = scalar_lea.vmem [#allocation0], 64
    %26 = vst.msk [vmem:[%s25] sm:$0x3] %vm24, %v23
    %s27 = scalar_lea.vmem [#allocation0], 70
    %28 = vst.msk [vmem:[%s27] sm:$0xc] %vm24, %v23
    %s29 = scalar_lea.vmem [#allocation0], 76
    %30 = vst.msk [vmem:[%s29] sm:$0x30] %vm24, %v23
    %s31 = scalar_lea.vmem [#allocation0], 82
    %32 = vst.msk [vmem:[%s31] sm:$0xc0] %vm24, %v23
    %s33 = scalar_lea.vmem %s0, 24
    %v34 = vld [vmem:[%s33] sm:$0xff]
    %vm35 = vcmask 64512
    %s36 = scalar_lea.vmem [#allocation0], 96
    %37 = vst.msk [vmem:[%s36] sm:$0x3] %vm35, %v34
    %s38 = scalar_lea.vmem [#allocation0], 102
    %39 = vst.msk [vmem:[%s38] sm:$0xc] %vm35, %v34
    %s40 = scalar_lea.vmem [#allocation0], 108
    %41 = vst.msk [vmem:[%s40] sm:$0x30] %vm35, %v34
    %s42 = scalar_lea.vmem [#allocation0], 114
    %43 = vst.msk [vmem:[%s42] sm:$0xc0] %vm35, %v34
    %s44 = scalar_lea.vmem %s0, 32
    %v45 = vld [vmem:[%s44] sm:$0xff]
    %vm46 = vcmask 64512
    %s47 = scalar_lea.vmem [#allocation0], 128
    %48 = vst.msk [vmem:[%s47] sm:$0x3] %vm46, %v45
    %s49 = scalar_lea.vmem [#allocation0], 134
    %50 = vst.msk [vmem:[%s49] sm:$0xc] %vm46, %v45
    %s51 = scalar_lea.vmem [#allocation0], 140
    %52 = vst.msk [vmem:[%s51] sm:$0x30] %vm46, %v45
    %s53 = scalar_lea.vmem [#allocation0], 146
    %54 = vst.msk [vmem:[%s53] sm:$0xc0] %vm46, %v45
    %s55 = scalar_lea.vmem %s0, 40
    %v56 = vld [vmem:[%s55] sm:$0xff]
    %vm57 = vcmask 64512
    %s58 = scalar_lea.vmem [#allocation0], 160
    %59 = vst.msk [vmem:[%s58] sm:$0x3] %vm57, %v56
    %s60 = scalar_lea.vmem [#allocation0], 166
    %61 = vst.msk [vmem:[%s60] sm:$0xc] %vm57, %v56
    %s62 = scalar_lea.vmem [#allocation0], 172
    %63 = vst.msk [vmem:[%s62] sm:$0x30] %vm57, %v56
    %s64 = scalar_lea.vmem [#allocation0], 178
    %65 = vst.msk [vmem:[%s64] sm:$0xc0] %vm57, %v56
    %s66 = scalar_lea.vmem %s0, 48
    %v67 = vld [vmem:[%s66] sm:$0xff]
    %vm68 = vcmask 64512
    %s69 = scalar_lea.vmem [#allocation0], 192
    %70 = vst.msk [vmem:[%s69] sm:$0x3] %vm68, %v67
    %s71 = scalar_lea.vmem [#allocation0], 198
    %72 = vst.msk [vmem:[%s71] sm:$0xc] %vm68, %v67
    %s73 = scalar_lea.vmem [#allocation0], 204
    %74 = vst.msk [vmem:[%s73] sm:$0x30] %vm68, %v67
    %s75 = scalar_lea.vmem [#allocation0], 210
    %76 = vst.msk [vmem:[%s75] sm:$0xc0] %vm68, %v67
    %s77 = scalar_lea.vmem %s0, 56
    %v78 = vld [vmem:[%s77] sm:$0xff]
    %vm79 = vcmask 64512
    %s80 = scalar_lea.vmem [#allocation0], 224
    %81 = vst.msk [vmem:[%s80] sm:$0x3] %vm79, %v78
    %s82 = scalar_lea.vmem [#allocation0], 230
    %83 = vst.msk [vmem:[%s82] sm:$0xc] %vm79, %v78
    %s84 = scalar_lea.vmem [#allocation0], 236
    %85 = vst.msk [vmem:[%s84] sm:$0x30] %vm79, %v78
    %s86 = scalar_lea.vmem [#allocation0], 242
    %87 = vst.msk [vmem:[%s86] sm:$0xc0] %vm79, %v78
    %s88 = scalar_lea.vmem %s0, 64
    %v89 = vld [vmem:[%s88] sm:$0xf]
    %vm90 = vcmask 64512
    %s91 = scalar_lea.vmem [#allocation0], 256
    %92 = vst.msk [vmem:[%s91] sm:$0x3] %vm90, %v89
    %s93 = scalar_lea.vmem [#allocation0], 262
    %94 = vst.msk [vmem:[%s93] sm:$0xc] %vm90, %v89
    %s96 = sshllo.u32 0, 2
    %v98 = vld [vmem:[#allocation0] sm:%s96]
    %s99 = sshllo.u32 0, 2
    %100 = vst [vmem:[%s1] sm:%s99] %v98
    %s101 = scalar_lea.vmem [#allocation0], 8
    %v102 = vld [vmem:[%s101] sm:%s96]
    %s103 = sshllo.u32 0, 2
    %s104 = scalar_lea.vmem %s1, 2
    %105 = vst [vmem:[%s104] sm:%s103] %v102
    %s106 = scalar_lea.vmem [#allocation0], 16
    %v107 = vld [vmem:[%s106] sm:%s96]
    %s108 = sshllo.u32 0, 2
    %s109 = smul.addr 2, 2
    %s110 = scalar_lea.vmem %s1, %s109
    %111 = vst [vmem:[%s110] sm:%s108] %v107
    %s112 = scalar_lea.vmem [#allocation0], 24
    %v113 = vld [vmem:[%s112] sm:%s96]
    %s114 = sshllo.u32 0, 2
    %s115 = smul.addr 2, 3
    %s116 = scalar_lea.vmem %s1, %s115
    %117 = vst [vmem:[%s116] sm:%s114] %v113
    %s118 = scalar_lea.vmem [#allocation0], 32
    %v119 = vld [vmem:[%s118] sm:%s96]
    %s120 = sshllo.u32 0, 2
    %s121 = smul.addr 2, 4
    %s122 = scalar_lea.vmem %s1, %s121
    %123 = vst [vmem:[%s122] sm:%s120] %v119
    %s124 = scalar_lea.vmem [#allocation0], 40
    %v125 = vld [vmem:[%s124] sm:%s96]
    %s126 = sshllo.u32 0, 2
    %s127 = smul.addr 2, 5
    %s128 = scalar_lea.vmem %s1, %s127
    %129 = vst [vmem:[%s128] sm:%s126] %v125
    %s130 = scalar_lea.vmem [#allocation0], 48
    %v131 = vld [vmem:[%s130] sm:%s96]
    %s132 = sshllo.u32 0, 2
    %s133 = smul.addr 2, 6
    %s134 = scalar_lea.vmem %s1, %s133
    %135 = vst [vmem:[%s134] sm:%s132] %v131
    %s136 = scalar_lea.vmem [#allocation0], 56
    %v137 = vld [vmem:[%s136] sm:%s96]
    %s138 = sshllo.u32 0, 2
    %s139 = smul.addr 2, 7
    %s140 = scalar_lea.vmem %s1, %s139
    %141 = vst [vmem:[%s140] sm:%s138] %v137
    %s142 = scalar_lea.vmem [#allocation0], 64
    %v143 = vld [vmem:[%s142] sm:%s96]
    %s144 = sshllo.u32 0, 2
    %s145 = smul.addr 2, 8
    %s146 = scalar_lea.vmem %s1, %s145
    %147 = vst [vmem:[%s146] sm:%s144] %v143
    %s148 = scalar_lea.vmem [#allocation0], 72
    %v149 = vld [vmem:[%s148] sm:%s96]
    %s150 = sshllo.u32 0, 2
    %s151 = smul.addr 2, 9
    %s152 = scalar_lea.vmem %s1, %s151
    %153 = vst [vmem:[%s152] sm:%s150] %v149
    %s154 = scalar_lea.vmem [#allocation0], 80
    %v155 = vld [vmem:[%s154] sm:%s96]
    %s156 = sshllo.u32 0, 2
    %s157 = smul.addr 2, 10
    %s158 = scalar_lea.vmem %s1, %s157
    %159 = vst [vmem:[%s158] sm:%s156] %v155
    %s160 = scalar_lea.vmem [#allocation0], 88
    %v161 = vld [vmem:[%s160] sm:%s96]
    %s162 = sshllo.u32 0, 2
    %s163 = smul.addr 2, 11
    %s164 = scalar_lea.vmem %s1, %s163
    %165 = vst [vmem:[%s164] sm:%s162] %v161
    %s166 = scalar_lea.vmem [#allocation0], 96
    %v167 = vld [vmem:[%s166] sm:%s96]
    %s168 = sshllo.u32 0, 2
    %s169 = smul.addr 2, 12
    %s170 = scalar_lea.vmem %s1, %s169
    %171 = vst [vmem:[%s170] sm:%s168] %v167
    %s172 = scalar_lea.vmem [#allocation0], 104
    %v173 = vld [vmem:[%s172] sm:%s96]
    %s174 = sshllo.u32 0, 2
    %s175 = smul.addr 2, 13
    %s176 = scalar_lea.vmem %s1, %s175
    %177 = vst [vmem:[%s176] sm:%s174] %v173
    %s178 = scalar_lea.vmem [#allocation0], 112
    %v179 = vld [vmem:[%s178] sm:%s96]
    %s180 = sshllo.u32 0, 2
    %s181 = smul.addr 2, 14
    %s182 = scalar_lea.vmem %s1, %s181
    %183 = vst [vmem:[%s182] sm:%s180] %v179
    %s184 = scalar_lea.vmem [#allocation0], 120
    %v185 = vld [vmem:[%s184] sm:%s96]
    %s186 = sshllo.u32 0, 2
    %s187 = smul.addr 2, 15
    %s188 = scalar_lea.vmem %s1, %s187
    %189 = vst [vmem:[%s188] sm:%s186] %v185
    %s190 = scalar_lea.vmem [#allocation0], 128
    %v191 = vld [vmem:[%s190] sm:%s96]
    %s192 = sshllo.u32 0, 2
    %s193 = smul.addr 2, 16
    %s194 = scalar_lea.vmem %s1, %s193
    %195 = vst [vmem:[%s194] sm:%s192] %v191
    %s196 = scalar_lea.vmem [#allocation0], 136
    %v197 = vld [vmem:[%s196] sm:%s96]
    %s198 = sshllo.u32 0, 2
    %s199 = smul.addr 2, 17
    %s200 = scalar_lea.vmem %s1, %s199
    %201 = vst [vmem:[%s200] sm:%s198] %v197
    %s202 = scalar_lea.vmem [#allocation0], 144
    %v203 = vld [vmem:[%s202] sm:%s96]
    %s204 = sshllo.u32 0, 2
    %s205 = smul.addr 2, 18
    %s206 = scalar_lea.vmem %s1, %s205
    %207 = vst [vmem:[%s206] sm:%s204] %v203
    %s208 = scalar_lea.vmem [#allocation0], 152
    %v209 = vld [vmem:[%s208] sm:%s96]
    %s210 = sshllo.u32 0, 2
    %s211 = smul.addr 2, 19
    %s212 = scalar_lea.vmem %s1, %s211
    %213 = vst [vmem:[%s212] sm:%s210] %v209
    %s214 = scalar_lea.vmem [#allocation0], 160
    %v215 = vld [vmem:[%s214] sm:%s96]
    %s216 = sshllo.u32 0, 2
    %s217 = smul.addr 2, 20
    %s218 = scalar_lea.vmem %s1, %s217
    %219 = vst [vmem:[%s218] sm:%s216] %v215
    %s220 = scalar_lea.vmem [#allocation0], 168
    %v221 = vld [vmem:[%s220] sm:%s96]
    %s222 = sshllo.u32 0, 2
    %s223 = smul.addr 2, 21
    %s224 = scalar_lea.vmem %s1, %s223
    %225 = vst [vmem:[%s224] sm:%s222] %v221
    %s226 = scalar_lea.vmem [#allocation0], 176
    %v227 = vld [vmem:[%s226] sm:%s96]
    %s228 = sshllo.u32 0, 2
    %s229 = smul.addr 2, 22
    %s230 = scalar_lea.vmem %s1, %s229
    %231 = vst [vmem:[%s230] sm:%s228] %v227
    %s232 = scalar_lea.vmem [#allocation0], 184
    %v233 = vld [vmem:[%s232] sm:%s96]
    %s234 = sshllo.u32 0, 2
    %s235 = smul.addr 2, 23
    %s236 = scalar_lea.vmem %s1, %s235
    %237 = vst [vmem:[%s236] sm:%s234] %v233
    %s238 = scalar_lea.vmem [#allocation0], 192
    %v239 = vld [vmem:[%s238] sm:%s96]
    %s240 = sshllo.u32 0, 2
    %s241 = smul.addr 2, 24
    %s242 = scalar_lea.vmem %s1, %s241
    %243 = vst [vmem:[%s242] sm:%s240] %v239
    %s244 = scalar_lea.vmem [#allocation0], 200
    %v245 = vld [vmem:[%s244] sm:%s96]
    %s246 = sshllo.u32 0, 2
    %s247 = smul.addr 2, 25
    %s248 = scalar_lea.vmem %s1, %s247
    %249 = vst [vmem:[%s248] sm:%s246] %v245
    %s250 = scalar_lea.vmem [#allocation0], 208
    %v251 = vld [vmem:[%s250] sm:%s96]
    %s252 = sshllo.u32 0, 2
    %s253 = smul.addr 2, 26
    %s254 = scalar_lea.vmem %s1, %s253
    %255 = vst [vmem:[%s254] sm:%s252] %v251
    %s256 = scalar_lea.vmem [#allocation0], 216
    %v257 = vld [vmem:[%s256] sm:%s96]
    %s258 = sshllo.u32 0, 2
    %s259 = smul.addr 2, 27
    %s260 = scalar_lea.vmem %s1, %s259
    %261 = vst [vmem:[%s260] sm:%s258] %v257
    %s262 = scalar_lea.vmem [#allocation0], 224
    %v263 = vld [vmem:[%s262] sm:%s96]
    %s264 = sshllo.u32 0, 2
    %s265 = smul.addr 2, 28
    %s266 = scalar_lea.vmem %s1, %s265
    %267 = vst [vmem:[%s266] sm:%s264] %v263
    %s268 = scalar_lea.vmem [#allocation0], 232
    %v269 = vld [vmem:[%s268] sm:%s96]
    %s270 = sshllo.u32 0, 2
    %s271 = smul.addr 2, 29
    %s272 = scalar_lea.vmem %s1, %s271
    %273 = vst [vmem:[%s272] sm:%s270] %v269
    %s274 = scalar_lea.vmem [#allocation0], 240
    %v275 = vld [vmem:[%s274] sm:%s96]
    %s276 = sshllo.u32 0, 2
    %s277 = smul.addr 2, 30
    %s278 = scalar_lea.vmem %s1, %s277
    %279 = vst [vmem:[%s278] sm:%s276] %v275
    %s280 = scalar_lea.vmem [#allocation0], 248
    %v281 = vld [vmem:[%s280] sm:%s96]
    %s282 = sshllo.u32 0, 2
    %s283 = smul.addr 2, 31
    %s284 = scalar_lea.vmem %s1, %s283
    %285 = vst [vmem:[%s284] sm:%s282] %v281
    %s286 = scalar_lea.vmem [#allocation0], 256
    %v287 = vld [vmem:[%s286] sm:%s96]
    %s288 = sshllo.u32 0, 2
    %s289 = smul.addr 2, 32
    %s290 = scalar_lea.vmem %s1, %s289
    %291 = vst [vmem:[%s290] sm:%s288] %v287
    %s292 = scalar_lea.vmem [#allocation0], 264
    %v293 = vld [vmem:[%s292] sm:%s96]
    %s294 = sshllo.u32 0, 2
    %s295 = smul.addr 2, 33
    %s296 = scalar_lea.vmem %s1, %s295
    %297 = vst [vmem:[%s296] sm:%s294] %v293

// kernel: _lambda_.26
$region0: #{_lambda_.26}
  #allocation0 [shape = 'u32[]', space=smem, size = 0x4, offset = 0x4, fixed_abs, tag = 'smem constant byte address 0x4 - core index']
  #allocation1 [shape = 'u32[144,128]{1,0:T(1,128)}', space=vmem, size = 0x12000, scoped, tag = 'internal scratch']
  %s0 = inlined_call_operand.vmem [shape: bf16[1,72,68], index: 0, kind: input, shape index: {}]
  %s1 = inlined_call_operand.vmem [shape: bf16[1,8,72], index: 1, kind: input, shape index: {}]
  %s2 = inlined_call_operand.vmem [shape: f32[1,8,1], index: 2, kind: input, shape index: {}]
  %s3 = inlined_call_operand.vmem [shape: f32[1,8,68], index: 3, kind: output, shape index: {}]
  %s4 = sld [smem:[#allocation0]]
  $region22: #{_lambda_.26} parent=0
    _
  %s6 = ssub.s32 1, %s4
  %s7 = scalar_select 0, %s6, %s4
  // Predicated region
  $region2: #{_lambda_.26} parent=0 // pred_check
    _
  $region3: #{_lambda_.26} parent=0 // pred_check_branch
    %9 = sbr.rel (0) target = $region5
  $region4: #{_lambda_.26} parent=0 // pred_region
    _
  $region5: #{_lambda_.26} parent=0 // pred_fallthru
    _
  // Predicated region
  $region6: #{_lambda_.26} parent=0 // pred_check
    _
  $region7: #{_lambda_.26} parent=0 // pred_check_branch
    %11 = sbr.rel (0) target = $region9
  $region8: #{_lambda_.26} parent=0 // pred_region
    _
  $region9: #{_lambda_.26} parent=0 // pred_fallthru
    _
  // Predicated region
  $region10: #{_lambda_.26} parent=0 // pred_check
    _
  $region11: #{_lambda_.26} parent=0 // pred_check_branch
    %13 = sbr.rel (0) target = $region13
  $region12: #{_lambda_.26} parent=0 // pred_region
    _
  $region13: #{_lambda_.26} parent=0 // pred_fallthru
    _
  %v15 = vld [vmem:[%s1] sm:$0xf]
  %v16 = vld [vmem:[%s0] sm:$0xf]
  %v17 = vld [vmem:[%s0 + $0x4] sm:$0xf]
  %v18 = vld [vmem:[%s0 + $0x8] sm:$0xf]
  %v19 = vld [vmem:[%s0 + $0xc] sm:$0xf]
  %v20 = vld [vmem:[%s0 + $0x10] sm:$0xf]
  %v21 = vld [vmem:[%s0 + $0x14] sm:$0xf]
  %v22 = vld [vmem:[%s0 + $0x18] sm:$0xf]
  %v23 = vld [vmem:[%s0 + $0x1c] sm:$0xf]
  %v24 = vld [vmem:[%s0 + $0x20] sm:$0xf]
  %v25 = vld [vmem:[%s2] sm:$0xff]
  %27 = vset.pattern.permute.xlu0 0
  %28 = vperm.xlu0 %27, %v25
  %v29 = vpop.permute.xlu0 %28
  %v40 = vunpack.c.l.b16 %v16
  %v41 = vunpack.c.l.b16 %v17
  %v42 = vunpack.c.l.b16 %v18
  %v43 = vunpack.c.l.b16 %v19
  %v44 = vunpack.c.l.b16 %v20
  %v45 = vunpack.c.l.b16 %v21
  %v46 = vunpack.c.l.b16 %v22
  %v47 = vunpack.c.l.b16 %v23
  %v48 = vunpack.c.l.b16 %v24
  %v49 = vpack.c.b16 %v41, %v40
  %v50 = vpack.c.b16 %v43, %v42
  %v51 = vpack.c.b16 %v45, %v44
  %v52 = vpack.c.b16 %v47, %v46
  %v53 = vpack.c.b16 %v48, %v48
  %vm58 = vcmask 588800
  %v60 = vsel %vm58, %v15, 0
  %vm62 = vcmask 1043456
  %v64 = vsel %vm62, %v53, 0
  %66 = vmatprep.subr.bf16.mxu0 0
  %67 = vmatpush1.bf16.msra.mxu0 %v49
  %68 = vmatprep.subr.bf16.mxu0 0
  %69 = vmatpush1.bf16.msra.mxu0 %v50
  %70 = vmatprep.subr.bf16.mxu0 0
  %71 = vmatpush1.bf16.msra.mxu0 %v51
  %72 = vmatprep.subr.bf16.mxu0 0
  %73 = vmatpush1.bf16.msra.mxu0 %v52
  %74 = vmatprep.subr.bf16.mxu0 0
  %75 = vmatpush1.bf16.msra.mxu0 %v64
  %76 = vmatprep.subr.bf16.mxu0 0
  %77 = vmatpush1.bf16.msra.mxu0 0
  %78 = vmatprep.subr.bf16.mxu0 0
  %79 = vmatpush1.bf16.msra.mxu0 0
  %80 = vmatprep.subr.bf16.mxu0 0
  %81 = vmatpush1.bf16.msra.mxu0 0
  %82 = vmatprep.subr.bf16.mxu0 0
  %83 = vmatpush1.bf16.msra.mxu0 0
  %84 = vmatprep.subr.bf16.mxu0 0
  %85 = vmatpush1.bf16.msra.mxu0 0
  %86 = vmatprep.subr.bf16.mxu0 0
  %87 = vmatpush1.bf16.msra.mxu0 0
  %88 = vmatprep.subr.bf16.mxu0 0
  %89 = vmatpush1.bf16.msra.mxu0 0
  %90 = vmatprep.subr.bf16.mxu0 0
  %91 = vmatpush1.bf16.msra.mxu0 0
  %92 = vmatprep.subr.bf16.mxu0 0
  %93 = vmatpush1.bf16.msra.mxu0 0
  %94 = vmatprep.subr.bf16.mxu0 0
  %95 = vmatpush1.bf16.msra.mxu0 0
  %96 = vmatprep.subr.bf16.mxu0 0
  %97 = vmatpush1.bf16.msra.mxu0 0
  %98 = vmatprep.mubr.bf16.mxu0 0
  %99 = vmatmul.mubr.bf16.gmra.mrb[0].mxu0 %v60
  %v100 = vpop.f32.mrb[0].mxu0
  %v101 = vadd.f32 %v29, %v100
  %v102 = vpop.f32.mrb[0].mxu0
  %v103 = vpop.f32.mrb[0].mxu0
  %v104 = vpop.f32.mrb[0].mxu0
  %105 = vdwg.mxu0
  %vm106 = vcmp.ge.f32.partialorder %v101, 0.0
  %v107 = vmul.f32 %v101, 0.1
  %v108 = vsel %vm106, %v101, %v107
  %vm109 = vcmask 556032
  %110 = vst.msk [vmem:[%s3] sm:$0xff] %vm109, %v108
  // Predicated region
  $region14: #{_lambda_.26} parent=0 // pred_check
    _
  $region15: #{_lambda_.26} parent=0 // pred_check_branch
    %112 = sbr.rel (0) target = $region17
  $region16: #{_lambda_.26} parent=0 // pred_region
    _
  $region17: #{_lambda_.26} parent=0 // pred_fallthru
    _
  // Predicated region
  $region18: #{_lambda_.26} parent=0 // pred_check
    _
  $region19: #{_lambda_.26} parent=0 // pred_check_branch
    %114 = sbr.rel (0) target = $region21
  $region20: #{_lambda_.26} parent=0 // pred_region
    _
  $region21: #{_lambda_.26} parent=0 // pred_fallthru
    _

// kernel: squeeze.39
$region0: #{squeeze.39}
  %s0 = inlined_call_operand.vmem [shape: f32[68], index: 0, kind: input, shape index: {}]
  %s1 = inlined_call_operand.vmem [shape: f32[2,1,17,2], index: 1, kind: output, shape index: {}]
  $region1: #{squeeze.39} parent=0
    #allocation0 [shape = 'u8[4096]{0}', space=vmem, size = 0x1000, scoped, tag = 'scoped mem for input reshape']
    %s3 = sshllo.u32 0, 1
    %v4 = vld [vmem:[%s0] sm:%s3]
    %5 = vst [vmem:[#allocation0] sm:%s3] %v4
    %v6 = vld [vmem:[#allocation0] sm:$0x1]
    %vm7 = vcmask 15360
    %8 = vst.msk [vmem:[%s1] sm:$0x1] %vm7, %v6
    %v9 = vld [vmem:[#allocation0] sm:$0x1]
    %10 = vrot.lane.b32.xlu0 %v9, 126
    %v11 = vpop.permute.xlu0 %10
    %vm12 = vcmask 15360
    %s13 = scalar_lea.vmem %s1, 1
    %14 = vst.msk [vmem:[%s13] sm:$0x1] %vm12, %v11
    %v15 = vld [vmem:[#allocation0] sm:$0x1]
    %16 = vrot.lane.b32.xlu0 %v15, 124
    %v17 = vpop.permute.xlu0 %16
    %vm18 = vcmask 15360
    %s19 = scalar_lea.vmem %s1, 2
    %20 = vst.msk [vmem:[%s19] sm:$0x1] %vm18, %v17
    %v21 = vld [vmem:[#allocation0] sm:$0x1]
    %22 = vrot.lane.b32.xlu0 %v21, 122
    %v23 = vpop.permute.xlu0 %22
    %vm24 = vcmask 15360
    %s25 = scalar_lea.vmem %s1, 3
    %26 = vst.msk [vmem:[%s25] sm:$0x1] %vm24, %v23
    %v27 = vld [vmem:[#allocation0] sm:$0x1]
    %28 = vrot.lane.b32.xlu0 %v27, 120
    %v29 = vpop.permute.xlu0 %28
    %vm30 = vcmask 15360
    %s31 = scalar_lea.vmem %s1, 4
    %32 = vst.msk [vmem:[%s31] sm:$0x1] %vm30, %v29
    %v33 = vld [vmem:[#allocation0] sm:$0x1]
    %34 = vrot.lane.b32.xlu0 %v33, 118
    %v35 = vpop.permute.xlu0 %34
    %vm36 = vcmask 15360
    %s37 = scalar_lea.vmem %s1, 5
    %38 = vst.msk [vmem:[%s37] sm:$0x1] %vm36, %v35
    %v39 = vld [vmem:[#allocation0] sm:$0x1]
    %40 = vrot.lane.b32.xlu0 %v39, 116
    %v41 = vpop.permute.xlu0 %40
    %vm42 = vcmask 15360
    %s43 = scalar_lea.vmem %s1, 6
    %44 = vst.msk [vmem:[%s43] sm:$0x1] %vm42, %v41
    %v45 = vld [vmem:[#allocation0] sm:$0x1]
    %46 = vrot.lane.b32.xlu0 %v45, 114
    %v47 = vpop.permute.xlu0 %46
    %vm48 = vcmask 15360
    %s49 = scalar_lea.vmem %s1, 7
    %50 = vst.msk [vmem:[%s49] sm:$0x1] %vm48, %v47
    %v51 = vld [vmem:[#allocation0] sm:$0x1]
    %52 = vrot.lane.b32.xlu0 %v51, 112
    %v53 = vpop.permute.xlu0 %52
    %vm54 = vcmask 15360
    %s55 = scalar_lea.vmem %s1, 8
    %56 = vst.msk [vmem:[%s55] sm:$0x1] %vm54, %v53
    %v57 = vld [vmem:[#allocation0] sm:$0x1]
    %58 = vrot.lane.b32.xlu0 %v57, 110
    %v59 = vpop.permute.xlu0 %58
    %vm60 = vcmask 15360
    %s61 = scalar_lea.vmem %s1, 9
    %62 = vst.msk [vmem:[%s61] sm:$0x1] %vm60, %v59
    %v63 = vld [vmem:[#allocation0] sm:$0x1]
    %64 = vrot.lane.b32.xlu0 %v63, 108
    %v65 = vpop.permute.xlu0 %64
    %vm66 = vcmask 15360
    %s67 = scalar_lea.vmem %s1, 10
    %68 = vst.msk [vmem:[%s67] sm:$0x1] %vm66, %v65
    %v69 = vld [vmem:[#allocation0] sm:$0x1]
    %70 = vrot.lane.b32.xlu0 %v69, 106
    %v71 = vpop.permute.xlu0 %70
    %vm72 = vcmask 15360
    %s73 = scalar_lea.vmem %s1, 11
    %74 = vst.msk [vmem:[%s73] sm:$0x1] %vm72, %v71
    %v75 = vld [vmem:[#allocation0] sm:$0x1]
    %76 = vrot.lane.b32.xlu0 %v75, 104
    %v77 = vpop.permute.xlu0 %76
    %vm78 = vcmask 15360
    %s79 = scalar_lea.vmem %s1, 12
    %80 = vst.msk [vmem:[%s79] sm:$0x1] %vm78, %v77
    %v81 = vld [vmem:[#allocation0] sm:$0x1]
    %82 = vrot.lane.b32.xlu0 %v81, 102
    %v83 = vpop.permute.xlu0 %82
    %vm84 = vcmask 15360
    %s85 = scalar_lea.vmem %s1, 13
    %86 = vst.msk [vmem:[%s85] sm:$0x1] %vm84, %v83
    %v87 = vld [vmem:[#allocation0] sm:$0x1]
    %88 = vrot.lane.b32.xlu0 %v87, 100
    %v89 = vpop.permute.xlu0 %88
    %vm90 = vcmask 15360
    %s91 = scalar_lea.vmem %s1, 14
    %92 = vst.msk [vmem:[%s91] sm:$0x1] %vm90, %v89
    %v93 = vld [vmem:[#allocation0] sm:$0x1]
    %94 = vrot.lane.b32.xlu0 %v93, 98
    %v95 = vpop.permute.xlu0 %94
    %vm96 = vcmask 15360
    %s97 = scalar_lea.vmem %s1, 15
    %98 = vst.msk [vmem:[%s97] sm:$0x1] %vm96, %v95
    %v99 = vld [vmem:[#allocation0] sm:$0x1]
    %100 = vrot.lane.b32.xlu0 %v99, 96
    %v101 = vpop.permute.xlu0 %100
    %vm102 = vcmask 15360
    %s103 = scalar_lea.vmem %s1, 16
    %104 = vst.msk [vmem:[%s103] sm:$0x1] %vm102, %v101
    %v105 = vld [vmem:[#allocation0] sm:$0x1]
    %106 = vrot.lane.b32.xlu0 %v105, 94
    %v107 = vpop.permute.xlu0 %106
    %vm108 = vcmask 15360
    %s109 = scalar_lea.vmem %s1, 24
    %110 = vst.msk [vmem:[%s109] sm:$0x1] %vm108, %v107
    %v111 = vld [vmem:[#allocation0] sm:$0x1]
    %112 = vrot.lane.b32.xlu0 %v111, 92
    %v113 = vpop.permute.xlu0 %112
    %vm114 = vcmask 15360
    %s115 = scalar_lea.vmem %s1, 25
    %116 = vst.msk [vmem:[%s115] sm:$0x1] %vm114, %v113
    %v117 = vld [vmem:[#allocation0] sm:$0x1]
    %118 = vrot.lane.b32.xlu0 %v117, 90
    %v119 = vpop.permute.xlu0 %118
    %vm120 = vcmask 15360
    %s121 = scalar_lea.vmem %s1, 26
    %122 = vst.msk [vmem:[%s121] sm:$0x1] %vm120, %v119
    %v123 = vld [vmem:[#allocation0] sm:$0x1]
    %124 = vrot.lane.b32.xlu0 %v123, 88
    %v125 = vpop.permute.xlu0 %124
    %vm126 = vcmask 15360
    %s127 = scalar_lea.vmem %s1, 27
    %128 = vst.msk [vmem:[%s127] sm:$0x1] %vm126, %v125
    %v129 = vld [vmem:[#allocation0] sm:$0x1]
    %130 = vrot.lane.b32.xlu0 %v129, 86
    %v131 = vpop.permute.xlu0 %130
    %vm132 = vcmask 15360
    %s133 = scalar_lea.vmem %s1, 28
    %134 = vst.msk [vmem:[%s133] sm:$0x1] %vm132, %v131
    %v135 = vld [vmem:[#allocation0] sm:$0x1]
    %136 = vrot.lane.b32.xlu0 %v135, 84
    %v137 = vpop.permute.xlu0 %136
    %vm138 = vcmask 15360
    %s139 = scalar_lea.vmem %s1, 29
    %140 = vst.msk [vmem:[%s139] sm:$0x1] %vm138, %v137
    %v141 = vld [vmem:[#allocation0] sm:$0x1]
    %142 = vrot.lane.b32.xlu0 %v141, 82
    %v143 = vpop.permute.xlu0 %142
    %vm144 = vcmask 15360
    %s145 = scalar_lea.vmem %s1, 30
    %146 = vst.msk [vmem:[%s145] sm:$0x1] %vm144, %v143
    %v147 = vld [vmem:[#allocation0] sm:$0x1]
    %148 = vrot.lane.b32.xlu0 %v147, 80
    %v149 = vpop.permute.xlu0 %148
    %vm150 = vcmask 15360
    %s151 = scalar_lea.vmem %s1, 31
    %152 = vst.msk [vmem:[%s151] sm:$0x1] %vm150, %v149
    %v153 = vld [vmem:[#allocation0] sm:$0x1]
    %154 = vrot.lane.b32.xlu0 %v153, 78
    %v155 = vpop.permute.xlu0 %154
    %vm156 = vcmask 15360
    %s157 = scalar_lea.vmem %s1, 32
    %158 = vst.msk [vmem:[%s157] sm:$0x1] %vm156, %v155
    %v159 = vld [vmem:[#allocation0] sm:$0x1]
    %160 = vrot.lane.b32.xlu0 %v159, 76
    %v161 = vpop.permute.xlu0 %160
    %vm162 = vcmask 15360
    %s163 = scalar_lea.vmem %s1, 33
    %164 = vst.msk [vmem:[%s163] sm:$0x1] %vm162, %v161
    %v165 = vld [vmem:[#allocation0] sm:$0x1]
    %166 = vrot.lane.b32.xlu0 %v165, 74
    %v167 = vpop.permute.xlu0 %166
    %vm168 = vcmask 15360
    %s169 = scalar_lea.vmem %s1, 34
    %170 = vst.msk [vmem:[%s169] sm:$0x1] %vm168, %v167
    %v171 = vld [vmem:[#allocation0] sm:$0x1]
    %172 = vrot.lane.b32.xlu0 %v171, 72
    %v173 = vpop.permute.xlu0 %172
    %vm174 = vcmask 15360
    %s175 = scalar_lea.vmem %s1, 35
    %176 = vst.msk [vmem:[%s175] sm:$0x1] %vm174, %v173
    %v177 = vld [vmem:[#allocation0] sm:$0x1]
    %178 = vrot.lane.b32.xlu0 %v177, 70
    %v179 = vpop.permute.xlu0 %178
    %vm180 = vcmask 15360
    %s181 = scalar_lea.vmem %s1, 36
    %182 = vst.msk [vmem:[%s181] sm:$0x1] %vm180, %v179
    %v183 = vld [vmem:[#allocation0] sm:$0x1]
    %184 = vrot.lane.b32.xlu0 %v183, 68
    %v185 = vpop.permute.xlu0 %184
    %vm186 = vcmask 15360
    %s187 = scalar_lea.vmem %s1, 37
    %188 = vst.msk [vmem:[%s187] sm:$0x1] %vm186, %v185
    %v189 = vld [vmem:[#allocation0] sm:$0x1]
    %190 = vrot.lane.b32.xlu0 %v189, 66
    %v191 = vpop.permute.xlu0 %190
    %vm192 = vcmask 15360
    %s193 = scalar_lea.vmem %s1, 38
    %194 = vst.msk [vmem:[%s193] sm:$0x1] %vm192, %v191
    %v195 = vld [vmem:[#allocation0] sm:$0x1]
    %196 = vrot.lane.b32.xlu0 %v195, 64
    %v197 = vpop.permute.xlu0 %196
    %vm198 = vcmask 15360
    %s199 = scalar_lea.vmem %s1, 39
    %200 = vst.msk [vmem:[%s199] sm:$0x1] %vm198, %v197
    %v201 = vld [vmem:[#allocation0] sm:$0x1]
    %202 = vrot.lane.b32.xlu0 %v201, 62
    %v203 = vpop.permute.xlu0 %202
    %vm204 = vcmask 15360
    %s205 = scalar_lea.vmem %s1, 40
    %206 = vst.msk [vmem:[%s205] sm:$0x1] %vm204, %v203

// kernel: _lambda_.27
$region0: #{_lambda_.27}
  #allocation0 [shape = 'u32[]', space=smem, size = 0x4, offset = 0x4, fixed_abs, tag = 'smem constant byte address 0x4 - core index']
  #allocation1 [shape = 'u32[144,128]{1,0:T(1,128)}', space=vmem, size = 0x12000, scoped, tag = 'internal scratch']
  #allocation2 [shape = 'f32[1,1,1]{2,1,0:T(1,128)S(1)}', space=vmem, size = 0x200, scoped, tag = 'scoped memory for _lambda_.27']
  %s0 = inlined_call_operand.vmem [shape: bf16[1,72,68], index: 0, kind: input, shape index: {}]
  %s1 = inlined_call_operand.vmem [shape: bf16[1,1,72], index: 1, kind: input, shape index: {}]
  %s2 = inlined_call_operand.<no memory space> [shape: f32[1,1,1], index: 2, kind: input, shape index: {}]
  %s3 = inlined_call_operand.vmem [shape: f32[1,1,68], index: 3, kind: output, shape index: {}]
  %s4 = sld [smem:[#allocation0]]
  $region22: #{_lambda_.27} parent=0
    _
  %s6 = ssub.s32 1, %s4
  %s7 = scalar_select 0, %s6, %s4
  %v8 = vstv %s2
  %9 = vst [vmem:[#allocation2] sm:$0x1] %v8
  // Predicated region
  $region2: #{_lambda_.27} parent=0 // pred_check
    _
  $region3: #{_lambda_.27} parent=0 // pred_check_branch
    %11 = sbr.rel (0) target = $region5
  $region4: #{_lambda_.27} parent=0 // pred_region
    _
  $region5: #{_lambda_.27} parent=0 // pred_fallthru
    _
  // Predicated region
  $region6: #{_lambda_.27} parent=0 // pred_check
    _
  $region7: #{_lambda_.27} parent=0 // pred_check_branch
    %13 = sbr.rel (0) target = $region9
  $region8: #{_lambda_.27} parent=0 // pred_region
    _
  $region9: #{_lambda_.27} parent=0 // pred_fallthru
    _
  // Predicated region
  $region10: #{_lambda_.27} parent=0 // pred_check
    _
  $region11: #{_lambda_.27} parent=0 // pred_check_branch
    %15 = sbr.rel (0) target = $region13
  $region12: #{_lambda_.27} parent=0 // pred_region
    _
  $region13: #{_lambda_.27} parent=0 // pred_fallthru
    _
  %v17 = vld [vmem:[%s1] sm:$0x1]
  %v18 = vld [vmem:[%s0] sm:$0xf]
  %v19 = vld [vmem:[%s0 + $0x4] sm:$0xf]
  %v20 = vld [vmem:[%s0 + $0x8] sm:$0xf]
  %v21 = vld [vmem:[%s0 + $0xc] sm:$0xf]
  %v22 = vld [vmem:[%s0 + $0x10] sm:$0xf]
  %v23 = vld [vmem:[%s0 + $0x14] sm:$0xf]
  %v24 = vld [vmem:[%s0 + $0x18] sm:$0xf]
  %v25 = vld [vmem:[%s0 + $0x1c] sm:$0xf]
  %v26 = vld [vmem:[%s0 + $0x20] sm:$0xf]
  %v27 = vld [vmem:[#allocation2] sm:$0x1]
  %29 = vset.pattern.permute.xlu0 0
  %30 = vperm.xlu0 %29, %v27
  %v31 = vpop.permute.xlu0 %30
  %v33 = vlaneseq
  %v34 = vshrl.u32 %v33, 7
  %v35 = vsub.s32 0, %v34
  %v36 = vrot.slane %v31, %v35
  %v46 = vunpack.c.l.b16 %v18
  %v47 = vunpack.c.l.b16 %v19
  %v48 = vunpack.c.l.b16 %v20
  %v49 = vunpack.c.l.b16 %v21
  %v50 = vunpack.c.l.b16 %v22
  %v51 = vunpack.c.l.b16 %v23
  %v52 = vunpack.c.l.b16 %v24
  %v53 = vunpack.c.l.b16 %v25
  %v54 = vunpack.c.l.b16 %v26
  %v55 = vpack.c.b16 %v47, %v46
  %v56 = vpack.c.b16 %v49, %v48
  %v57 = vpack.c.b16 %v51, %v50
  %v58 = vpack.c.b16 %v53, %v52
  %v59 = vpack.c.b16 %v54, %v54
  %vm64 = vcmask 588800
  %v66 = vsel %vm64, %v17, 0
  %vm68 = vcmask 1043456
  %v70 = vsel %vm68, %v59, 0
  %72 = vmatprep.subr.bf16.mxu0 0
  %73 = vmatpush1.bf16.msra.mxu0 %v55
  %74 = vmatprep.subr.bf16.mxu0 0
  %75 = vmatpush1.bf16.msra.mxu0 %v56
  %76 = vmatprep.subr.bf16.mxu0 0
  %77 = vmatpush1.bf16.msra.mxu0 %v57
  %78 = vmatprep.subr.bf16.mxu0 0
  %79 = vmatpush1.bf16.msra.mxu0 %v58
  %80 = vmatprep.subr.bf16.mxu0 0
  %81 = vmatpush1.bf16.msra.mxu0 %v70
  %82 = vmatprep.subr.bf16.mxu0 0
  %83 = vmatpush1.bf16.msra.mxu0 0
  %84 = vmatprep.subr.bf16.mxu0 0
  %85 = vmatpush1.bf16.msra.mxu0 0
  %86 = vmatprep.subr.bf16.mxu0 0
  %87 = vmatpush1.bf16.msra.mxu0 0
  %88 = vmatprep.subr.bf16.mxu0 0
  %89 = vmatpush1.bf16.msra.mxu0 0
  %90 = vmatprep.subr.bf16.mxu0 0
  %91 = vmatpush1.bf16.msra.mxu0 0
  %92 = vmatprep.subr.bf16.mxu0 0
  %93 = vmatpush1.bf16.msra.mxu0 0
  %94 = vmatprep.subr.bf16.mxu0 0
  %95 = vmatpush1.bf16.msra.mxu0 0
  %96 = vmatprep.subr.bf16.mxu0 0
  %97 = vmatpush1.bf16.msra.mxu0 0
  %98 = vmatprep.subr.bf16.mxu0 0
  %99 = vmatpush1.bf16.msra.mxu0 0
  %100 = vmatprep.subr.bf16.mxu0 0
  %101 = vmatpush1.bf16.msra.mxu0 0
  %102 = vmatprep.subr.bf16.mxu0 0
  %103 = vmatpush1.bf16.msra.mxu0 0
  %104 = vmatprep.mubr.bf16.mxu0 0
  %105 = vmatmul.mubr.bf16.gmra.mrb[0].mxu0 %v66
  %v106 = vpop.f32.mrb[0].mxu0
  %v107 = vadd.f32 %v36, %v106
  %v108 = vpop.f32.mrb[0].mxu0
  %v109 = vpop.f32.mrb[0].mxu0
  %v110 = vpop.f32.mrb[0].mxu0
  %111 = vdwg.mxu0
  %vm112 = vcmask 548864
  %113 = vst.msk [vmem:[%s3] sm:$0x1] %vm112, %v107
  // Predicated region
  $region14: #{_lambda_.27} parent=0 // pred_check
    _
  $region15: #{_lambda_.27} parent=0 // pred_check_branch
    %115 = sbr.rel (0) target = $region17
  $region16: #{_lambda_.27} parent=0 // pred_region
    _
  $region17: #{_lambda_.27} parent=0 // pred_fallthru
    _
  // Predicated region
  $region18: #{_lambda_.27} parent=0 // pred_check
    _
  $region19: #{_lambda_.27} parent=0 // pred_check_branch
    %117 = sbr.rel (0) target = $region21
  $region20: #{_lambda_.27} parent=0 // pred_region
    _
  $region21: #{_lambda_.27} parent=0 // pred_fallthru
    _

// kernel: _lambda_.14
$region0: #{_lambda_.14}
  #allocation0 [shape = 'u32[]', space=smem, size = 0x4, offset = 0x4, fixed_abs, tag = 'smem constant byte address 0x4 - core index']
  #allocation1 [shape = 'u32[144,128]{1,0:T(1,128)}', space=vmem, size = 0x12000, scoped, tag = 'internal scratch']
  %s0 = inlined_call_operand.vmem [shape: bf16[1,64,18], index: 0, kind: input, shape index: {}]
  %s1 = inlined_call_operand.vmem [shape: bf16[1,32,64], index: 1, kind: input, shape index: {}]
  %s2 = inlined_call_operand.vmem [shape: f32[1,32,1], index: 2, kind: input, shape index: {}]
  %s3 = inlined_call_operand.vmem [shape: f32[1,32,18], index: 3, kind: output, shape index: {}]
  %s4 = sld [smem:[#allocation0]]
  $region22: #{_lambda_.14} parent=0
    _
  %s6 = ssub.s32 1, %s4
  %s7 = scalar_select 0, %s6, %s4
  // Predicated region
  $region2: #{_lambda_.14} parent=0 // pred_check
    _
  $region3: #{_lambda_.14} parent=0 // pred_check_branch
    %9 = sbr.rel (0) target = $region5
  $region4: #{_lambda_.14} parent=0 // pred_region
    _
  $region5: #{_lambda_.14} parent=0 // pred_fallthru
    _
  // Predicated region
  $region6: #{_lambda_.14} parent=0 // pred_check
    _
  $region7: #{_lambda_.14} parent=0 // pred_check_branch
    %11 = sbr.rel (0) target = $region9
  $region8: #{_lambda_.14} parent=0 // pred_region
    _
  $region9: #{_lambda_.14} parent=0 // pred_fallthru
    _
  // Predicated region
  $region10: #{_lambda_.14} parent=0 // pred_check
    _
  $region11: #{_lambda_.14} parent=0 // pred_check_branch
    %13 = sbr.rel (0) target = $region13
  $region12: #{_lambda_.14} parent=0 // pred_region
    _
  $region13: #{_lambda_.14} parent=0 // pred_fallthru
    _
  %v15 = vld [vmem:[%s1] sm:$0xf]
  %v16 = vld [vmem:[%s1 + $0x4] sm:$0xf]
  %v17 = vld [vmem:[%s1 + $0x8] sm:$0xf]
  %v18 = vld [vmem:[%s1 + $0xc] sm:$0xf]
  %v19 = vld [vmem:[%s0] sm:$0xf]
  %v20 = vld [vmem:[%s0 + $0x4] sm:$0xf]
  %v21 = vld [vmem:[%s0 + $0x8] sm:$0xf]
  %v22 = vld [vmem:[%s0 + $0xc] sm:$0xf]
  %v23 = vld [vmem:[%s0 + $0x10] sm:$0xf]
  %v24 = vld [vmem:[%s0 + $0x14] sm:$0xf]
  %v25 = vld [vmem:[%s0 + $0x18] sm:$0xf]
  %v26 = vld [vmem:[%s0 + $0x1c] sm:$0xf]
  %v27 = vld [vmem:[%s2] sm:$0xff]
  %v28 = vld [vmem:[%s2 + $0x8] sm:$0xff]
  %v29 = vld [vmem:[%s2 + $0x10] sm:$0xff]
  %v30 = vld [vmem:[%s2 + $0x18] sm:$0xff]
  %32 = vset.pattern.permute.xlu0 0
  %33 = vperm.xlu0 %32, %v27
  %v34 = vpop.permute.xlu0 %33
  %37 = vset.pattern.permute.xlu0 0
  %38 = vperm.xlu0 %37, %v28
  %v39 = vpop.permute.xlu0 %38
  %42 = vset.pattern.permute.xlu0 0
  %43 = vperm.xlu0 %42, %v29
  %v44 = vpop.permute.xlu0 %43
  %47 = vset.pattern.permute.xlu0 0
  %48 = vperm.xlu0 %47, %v30
  %v49 = vpop.permute.xlu0 %48
  %v55 = vunpack.c.l.b16 %v15
  %v56 = vunpack.c.l.b16 %v16
  %v57 = vunpack.c.l.b16 %v17
  %v58 = vunpack.c.l.b16 %v18
  %v59 = vpack.c.b16 %v56, %v55
  %v60 = vpack.c.b16 %v58, %v57
  %v69 = vunpack.c.l.b16 %v19
  %v70 = vunpack.c.l.b16 %v20
  %v71 = vunpack.c.l.b16 %v21
  %v72 = vunpack.c.l.b16 %v22
  %v73 = vunpack.c.l.b16 %v23
  %v74 = vunpack.c.l.b16 %v24
  %v75 = vunpack.c.l.b16 %v25
  %v76 = vunpack.c.l.b16 %v26
  %v77 = vpack.c.b16 %v70, %v69
  %v78 = vpack.c.b16 %v72, %v71
  %v79 = vpack.c.b16 %v74, %v73
  %v80 = vpack.c.b16 %v76, %v75
  %vm85 = vcmask 523264
  %v87 = vsel %vm85, %v59, 0
  %v90 = vsel %vm85, %v60, 0
  %92 = vmatprep.subr.bf16.mxu0 0
  %93 = vmatpush1.bf16.msra.mxu0 %v77
  %94 = vmatprep.subr.bf16.mxu0 0
  %95 = vmatpush1.bf16.msra.mxu0 %v78
  %96 = vmatprep.subr.bf16.mxu0 0
  %97 = vmatpush1.bf16.msra.mxu0 %v79
  %98 = vmatprep.subr.bf16.mxu0 0
  %99 = vmatpush1.bf16.msra.mxu0 %v80
  %100 = vmatprep.subr.bf16.mxu0 0
  %101 = vmatpush1.bf16.msra.mxu0 0
  %102 = vmatprep.subr.bf16.mxu0 0
  %103 = vmatpush1.bf16.msra.mxu0 0
  %104 = vmatprep.subr.bf16.mxu0 0
  %105 = vmatpush1.bf16.msra.mxu0 0
  %106 = vmatprep.subr.bf16.mxu0 0
  %107 = vmatpush1.bf16.msra.mxu0 0
  %108 = vmatprep.subr.bf16.mxu0 0
  %109 = vmatpush1.bf16.msra.mxu0 0
  %110 = vmatprep.subr.bf16.mxu0 0
  %111 = vmatpush1.bf16.msra.mxu0 0
  %112 = vmatprep.subr.bf16.mxu0 0
  %113 = vmatpush1.bf16.msra.mxu0 0
  %114 = vmatprep.subr.bf16.mxu0 0
  %115 = vmatpush1.bf16.msra.mxu0 0
  %116 = vmatprep.subr.bf16.mxu0 0
  %117 = vmatpush1.bf16.msra.mxu0 0
  %118 = vmatprep.subr.bf16.mxu0 0
  %119 = vmatpush1.bf16.msra.mxu0 0
  %120 = vmatprep.subr.bf16.mxu0 0
  %121 = vmatpush1.bf16.msra.mxu0 0
  %122 = vmatprep.subr.bf16.mxu0 0
  %123 = vmatpush1.bf16.msra.mxu0 0
  %124 = vmatprep.mubr.bf16.mxu0 0
  %125 = vmatmul.mubr.bf16.gmra.mrb[0].mxu0 %v87
  %v126 = vpop.f32.mrb[0].mxu0
  %v127 = vadd.f32 %v34, %v126
  %v128 = vpop.f32.mrb[0].mxu0
  %v129 = vpop.f32.mrb[0].mxu0
  %v130 = vadd.f32 %v39, %v129
  %v131 = vpop.f32.mrb[0].mxu0
  %132 = vmatprep.mubr.bf16.mxu0 0
  %133 = vmatmul.mubr.bf16.gmra.mrb[0].mxu0 %v90
  %v134 = vpop.f32.mrb[0].mxu0
  %v135 = vadd.f32 %v44, %v134
  %v136 = vpop.f32.mrb[0].mxu0
  %v137 = vpop.f32.mrb[0].mxu0
  %v138 = vadd.f32 %v49, %v137
  %v139 = vpop.f32.mrb[0].mxu0
  %140 = vdwg.mxu0
  %vm141 = vcmask 146432
  %142 = vst.msk [vmem:[%s3] sm:$0xff] %vm141, %v127
  %143 = vst.msk [vmem:[%s3 + $0x8] sm:$0xff] %vm141, %v130
  %144 = vst.msk [vmem:[%s3 + $0x10] sm:$0xff] %vm141, %v135
  %145 = vst.msk [vmem:[%s3 + $0x18] sm:$0xff] %vm141, %v138
  // Predicated region
  $region14: #{_lambda_.14} parent=0 // pred_check
    _
  $region15: #{_lambda_.14} parent=0 // pred_check_branch
    %147 = sbr.rel (0) target = $region17
  $region16: #{_lambda_.14} parent=0 // pred_region
    _
  $region17: #{_lambda_.14} parent=0 // pred_fallthru
    _
  // Predicated region
  $region18: #{_lambda_.14} parent=0 // pred_check
    _
  $region19: #{_lambda_.14} parent=0 // pred_check_branch
    %149 = sbr.rel (0) target = $region21
  $region20: #{_lambda_.14} parent=0 // pred_region
    _
  $region21: #{_lambda_.14} parent=0 // pred_fallthru
    _

// kernel: _lambda_.15
$region0: #{_lambda_.15}
  #allocation0 [shape = 'u32[]', space=smem, size = 0x4, offset = 0x4, fixed_abs, tag = 'smem constant byte address 0x4 - core index']
  #allocation1 [shape = 'u32[144,128]{1,0:T(1,128)}', space=vmem, size = 0x12000, scoped, tag = 'internal scratch']
  %s0 = inlined_call_operand.vmem [shape: bf16[2,54,144], index: 0, kind: input, shape index: {}]
  %s1 = inlined_call_operand.vmem [shape: bf16[2,2,54], index: 1, kind: input, shape index: {}]
  %s2 = inlined_call_operand.vmem [shape: f32[2,2,1], index: 2, kind: input, shape index: {}]
  %s3 = inlined_call_operand.vmem [shape: f32[2,2,144], index: 3, kind: output, shape index: {}]
  %s4 = sld [smem:[#allocation0]]
  $region45: #{_lambda_.15} parent=0
    _
  %s6 = ssub.s32 1, %s4
  %s7 = scalar_select 0, %s6, %s4
  loop: start=0, step=1, limit=4
  $region2: #{_lambda_.15} parent=0 // loop_pre_header
    _
  $region3: #{_lambda_.15} parent=0 // loop_header
    %s9 = sphi 0, %s13
    %p10 = scmp.ge.s32.totalorder %s9, 4
    %s16 = sphi 0, %s28
    %s17 = sphi 0, %s24
    %s18 = sphi 0, %s16
    %s19 = sphi 0, %s17
    %s20 = sphi 0, %s18
    %s21 = sphi 0, %s19
    %s33 = sphi 0, %s35
    %s36 = sphi 0, %s33
    %s37 = sphi 0, %s36
    %s53 = sphi 0, %s37
    %s59 = sphi 0, %s61
    %s62 = sphi 0, %s59
    %s63 = sphi 0, %s62
    %s79 = sphi 0, %s63
    %s85 = sphi 0, %s87
    %s88 = sphi 0, %s85
    %s89 = sphi 0, %s88
    %s105 = sphi 0, %s89
    %s113 = sphi 0, %s115
    %s116 = sphi 0, %s113
    %s117 = sphi 0, %s116
    %s133 = sphi 0, %s117
  $region4: #{_lambda_.15} parent=0 // loop_header_branch
    %12 = sbr.rel (%p10) target = $region8
  $region5: #{_lambda_.15} parent=0 // loop_body
    %s14 = ssub.s32 %s9, 1
    %s15 = ssub.s32 %s9, 2
    %s22 = sadd.s32 1, %s17
    %p23 = scmp.ge.s32.totalorder %s22, 1
    %s24 = scalar_select %p23, 0, %s22
    %s25 = sadd.s32 1, %s16
    %s26 = scalar_select %p23, %s25, %s16
    %p27 = scmp.ge.s32.totalorder %s26, 2
    %s28 = scalar_select %p27, 0, %s26
    %s29 = ssub.s32 %s16, %s28
    %s30 = ssub.s32 %s17, %s24
    %s31 = sor.u32 %s29, %s30
    %p32 = scmp.eq.s32.totalorder %s31, 0
    %s34 = sadd.s32 %s33, 1
    %s35 = scalar_select %p32, %s33, %s34
    %p38 = pneg %p32
    %p39 = scmp.eq.s32.totalorder %s9, 1
    %p40 = por %p38, %p39
    %p41 = scmp.ne.s32.totalorder %s33, %s36
    %p42 = scmp.eq.s32.totalorder %s9, 0
    %p43 = por %p41, %p42
    %p44 = scmp.ne.s32.totalorder %s33, %s36
    %p45 = scmp.eq.s32.totalorder %s14, 1
    %p46 = por %p44, %p45
    %p47 = scmp.ne.s32.totalorder %s36, %s37
    %p48 = scmp.eq.s32.totalorder %s14, 0
    %p49 = por %p47, %p48
    %p50 = scmp.ne.s32.totalorder %s36, %s37
    %p51 = scmp.eq.s32.totalorder %s15, 1
    %p52 = por %p50, %p51
    %p54 = scmp.ne.s32.totalorder %s37, %s53
    %p55 = scmp.eq.s32.totalorder %s15, 0
    %p56 = por %p54, %p55
    %s57 = ssub.s32 %s16, %s28
    %p58 = scmp.eq.s32.totalorder %s57, 0
    %s60 = sadd.s32 %s59, 1
    %s61 = scalar_select %p58, %s59, %s60
    %p64 = pneg %p58
    %p65 = scmp.eq.s32.totalorder %s9, 1
    %p66 = por %p64, %p65
    %p67 = scmp.ne.s32.totalorder %s59, %s62
    %p68 = scmp.eq.s32.totalorder %s9, 0
    %p69 = por %p67, %p68
    %p70 = scmp.ne.s32.totalorder %s59, %s62
    %p71 = scmp.eq.s32.totalorder %s14, 1
    %p72 = por %p70, %p71
    %p73 = scmp.ne.s32.totalorder %s62, %s63
    %p74 = scmp.eq.s32.totalorder %s14, 0
    %p75 = por %p73, %p74
    %p76 = scmp.ne.s32.totalorder %s62, %s63
    %p77 = scmp.eq.s32.totalorder %s15, 1
    %p78 = por %p76, %p77
    %p80 = scmp.ne.s32.totalorder %s63, %s79
    %p81 = scmp.eq.s32.totalorder %s15, 0
    %p82 = por %p80, %p81
    %s83 = ssub.s32 %s16, %s28
    %p84 = scmp.eq.s32.totalorder %s83, 0
    %s86 = sadd.s32 %s85, 1
    %s87 = scalar_select %p84, %s85, %s86
    %p90 = pneg %p84
    %p91 = scmp.eq.s32.totalorder %s9, 1
    %p92 = por %p90, %p91
    %p93 = scmp.ne.s32.totalorder %s85, %s88
    %p94 = scmp.eq.s32.totalorder %s9, 0
    %p95 = por %p93, %p94
    %p96 = scmp.ne.s32.totalorder %s85, %s88
    %p97 = scmp.eq.s32.totalorder %s14, 1
    %p98 = por %p96, %p97
    %p99 = scmp.ne.s32.totalorder %s88, %s89
    %p100 = scmp.eq.s32.totalorder %s14, 0
    %p101 = por %p99, %p100
    %p102 = scmp.ne.s32.totalorder %s88, %s89
    %p103 = scmp.eq.s32.totalorder %s15, 1
    %p104 = por %p102, %p103
    %p106 = scmp.ne.s32.totalorder %s89, %s105
    %p107 = scmp.eq.s32.totalorder %s15, 0
    %p108 = por %p106, %p107
    %s109 = ssub.s32 %s16, %s28
    %s110 = ssub.s32 %s17, %s24
    %s111 = sor.u32 %s109, %s110
    %p112 = scmp.eq.s32.totalorder %s111, 0
    %s114 = sadd.s32 %s113, 1
    %s115 = scalar_select %p112, %s113, %s114
    %p118 = pneg %p112
    %p119 = scmp.eq.s32.totalorder %s9, 1
    %p120 = por %p118, %p119
    %p121 = scmp.ne.s32.totalorder %s113, %s116
    %p122 = scmp.eq.s32.totalorder %s9, 0
    %p123 = por %p121, %p122
    %p124 = scmp.ne.s32.totalorder %s113, %s116
    %p125 = scmp.eq.s32.totalorder %s14, 1
    %p126 = por %p124, %p125
    %p127 = scmp.ne.s32.totalorder %s116, %s117
    %p128 = scmp.eq.s32.totalorder %s14, 0
    %p129 = por %p127, %p128
    %p130 = scmp.ne.s32.totalorder %s116, %s117
    %p131 = scmp.eq.s32.totalorder %s15, 1
    %p132 = por %p130, %p131
    %p134 = scmp.ne.s32.totalorder %s117, %s133
    %p135 = scmp.eq.s32.totalorder %s15, 0
    %p136 = por %p134, %p135
    %p137 = scmp.le.s32.totalorder 1, %s9
    %p138 = scmp.lt.s32.totalorder %s9, 3
    %p139 = pnand %p137, %p138
    %p140 = pneg %p139
    // Predicated region
    $region9: #{_lambda_.15} parent=5 // pred_check
      _
    $region10: #{_lambda_.15} parent=5 // pred_check_branch
      %142 = sbr.rel (%p139) target = $region12
    $region11: #{_lambda_.15} parent=5 // pred_region
      %s143 = ssub.s32 %s9, 1
    $region12: #{_lambda_.15} parent=5 // pred_fallthru
      _
    %p144 = scmp.lt.s32.totalorder %s9, 2
    // Predicated region
    $region13: #{_lambda_.15} parent=5 // pred_check
      %p145 = pneg %p144
    $region14: #{_lambda_.15} parent=5 // pred_check_branch
      %147 = sbr.rel (%p145) target = $region16
    $region15: #{_lambda_.15} parent=5 // pred_region
      // Predicated region
      $region17: #{_lambda_.15} parent=15 // pred_check
        %p148 = pneg %p43
      $region18: #{_lambda_.15} parent=15 // pred_check_branch
        %150 = sbr.rel (%p148) target = $region20
      $region19: #{_lambda_.15} parent=15 // pred_region
        %s151 = smul.u32 2, %s17
        %p152 = scmp.lt.s32.totalorder %s16, 1
        %s153 = scalar_select %p152, %s16, 1
        %p154 = scmp.lt.s32.totalorder %s151, 1
        %s155 = scalar_select %p154, %s151, 1
        %s156 = smul.addr %s153, 14
        %s157 = sadd.s32 %s155, %s156
        %s158 = smul.addr %s157, 4
        %s159 = scalar_lea.vmem %s0, %s158
        %s160 = smul.u32 2, %s17
      $region20: #{_lambda_.15} parent=15 // pred_fallthru
        _
      // Predicated region
      $region21: #{_lambda_.15} parent=15 // pred_check
        %p161 = pneg %p69
      $region22: #{_lambda_.15} parent=15 // pred_check_branch
        %163 = sbr.rel (%p161) target = $region24
      $region23: #{_lambda_.15} parent=15 // pred_region
        %p164 = scmp.lt.s32.totalorder %s16, 1
        %s165 = scalar_select %p164, %s16, 1
        %s166 = scalar_lea.vmem %s1, %s165
      $region24: #{_lambda_.15} parent=15 // pred_fallthru
        _
      // Predicated region
      $region25: #{_lambda_.15} parent=15 // pred_check
        %p167 = pneg %p95
      $region26: #{_lambda_.15} parent=15 // pred_check_branch
        %169 = sbr.rel (%p167) target = $region28
      $region27: #{_lambda_.15} parent=15 // pred_region
        %p170 = scmp.lt.s32.totalorder %s16, 1
        %s171 = scalar_select %p170, %s16, 1
        %s172 = smul.addr %s171, 2
        %s173 = scalar_lea.vmem %s2, %s172
      $region28: #{_lambda_.15} parent=15 // pred_fallthru
        _
    $region16: #{_lambda_.15} parent=5 // pred_fallthru
      _
    %p174 = scmp.le.s32.totalorder 1, %s9
    %p175 = scmp.lt.s32.totalorder %s9, 3
    %p176 = pnand %p174, %p175
    %p177 = pneg %p176
    // Predicated region
    $region29: #{_lambda_.15} parent=5 // pred_check
      _
    $region30: #{_lambda_.15} parent=5 // pred_check_branch
      %179 = sbr.rel (%p176) target = $region32
    $region31: #{_lambda_.15} parent=5 // pred_region
      %s180 = ssub.s32 %s9, 1
      %s181 = smul.u32 2, %s19
      %p182 = scmp.lt.s32.totalorder %s18, 1
      %s183 = scalar_select %p182, %s18, 1
      %p184 = scmp.lt.s32.totalorder %s181, 1
      %s185 = scalar_select %p184, %s181, 1
      %s186 = smul.addr %s183, 14
      %s187 = sadd.s32 %s185, %s186
      %s188 = smul.addr %s187, 4
      %s189 = scalar_lea.vmem %s0, %s188
      %p190 = pneg %p49
      %p191 = pneg %p46
      %p192 = scmp.lt.s32.totalorder %s18, 1
      %s193 = scalar_select %p192, %s18, 1
      %s194 = scalar_lea.vmem %s1, %s193
      %p195 = pneg %p75
      %p196 = pneg %p72
      %p197 = scmp.lt.s32.totalorder %s18, 1
      %s198 = scalar_select %p197, %s18, 1
      %s199 = smul.addr %s198, 2
      %s200 = scalar_lea.vmem %s2, %s199
      %p201 = pneg %p101
      %p202 = pneg %p98
      %p203 = pneg %p129
      %p204 = pneg %p126
      %s205 = smul.u32 2, %s19
      %p206 = scmp.lt.s32.totalorder %s18, 1
      %s207 = scalar_select %p206, %s18, 1
      %p208 = scmp.lt.s32.totalorder %s205, 1
      %s209 = scalar_select %p208, %s205, 1
      %s210 = smul.addr %s207, 2
      %s211 = sadd.s32 %s209, %s210
      %s212 = smul.addr %s211, 2
      %s213 = scalar_lea.vmem %s3, %s212
      %s214 = smul.u32 2, %s19
      %p215 = scmp.lt.s32.totalorder %s18, 1
      %s216 = scalar_select %p215, %s18, 1
      %p217 = scmp.lt.s32.totalorder %s214, 1
      %s218 = scalar_select %p217, %s214, 1
      %s219 = smul.addr %s216, 14
      %s220 = sadd.s32 %s218, %s219
      %s221 = smul.addr %s220, 4
      %s222 = scalar_lea.vmem %s0, %s221
      %s223 = smul.u32 2, %s19
      %p224 = scmp.lt.s32.totalorder %s18, 1
      %s225 = scalar_select %p224, %s18, 1
      %s226 = scalar_lea.vmem %s1, %s225
      %p227 = scmp.lt.s32.totalorder %s18, 1
      %s228 = scalar_select %p227, %s18, 1
      %s229 = smul.addr %s228, 2
      %s230 = scalar_lea.vmem %s2, %s229
      %s231 = smul.u32 2, %s19
      %p232 = scmp.lt.s32.totalorder %s18, 1
      %s233 = scalar_select %p232, %s18, 1
      %p234 = scmp.lt.s32.totalorder %s231, 1
      %s235 = scalar_select %p234, %s231, 1
      %s236 = smul.addr %s233, 2
      %s237 = sadd.s32 %s235, %s236
      %s238 = smul.addr %s237, 2
      %s239 = scalar_lea.vmem %s3, %s238
      %s240 = smul.u32 2, %s19
      %v242 = vld [vmem:[%s226] sm:$0x1]
      %v243 = vld [vmem:[%s222] sm:$0xff]
      %v244 = vld [vmem:[%s222 + $0x8] sm:$0xff]
      %v245 = vld [vmem:[%s222 + $0x10] sm:$0xff]
      %v246 = vld [vmem:[%s222 + $0x18] sm:$0xff]
      %v247 = vld [vmem:[%s222 + $0x20] sm:$0xff]
      %v248 = vld [vmem:[%s222 + $0x28] sm:$0xff]
      %v249 = vld [vmem:[%s222 + $0x30] sm:$0x77]
      %v250 = vld [vmem:[%s230] sm:$0x3]
      %252 = vset.pattern.permute.xlu0 0
      %253 = vperm.xlu0 %252, %v250
      %v254 = vpop.permute.xlu0 %253
      %v263 = vunpack.c.l.b16 %v243
      %v264 = vunpack.c.h.b16 %v243
      %v265 = vunpack.c.l.b16 %v244
      %v266 = vunpack.c.h.b16 %v244
      %v267 = vunpack.c.l.b16 %v245
      %v268 = vunpack.c.h.b16 %v245
      %v269 = vunpack.c.l.b16 %v246
      %v270 = vunpack.c.h.b16 %v246
      %v271 = vunpack.c.l.b16 %v247
      %v272 = vunpack.c.h.b16 %v247
      %v273 = vunpack.c.l.b16 %v248
      %v274 = vunpack.c.h.b16 %v248
      %v275 = vunpack.c.l.b16 %v249
      %v276 = vunpack.c.h.b16 %v249
      %v277 = vpack.c.b16 %v265, %v263
      %v278 = vpack.c.b16 %v266, %v264
      %v279 = vpack.c.b16 %v269, %v267
      %v280 = vpack.c.b16 %v270, %v268
      %v281 = vpack.c.b16 %v273, %v271
      %v282 = vpack.c.b16 %v274, %v272
      %v283 = vpack.c.b16 %v275, %v275
      %v284 = vpack.c.b16 %v276, %v276
      %vm291 = vcmask 441344
      %v293 = vsel %vm291, %v242, 0
      %vm295 = vcmask 1042432
      %v297 = vsel %vm295, %v283, 0
      %v300 = vsel %vm295, %v284, 0
      %302 = vmatprep.subr.bf16.mxu0 %v278
      %303 = vmatpush1.bf16.msra.mxu0 %v277
      %304 = vmatprep.subr.bf16.mxu0 %v280
      %305 = vmatpush1.bf16.msra.mxu0 %v279
      %306 = vmatprep.subr.bf16.mxu0 %v282
      %307 = vmatpush1.bf16.msra.mxu0 %v281
      %308 = vmatprep.subr.bf16.mxu0 %v300
      %309 = vmatpush1.bf16.msra.mxu0 %v297
      %310 = vmatprep.subr.bf16.mxu0 0
      %311 = vmatpush1.bf16.msra.mxu0 0
      %312 = vmatprep.subr.bf16.mxu0 0
      %313 = vmatpush1.bf16.msra.mxu0 0
      %314 = vmatprep.subr.bf16.mxu0 0
      %315 = vmatpush1.bf16.msra.mxu0 0
      %316 = vmatprep.subr.bf16.mxu0 0
      %317 = vmatpush1.bf16.msra.mxu0 0
      %318 = vmatprep.subr.bf16.mxu0 0
      %319 = vmatpush1.bf16.msra.mxu0 0
      %320 = vmatprep.subr.bf16.mxu0 0
      %321 = vmatpush1.bf16.msra.mxu0 0
      %322 = vmatprep.subr.bf16.mxu0 0
      %323 = vmatpush1.bf16.msra.mxu0 0
      %324 = vmatprep.subr.bf16.mxu0 0
      %325 = vmatpush1.bf16.msra.mxu0 0
      %326 = vmatprep.subr.bf16.mxu0 0
      %327 = vmatpush1.bf16.msra.mxu0 0
      %328 = vmatprep.subr.bf16.mxu0 0
      %329 = vmatpush1.bf16.msra.mxu0 0
      %330 = vmatprep.subr.bf16.mxu0 0
      %331 = vmatpush1.bf16.msra.mxu0 0
      %332 = vmatprep.subr.bf16.mxu0 0
      %333 = vmatpush1.bf16.msra.mxu0 0
      %334 = vmatprep.mubr.bf16.mxu0 0
      %335 = vmatmul.mubr.bf16.gmra.mrb[0].mxu0 %v293
      %v336 = vpop.f32.mrb[0].mxu0
      %v337 = vadd.f32 %v254, %v336
      %v338 = vpop.f32.mrb[0].mxu0
      %v339 = vadd.f32 %v254, %v338
      %v340 = vpop.f32.mrb[0].mxu0
      %v341 = vpop.f32.mrb[0].mxu0
      %342 = vdwg.mxu0
      %v345 = vcombine.low %v337, %v339
      %v347 = vunpack.c.l.s4 1983009808
      %v348 = vunpack.c.0.s8 %v347
      %v349 = vlaneseq
      %v350 = vshrl.u32 %v349, 7
      %v351 = vsub.s32 %v348, %v350
      %v352 = vrot.slane %v345, %v351
      %vm354 = vcmask 1041408
      %vm355 = vcmask 125954
      %vm356 = vmor %vm355, %vm354
      %357 = vst.msk [vmem:[%s239] sm:$0xf] %vm356, %v352
      %s358 = smul.u32 2, %s19
      %p359 = scmp.lt.s32.totalorder %s18, 1
      %s360 = scalar_select %p359, %s18, 1
      %p361 = scmp.lt.s32.totalorder %s358, 1
      %s362 = scalar_select %p361, %s358, 1
      %s363 = smul.addr %s360, 2
      %s364 = sadd.s32 %s362, %s363
      %s365 = smul.addr %s364, 2
      %s366 = scalar_lea.vmem %s3, %s365
      // Predicated region
      $region33: #{_lambda_.15} parent=31 // pred_check
        %p367 = pneg %p126
      $region34: #{_lambda_.15} parent=31 // pred_check_branch
        %369 = sbr.rel (%p367) target = $region36
      $region35: #{_lambda_.15} parent=31 // pred_region
        %s370 = smul.u32 2, %s19
      $region36: #{_lambda_.15} parent=31 // pred_fallthru
        _
    $region32: #{_lambda_.15} parent=5 // pred_fallthru
      _
    %p371 = scmp.le.s32.totalorder 2, %s9
    // Predicated region
    $region37: #{_lambda_.15} parent=5 // pred_check
      %p372 = pneg %p371
    $region38: #{_lambda_.15} parent=5 // pred_check_branch
      %374 = sbr.rel (%p372) target = $region40
    $region39: #{_lambda_.15} parent=5 // pred_region
      %s375 = ssub.s32 %s9, 2
      // Predicated region
      $region41: #{_lambda_.15} parent=39 // pred_check
        %p376 = pneg %p132
      $region42: #{_lambda_.15} parent=39 // pred_check_branch
        %378 = sbr.rel (%p376) target = $region44
      $region43: #{_lambda_.15} parent=39 // pred_region
        %s379 = smul.u32 2, %s21
        %p380 = scmp.lt.s32.totalorder %s20, 1
        %s381 = scalar_select %p380, %s20, 1
        %p382 = scmp.lt.s32.totalorder %s379, 1
        %s383 = scalar_select %p382, %s379, 1
        %s384 = smul.addr %s381, 2
        %s385 = sadd.s32 %s383, %s384
        %s386 = smul.addr %s385, 2
        %s387 = scalar_lea.vmem %s3, %s386
      $region44: #{_lambda_.15} parent=39 // pred_fallthru
        _
    $region40: #{_lambda_.15} parent=5 // pred_fallthru
      _
  $region6: #{_lambda_.15} parent=0 // loop_footer
    %s13 = sadd.s32 1, %s9
  $region7: #{_lambda_.15} parent=0 // loop_footer_branch
    %8 = sbr.rel target = $region3
  $region8: #{_lambda_.15} parent=0 // loop_exit
    _

// kernel: squeeze.3
$region0: #{squeeze.3}
  %s0 = inlined_call_operand.vmem [shape: bf16[1,2,144], index: 0, kind: input, shape index: {}]
  %s1 = inlined_call_operand.vmem [shape: bf16[2,2,9,8], index: 1, kind: output, shape index: {}]
  $region1: #{squeeze.3} parent=0
    #allocation0 [shape = 'u8[32768]{0}', space=vmem, size = 0x8000, scoped, tag = 'scoped mem for output reshape']
    #allocation1 [shape = 'u8[8192]{0}', space=vmem, size = 0x2000, scoped, tag = 'scoped mem for input reshape']
    %s3 = smul.u32 1, 2
    %s4 = sshllo.u32 0, %s3
    %s5 = scalar_lea.vmem %s0, 1
    %s6 = sshrl.u32 %s4, 1
    %s7 = sor.u32 %s4, %s6
    %s8 = sand.u32 %s7, 85
    %s9 = sshrl.u32 %s8, 1
    %s10 = sor.u32 %s8, %s9
    %s11 = sand.u32 51, %s10
    %s12 = sshrl.u32 %s11, 2
    %s13 = sor.u32 %s11, %s12
    %s14 = sand.u32 15, %s13
    %v15 = vld [vmem:[%s5] sm:%s14]
    %v16 = vunpack.c.l.bf16 %v15
    %v17 = vunpack.c.h.bf16 %v15
    %s18 = scalar_lea.vmem [#allocation1], 8
    %19 = vst [vmem:[%s18] sm:%s4] %v16
    %s20 = sshrl.u32 %s4, 1
    %s21 = sor.u32 %s4, %s20
    %s22 = sand.u32 %s21, 85
    %s23 = sshrl.u32 %s22, 1
    %s24 = sor.u32 %s22, %s23
    %s25 = sand.u32 51, %s24
    %s26 = sshrl.u32 %s25, 2
    %s27 = sor.u32 %s25, %s26
    %s28 = sand.u32 15, %s27
    %v29 = vld [vmem:[%s0] sm:%s28]
    %v30 = vunpack.c.l.bf16 %v29
    %v31 = vunpack.c.h.bf16 %v29
    %32 = vst [vmem:[#allocation1] sm:%s4] %v30
    %v33 = vld [vmem:[#allocation1] sm:$0x3]
    %vm34 = vcmask 64512
    %35 = vst.msk [vmem:[#allocation0] sm:$0x1] %vm34, %v33
    %s36 = scalar_lea.vmem [#allocation0], 31
    %37 = vst.msk [vmem:[%s36] sm:$0x2] %vm34, %v33
    %s38 = scalar_lea.vmem [#allocation1], 8
    %v39 = vld [vmem:[%s38] sm:$0x3]
    %vm40 = vcmask 64512
    %s41 = scalar_lea.vmem [#allocation0], 23
    %42 = vst.msk [vmem:[%s41] sm:$0x1] %vm40, %v39
    %s43 = scalar_lea.vmem [#allocation0], 54
    %44 = vst.msk [vmem:[%s43] sm:$0x2] %vm40, %v39
    %v45 = vld.sshfl [vmem:[#allocation1] sm:$0xff pattern:$0x99999180]
    %46 = vrot.lane.b32.xlu0 %v45, 120
    %v47 = vpop.permute.xlu0 %46
    %vm48 = vcmask 64512
    %s49 = scalar_lea.vmem [#allocation0], 1
    %50 = vst.msk [vmem:[%s49] ss:$23 sm:$0x3] %vm48, %v47
    %s51 = scalar_lea.vmem [#allocation0], 4294967283
    %52 = vst.msk [vmem:[%s51] ss:$23 sm:$0xc] %vm48, %v47
    %v53 = vld [vmem:[#allocation1] sm:$0x3]
    %54 = vrot.lane.b32.xlu0 %v53, 112
    %v55 = vpop.permute.xlu0 %54
    %vm56 = vcmask 64512
    %s57 = scalar_lea.vmem [#allocation0], 2
    %58 = vst.msk [vmem:[%s57] sm:$0x1] %vm56, %v55
    %s59 = scalar_lea.vmem [#allocation0], 33
    %60 = vst.msk [vmem:[%s59] sm:$0x2] %vm56, %v55
    %v61 = vld [vmem:[#allocation1] sm:$0x3]
    %62 = vrot.lane.b32.xlu0 %v61, 104
    %v63 = vpop.permute.xlu0 %62
    %vm64 = vcmask 64512
    %s65 = scalar_lea.vmem [#allocation0], 3
    %66 = vst.msk [vmem:[%s65] sm:$0x1] %vm64, %v63
    %s67 = scalar_lea.vmem [#allocation0], 34
    %68 = vst.msk [vmem:[%s67] sm:$0x2] %vm64, %v63
    %v69 = vld [vmem:[#allocation1] sm:$0x3]
    %70 = vrot.lane.b32.xlu0 %v69, 96
    %v71 = vpop.permute.xlu0 %70
    %vm72 = vcmask 64512
    %s73 = scalar_lea.vmem [#allocation0], 4
    %74 = vst.msk [vmem:[%s73] sm:$0x1] %vm72, %v71
    %s75 = scalar_lea.vmem [#allocation0], 35
    %76 = vst.msk [vmem:[%s75] sm:$0x2] %vm72, %v71
    %v77 = vld [vmem:[#allocation1] sm:$0x3]
    %78 = vrot.lane.b32.xlu0 %v77, 88
    %v79 = vpop.permute.xlu0 %78
    %vm80 = vcmask 64512
    %s81 = scalar_lea.vmem [#allocation0], 5
    %82 = vst.msk [vmem:[%s81] sm:$0x1] %vm80, %v79
    %s83 = scalar_lea.vmem [#allocation0], 36
    %84 = vst.msk [vmem:[%s83] sm:$0x2] %vm80, %v79
    %v85 = vld [vmem:[#allocation1] sm:$0x3]
    %86 = vrot.lane.b32.xlu0 %v85, 80
    %v87 = vpop.permute.xlu0 %86
    %vm88 = vcmask 64512
    %s89 = scalar_lea.vmem [#allocation0], 6
    %90 = vst.msk [vmem:[%s89] sm:$0x1] %vm88, %v87
    %s91 = scalar_lea.vmem [#allocation0], 37
    %92 = vst.msk [vmem:[%s91] sm:$0x2] %vm88, %v87
    %v93 = vld [vmem:[#allocation1] sm:$0x3]
    %94 = vrot.lane.b32.xlu0 %v93, 72
    %v95 = vpop.permute.xlu0 %94
    %vm96 = vcmask 64512
    %s97 = scalar_lea.vmem [#allocation0], 7
    %98 = vst.msk [vmem:[%s97] sm:$0x1] %vm96, %v95
    %s99 = scalar_lea.vmem [#allocation0], 38
    %100 = vst.msk [vmem:[%s99] sm:$0x2] %vm96, %v95
    %v101 = vld [vmem:[#allocation1] sm:$0x3]
    %102 = vrot.lane.b32.xlu0 %v101, 64
    %v103 = vpop.permute.xlu0 %102
    %vm104 = vcmask 64512
    %s105 = scalar_lea.vmem [#allocation0], 8
    %106 = vst.msk [vmem:[%s105] sm:$0x1] %vm104, %v103
    %s107 = scalar_lea.vmem [#allocation0], 39
    %108 = vst.msk [vmem:[%s107] sm:$0x2] %vm104, %v103
    %v109 = vld [vmem:[#allocation1] sm:$0x3]
    %110 = vrot.lane.b32.xlu0 %v109, 56
    %v111 = vpop.permute.xlu0 %110
    %vm112 = vcmask 64512
    %s113 = scalar_lea.vmem [#allocation0], 16
    %114 = vst.msk [vmem:[%s113] sm:$0x1] %vm112, %v111
    %s115 = scalar_lea.vmem [#allocation0], 47
    %116 = vst.msk [vmem:[%s115] sm:$0x2] %vm112, %v111
    %v117 = vld [vmem:[#allocation1] sm:$0x3]
    %118 = vrot.lane.b32.xlu0 %v117, 48
    %v119 = vpop.permute.xlu0 %118
    %vm120 = vcmask 64512
    %s121 = scalar_lea.vmem [#allocation0], 17
    %122 = vst.msk [vmem:[%s121] sm:$0x1] %vm120, %v119
    %s123 = scalar_lea.vmem [#allocation0], 48
    %124 = vst.msk [vmem:[%s123] sm:$0x2] %vm120, %v119
    %v125 = vld [vmem:[#allocation1] sm:$0x3]
    %126 = vrot.lane.b32.xlu0 %v125, 40
    %v127 = vpop.permute.xlu0 %126
    %vm128 = vcmask 64512
    %s129 = scalar_lea.vmem [#allocation0], 18
    %130 = vst.msk [vmem:[%s129] sm:$0x1] %vm128, %v127
    %s131 = scalar_lea.vmem [#allocation0], 49
    %132 = vst.msk [vmem:[%s131] sm:$0x2] %vm128, %v127
    %v133 = vld [vmem:[#allocation1] sm:$0x3]
    %134 = vrot.lane.b32.xlu0 %v133, 32
    %v135 = vpop.permute.xlu0 %134
    %vm136 = vcmask 64512
    %s137 = scalar_lea.vmem [#allocation0], 19
    %138 = vst.msk [vmem:[%s137] sm:$0x1] %vm136, %v135
    %s139 = scalar_lea.vmem [#allocation0], 50
    %140 = vst.msk [vmem:[%s139] sm:$0x2] %vm136, %v135
    %v141 = vld [vmem:[#allocation1] sm:$0x3]
    %142 = vrot.lane.b32.xlu0 %v141, 24
    %v143 = vpop.permute.xlu0 %142
    %vm144 = vcmask 64512
    %s145 = scalar_lea.vmem [#allocation0], 20
    %146 = vst.msk [vmem:[%s145] sm:$0x1] %vm144, %v143
    %s147 = scalar_lea.vmem [#allocation0], 51
    %148 = vst.msk [vmem:[%s147] sm:$0x2] %vm144, %v143
    %v149 = vld [vmem:[#allocation1] sm:$0x3]
    %150 = vrot.lane.b32.xlu0 %v149, 16
    %v151 = vpop.permute.xlu0 %150
    %vm152 = vcmask 64512
    %s153 = scalar_lea.vmem [#allocation0], 21
    %154 = vst.msk [vmem:[%s153] sm:$0x1] %vm152, %v151
    %s155 = scalar_lea.vmem [#allocation0], 52
    %156 = vst.msk [vmem:[%s155] sm:$0x2] %vm152, %v151
    %v157 = vld [vmem:[#allocation1] sm:$0x3]
    %158 = vrot.lane.b32.xlu0 %v157, 8
    %v159 = vpop.permute.xlu0 %158
    %vm160 = vcmask 64512
    %s161 = scalar_lea.vmem [#allocation0], 22
    %162 = vst.msk [vmem:[%s161] sm:$0x1] %vm160, %v159
    %s163 = scalar_lea.vmem [#allocation0], 53
    %164 = vst.msk [vmem:[%s163] sm:$0x2] %vm160, %v159
    %s166 = smul.u32 4, 2
    %s167 = sshllo.u32 0, %s166
    %s168 = sshrl.u32 %s166, 1
    %v169 = vld [vmem:[#allocation0] sm:%s167]
    %v170 = vpack.c.bf16 0.0, %v169
    %s171 = sshllo.u32 0, %s168
    %172 = vst [vmem:[%s1] sm:%s171] %v170
    %s173 = scalar_lea.vmem [#allocation0], 8
    %v174 = vld [vmem:[%s173] sm:%s167]
    %v175 = vpack.c.bf16 0.0, %v174
    %s176 = sshllo.u32 0, %s168
    %s177 = scalar_lea.vmem %s1, 4
    %178 = vst [vmem:[%s177] sm:%s176] %v175
    %s179 = scalar_lea.vmem [#allocation0], 16
    %v180 = vld [vmem:[%s179] sm:%s167]
    %v181 = vpack.c.bf16 0.0, %v180
    %s182 = sshllo.u32 0, %s168
    %s183 = smul.addr 4, 2
    %s184 = scalar_lea.vmem %s1, %s183
    %185 = vst [vmem:[%s184] sm:%s182] %v181
    %s186 = scalar_lea.vmem [#allocation0], 24
    %v187 = vld [vmem:[%s186] sm:%s167]
    %v188 = vpack.c.bf16 0.0, %v187
    %s189 = sshllo.u32 0, %s168
    %s190 = smul.addr 4, 3
    %s191 = scalar_lea.vmem %s1, %s190
    %192 = vst [vmem:[%s191] sm:%s189] %v188
    %s193 = scalar_lea.vmem [#allocation0], 32
    %v194 = vld [vmem:[%s193] sm:%s167]
    %v195 = vpack.c.bf16 0.0, %v194
    %s196 = sshllo.u32 0, %s168
    %s197 = smul.addr 4, 4
    %s198 = scalar_lea.vmem %s1, %s197
    %199 = vst [vmem:[%s198] sm:%s196] %v195
    %s200 = scalar_lea.vmem [#allocation0], 40
    %v201 = vld [vmem:[%s200] sm:%s167]
    %v202 = vpack.c.bf16 0.0, %v201
    %s203 = sshllo.u32 0, %s168
    %s204 = smul.addr 4, 5
    %s205 = scalar_lea.vmem %s1, %s204
    %206 = vst [vmem:[%s205] sm:%s203] %v202
    %s207 = scalar_lea.vmem [#allocation0], 48
    %v208 = vld [vmem:[%s207] sm:%s167]
    %v209 = vpack.c.bf16 0.0, %v208
    %s210 = sshllo.u32 0, %s168
    %s211 = smul.addr 4, 6
    %s212 = scalar_lea.vmem %s1, %s211
    %213 = vst [vmem:[%s212] sm:%s210] %v209
    %s214 = scalar_lea.vmem [#allocation0], 56
    %v215 = vld [vmem:[%s214] sm:%s167]
    %v216 = vpack.c.bf16 0.0, %v215
    %s217 = sshllo.u32 0, %s168
    %s218 = smul.addr 4, 7
    %s219 = scalar_lea.vmem %s1, %s218
    %220 = vst [vmem:[%s219] sm:%s217] %v216

// kernel: _lambda_.16
$region0: #{_lambda_.16}
  #allocation0 [shape = 'u32[]', space=smem, size = 0x4, offset = 0x4, fixed_abs, tag = 'smem constant byte address 0x4 - core index']
  #allocation1 [shape = 'u32[144,128]{1,0:T(1,128)}', space=vmem, size = 0x12000, scoped, tag = 'internal scratch']
  %s0 = inlined_call_operand.vmem [shape: bf16[1,54,288], index: 0, kind: input, shape index: {}]
  %s1 = inlined_call_operand.vmem [shape: bf16[1,8,54], index: 1, kind: input, shape index: {}]
  %s2 = inlined_call_operand.vmem [shape: f32[1,8,1], index: 2, kind: input, shape index: {}]
  %s3 = inlined_call_operand.vmem [shape: f32[1,8,288], index: 3, kind: output, shape index: {}]
  %s4 = sld [smem:[#allocation0]]
  $region22: #{_lambda_.16} parent=0
    _
  %s6 = ssub.s32 1, %s4
  %s7 = scalar_select 0, %s6, %s4
  // Predicated region
  $region2: #{_lambda_.16} parent=0 // pred_check
    _
  $region3: #{_lambda_.16} parent=0 // pred_check_branch
    %9 = sbr.rel (0) target = $region5
  $region4: #{_lambda_.16} parent=0 // pred_region
    _
  $region5: #{_lambda_.16} parent=0 // pred_fallthru
    _
  // Predicated region
  $region6: #{_lambda_.16} parent=0 // pred_check
    _
  $region7: #{_lambda_.16} parent=0 // pred_check_branch
    %11 = sbr.rel (0) target = $region9
  $region8: #{_lambda_.16} parent=0 // pred_region
    _
  $region9: #{_lambda_.16} parent=0 // pred_fallthru
    _
  // Predicated region
  $region10: #{_lambda_.16} parent=0 // pred_check
    _
  $region11: #{_lambda_.16} parent=0 // pred_check_branch
    %13 = sbr.rel (0) target = $region13
  $region12: #{_lambda_.16} parent=0 // pred_region
    _
  $region13: #{_lambda_.16} parent=0 // pred_fallthru
    _
  %v15 = vld [vmem:[%s1] sm:$0xf]
  %v16 = vld [vmem:[%s0] sm:$0xff]
  %v17 = vld [vmem:[%s0 + $0x8] sm:$0xf]
  %v18 = vld [vmem:[%s0 + $0xc] sm:$0xff]
  %v19 = vld [vmem:[%s0 + $0x14] sm:$0xf]
  %v20 = vld [vmem:[%s0 + $0x18] sm:$0xff]
  %v21 = vld [vmem:[%s0 + $0x20] sm:$0xf]
  %v22 = vld [vmem:[%s0 + $0x24] sm:$0xff]
  %v23 = vld [vmem:[%s0 + $0x2c] sm:$0xf]
  %v24 = vld [vmem:[%s0 + $0x30] sm:$0xff]
  %v25 = vld [vmem:[%s0 + $0x38] sm:$0xf]
  %v26 = vld [vmem:[%s0 + $0x3c] sm:$0xff]
  %v27 = vld [vmem:[%s0 + $0x44] sm:$0xf]
  %v28 = vld [vmem:[%s0 + $0x48] sm:$0x77]
  %v29 = vld [vmem:[%s0 + $0x50] sm:$0x7]
  %v30 = vld [vmem:[%s2] sm:$0xff]
  %32 = vset.pattern.permute.xlu0 0
  %33 = vperm.xlu0 %32, %v30
  %v34 = vpop.permute.xlu0 %33
  %v50 = vunpack.c.l.b16 %v16
  %v51 = vunpack.c.h.b16 %v16
  %v52 = vunpack.c.l.b16 %v17
  %v53 = vunpack.c.l.b16 %v18
  %v54 = vunpack.c.h.b16 %v18
  %v55 = vunpack.c.l.b16 %v19
  %v56 = vunpack.c.l.b16 %v20
  %v57 = vunpack.c.h.b16 %v20
  %v58 = vunpack.c.l.b16 %v21
  %v59 = vunpack.c.l.b16 %v22
  %v60 = vunpack.c.h.b16 %v22
  %v61 = vunpack.c.l.b16 %v23
  %v62 = vunpack.c.l.b16 %v24
  %v63 = vunpack.c.h.b16 %v24
  %v64 = vunpack.c.l.b16 %v25
  %v65 = vunpack.c.l.b16 %v26
  %v66 = vunpack.c.h.b16 %v26
  %v67 = vunpack.c.l.b16 %v27
  %v68 = vunpack.c.l.b16 %v28
  %v69 = vunpack.c.h.b16 %v28
  %v70 = vunpack.c.l.b16 %v29
  %v71 = vpack.c.b16 %v53, %v50
  %v72 = vpack.c.b16 %v54, %v51
  %v73 = vpack.c.b16 %v55, %v52
  %v74 = vpack.c.b16 %v59, %v56
  %v75 = vpack.c.b16 %v60, %v57
  %v76 = vpack.c.b16 %v61, %v58
  %v77 = vpack.c.b16 %v65, %v62
  %v78 = vpack.c.b16 %v66, %v63
  %v79 = vpack.c.b16 %v67, %v64
  %v80 = vpack.c.b16 %v68, %v68
  %v81 = vpack.c.b16 %v69, %v69
  %v82 = vpack.c.b16 %v70, %v70
  %vm92 = vcmask 441344
  %v94 = vsel %vm92, %v15, 0
  %vm96 = vcmask 1042432
  %v98 = vsel %vm96, %v80, 0
  %v101 = vsel %vm96, %v81, 0
  %v104 = vsel %vm96, %v82, 0
  %106 = vmatprep.subr.bf16.mxu0 %v72
  %107 = vmatpush1.bf16.msra.mxu0 %v71
  %108 = vmatprep.subr.bf16.mxu0 %v75
  %109 = vmatpush1.bf16.msra.mxu0 %v74
  %110 = vmatprep.subr.bf16.mxu0 %v78
  %111 = vmatpush1.bf16.msra.mxu0 %v77
  %112 = vmatprep.subr.bf16.mxu0 %v101
  %113 = vmatpush1.bf16.msra.mxu0 %v98
  %114 = vmatprep.subr.bf16.mxu0 0
  %115 = vmatpush1.bf16.msra.mxu0 0
  %116 = vmatprep.subr.bf16.mxu0 0
  %117 = vmatpush1.bf16.msra.mxu0 0
  %118 = vmatprep.subr.bf16.mxu0 0
  %119 = vmatpush1.bf16.msra.mxu0 0
  %120 = vmatprep.subr.bf16.mxu0 0
  %121 = vmatpush1.bf16.msra.mxu0 0
  %122 = vmatprep.subr.bf16.mxu0 0
  %123 = vmatpush1.bf16.msra.mxu0 0
  %124 = vmatprep.subr.bf16.mxu0 0
  %125 = vmatpush1.bf16.msra.mxu0 0
  %126 = vmatprep.subr.bf16.mxu0 0
  %127 = vmatpush1.bf16.msra.mxu0 0
  %128 = vmatprep.subr.bf16.mxu0 0
  %129 = vmatpush1.bf16.msra.mxu0 0
  %130 = vmatprep.subr.bf16.mxu0 0
  %131 = vmatpush1.bf16.msra.mxu0 0
  %132 = vmatprep.subr.bf16.mxu0 0
  %133 = vmatpush1.bf16.msra.mxu0 0
  %134 = vmatprep.subr.bf16.mxu0 0
  %135 = vmatpush1.bf16.msra.mxu0 0
  %136 = vmatprep.subr.bf16.mxu0 0
  %137 = vmatpush1.bf16.msra.mxu0 0
  %138 = vmatprep.mubr.bf16.mxu0 0
  %139 = vmatmul.mubr.bf16.gmra.mrb[0].mxu0 %v94
  %v140 = vpop.f32.mrb[0].mxu0
  %v141 = vadd.f32 %v34, %v140
  %v142 = vpop.f32.mrb[0].mxu0
  %v143 = vadd.f32 %v34, %v142
  %v144 = vpop.f32.mrb[0].mxu0
  %v145 = vpop.f32.mrb[0].mxu0
  %146 = vdwg.mxu0
  %147 = vmatprep.subr.bf16.mxu0 0
  %148 = vmatpush1.bf16.msra.mxu0 %v73
  %149 = vmatprep.subr.bf16.mxu0 0
  %150 = vmatpush1.bf16.msra.mxu0 %v76
  %151 = vmatprep.subr.bf16.mxu0 0
  %152 = vmatpush1.bf16.msra.mxu0 %v79
  %153 = vmatprep.subr.bf16.mxu0 0
  %154 = vmatpush1.bf16.msra.mxu0 %v104
  %155 = vmatprep.subr.bf16.mxu0 0
  %156 = vmatpush1.bf16.msra.mxu0 0
  %157 = vmatprep.subr.bf16.mxu0 0
  %158 = vmatpush1.bf16.msra.mxu0 0
  %159 = vmatprep.subr.bf16.mxu0 0
  %160 = vmatpush1.bf16.msra.mxu0 0
  %161 = vmatprep.subr.bf16.mxu0 0
  %162 = vmatpush1.bf16.msra.mxu0 0
  %163 = vmatprep.subr.bf16.mxu0 0
  %164 = vmatpush1.bf16.msra.mxu0 0
  %165 = vmatprep.subr.bf16.mxu0 0
  %166 = vmatpush1.bf16.msra.mxu0 0
  %167 = vmatprep.subr.bf16.mxu0 0
  %168 = vmatpush1.bf16.msra.mxu0 0
  %169 = vmatprep.subr.bf16.mxu0 0
  %170 = vmatpush1.bf16.msra.mxu0 0
  %171 = vmatprep.subr.bf16.mxu0 0
  %172 = vmatpush1.bf16.msra.mxu0 0
  %173 = vmatprep.subr.bf16.mxu0 0
  %174 = vmatpush1.bf16.msra.mxu0 0
  %175 = vmatprep.subr.bf16.mxu0 0
  %176 = vmatpush1.bf16.msra.mxu0 0
  %177 = vmatprep.subr.bf16.mxu0 0
  %178 = vmatpush1.bf16.msra.mxu0 0
  %179 = vmatprep.mubr.bf16.mxu0 0
  %180 = vmatmul.mubr.bf16.gmra.mrb[0].mxu0 %v94
  %v181 = vpop.f32.mrb[0].mxu0
  %v182 = vadd.f32 %v34, %v181
  %v183 = vpop.f32.mrb[0].mxu0
  %v184 = vpop.f32.mrb[0].mxu0
  %v185 = vpop.f32.mrb[0].mxu0
  %186 = vdwg.mxu0
  %vm187 = vcmp.ge.f32.partialorder %v141, 0.0
  %vm188 = vcmp.ge.f32.partialorder %v143, 0.0
  %vm189 = vcmp.ge.f32.partialorder %v182, 0.0
  %v190 = vmul.f32 %v141, 0.1
  %v191 = vmul.f32 %v143, 0.1
  %v192 = vmul.f32 %v182, 0.1
  %v193 = vsel %vm187, %v141, %v190
  %v194 = vsel %vm188, %v143, %v191
  %v195 = vsel %vm189, %v182, %v192
  %196 = vst [vmem:[%s3] sm:$0xff] %v193
  %197 = vst [vmem:[%s3 + $0x8] sm:$0xff] %v194
  %vm198 = vcmask 261120
  %199 = vst.msk [vmem:[%s3 + $0x10] sm:$0xff] %vm198, %v195
  // Predicated region
  $region14: #{_lambda_.16} parent=0 // pred_check
    _
  $region15: #{_lambda_.16} parent=0 // pred_check_branch
    %201 = sbr.rel (0) target = $region17
  $region16: #{_lambda_.16} parent=0 // pred_region
    _
  $region17: #{_lambda_.16} parent=0 // pred_fallthru
    _
  // Predicated region
  $region18: #{_lambda_.16} parent=0 // pred_check
    _
  $region19: #{_lambda_.16} parent=0 // pred_check_branch
    %203 = sbr.rel (0) target = $region21
  $region20: #{_lambda_.16} parent=0 // pred_region
    _
  $region21: #{_lambda_.16} parent=0 // pred_fallthru
    _

// kernel: squeeze.25
$region0: #{squeeze.25}
  %s0 = inlined_call_operand.vmem [shape: f32[1,8,288], index: 0, kind: input, shape index: {}]
  %s1 = inlined_call_operand.vmem [shape: f32[8,2,9,16], index: 1, kind: output, shape index: {}]
  %v2 = vld [vmem:[%s0] sm:$0xff]
  %vm3 = vcmask 130048
  %4 = vst.msk [vmem:[%s1] sm:$0x1] %vm3, %v2
  %s5 = scalar_lea.vmem %s1, 31
  %6 = vst.msk [vmem:[%s5] sm:$0x2] %vm3, %v2
  %s7 = scalar_lea.vmem %s1, 62
  %8 = vst.msk [vmem:[%s7] sm:$0x4] %vm3, %v2
  %s9 = scalar_lea.vmem %s1, 93
  %10 = vst.msk [vmem:[%s9] sm:$0x8] %vm3, %v2
  %s11 = scalar_lea.vmem %s1, 124
  %12 = vst.msk [vmem:[%s11] sm:$0x10] %vm3, %v2
  %s13 = scalar_lea.vmem %s1, 155
  %14 = vst.msk [vmem:[%s13] sm:$0x20] %vm3, %v2
  %s15 = scalar_lea.vmem %s1, 186
  %16 = vst.msk [vmem:[%s15] sm:$0x40] %vm3, %v2
  %s17 = scalar_lea.vmem %s1, 217
  %18 = vst.msk [vmem:[%s17] sm:$0x80] %vm3, %v2
  %s19 = scalar_lea.vmem %s0, 8
  %v20 = vld [vmem:[%s19] sm:$0xff]
  %vm21 = vcmask 130048
  %s22 = scalar_lea.vmem %s1, 8
  %23 = vst.msk [vmem:[%s22] sm:$0x1] %vm21, %v20
  %s24 = scalar_lea.vmem %s1, 39
  %25 = vst.msk [vmem:[%s24] sm:$0x2] %vm21, %v20
  %s26 = scalar_lea.vmem %s1, 70
  %27 = vst.msk [vmem:[%s26] sm:$0x4] %vm21, %v20
  %s28 = scalar_lea.vmem %s1, 101
  %29 = vst.msk [vmem:[%s28] sm:$0x8] %vm21, %v20
  %s30 = scalar_lea.vmem %s1, 132
  %31 = vst.msk [vmem:[%s30] sm:$0x10] %vm21, %v20
  %s32 = scalar_lea.vmem %s1, 163
  %33 = vst.msk [vmem:[%s32] sm:$0x20] %vm21, %v20
  %s34 = scalar_lea.vmem %s1, 194
  %35 = vst.msk [vmem:[%s34] sm:$0x40] %vm21, %v20
  %s36 = scalar_lea.vmem %s1, 225
  %37 = vst.msk [vmem:[%s36] sm:$0x80] %vm21, %v20
  %s38 = scalar_lea.vmem %s0, 16
  %v39 = vld [vmem:[%s38] sm:$0xff]
  %vm40 = vcmask 130048
  %s41 = scalar_lea.vmem %s1, 23
  %42 = vst.msk [vmem:[%s41] sm:$0x1] %vm40, %v39
  %s43 = scalar_lea.vmem %s1, 54
  %44 = vst.msk [vmem:[%s43] sm:$0x2] %vm40, %v39
  %s45 = scalar_lea.vmem %s1, 85
  %46 = vst.msk [vmem:[%s45] sm:$0x4] %vm40, %v39
  %s47 = scalar_lea.vmem %s1, 116
  %48 = vst.msk [vmem:[%s47] sm:$0x8] %vm40, %v39
  %s49 = scalar_lea.vmem %s1, 147
  %50 = vst.msk [vmem:[%s49] sm:$0x10] %vm40, %v39
  %s51 = scalar_lea.vmem %s1, 178
  %52 = vst.msk [vmem:[%s51] sm:$0x20] %vm40, %v39
  %s53 = scalar_lea.vmem %s1, 209
  %54 = vst.msk [vmem:[%s53] sm:$0x40] %vm40, %v39
  %s55 = scalar_lea.vmem %s1, 240
  %56 = vst.msk [vmem:[%s55] sm:$0x80] %vm40, %v39
  %v57 = vld [vmem:[%s0] ss:$8 sm:$0x7]
  %s58 = scalar_lea.vmem %s0, 4294967273
  %v59 = vld [vmem:[%s58] ss:$8 sm:$0x38]
  %vm60 = vcmask 1045507
  %v61 = vsel %vm60, %v59, %v57
  %s62 = scalar_lea.vmem %s0, 4294967250
  %s63 = smov 192
  %v64 = vld [vmem:[%s62] ss:$8 sm:%s63]
  %vm65 = vcmask 1047558
  %v66 = vsel %vm65, %v64, %v61
  %67 = vrot.lane.b32.xlu0 %v66, 112
  %v68 = vpop.permute.xlu0 %67
  %vm69 = vcmask 130048
  %s70 = scalar_lea.vmem %s1, 1
  %71 = vst.msk [vmem:[%s70] ss:$15 sm:$0x3] %vm69, %v68
  %s72 = scalar_lea.vmem %s1, 6
  %73 = vst.msk [vmem:[%s72] ss:$9 sm:$0xc] %vm69, %v68
  %s74 = scalar_lea.vmem %s1, 16
  %75 = vst.msk [vmem:[%s74] ss:$8 sm:$0x30] %vm69, %v68
  %s76 = scalar_lea.vmem %s1, 4294967271
  %77 = vst.msk [vmem:[%s76] ss:$15 sm:$0xc0] %vm69, %v68
  %s78 = scalar_lea.vmem %s0, 3
  %v79 = vld.sshfl [vmem:[%s78] sm:$0xff pattern:$0x99991f80]
  %s80 = scalar_lea.vmem %s0, 5
  %v81 = vld.sshfl [vmem:[%s80] sm:$0xff pattern:$0x80eeeeee]
  %vm82 = vcmask 1047557
  %v83 = vsel %vm82, %v81, %v79
  %84 = vrot.lane.b32.xlu0 %v83, 112
  %v85 = vpop.permute.xlu0 %84
  %vm86 = vcmask 130048
  %s87 = scalar_lea.vmem %s1, 97
  %88 = vst.msk [vmem:[%s87] ss:$15 sm:$0x3] %vm86, %v85
  %s89 = scalar_lea.vmem %s1, 6
  %90 = vst.msk [vmem:[%s89] ss:$41 sm:$0xc] %vm86, %v85
  %s91 = scalar_lea.vmem %s1, 240
  %92 = vst.msk [vmem:[%s91] ss:$-24 sm:$0x30] %vm86, %v85
  %s93 = scalar_lea.vmem %s1, 71
  %94 = vst.msk [vmem:[%s93] ss:$15 sm:$0xc0] %vm86, %v85
  %s95 = scalar_lea.vmem %s0, 6
  %v96 = vld.sshfl [vmem:[%s95] sm:$0xff pattern:$0xfff91e80]
  %s97 = scalar_lea.vmem %s0, 16
  %v98 = vld [vmem:[%s97] sm:$0xc0]
  %vm99 = vcmask 1047558
  %v100 = vsel %vm99, %v98, %v96
  %101 = vrot.lane.b32.xlu0 %v100, 112
  %v102 = vpop.permute.xlu0 %101
  %vm103 = vcmask 130048
  %s104 = scalar_lea.vmem %s1, 193
  %105 = vst.msk [vmem:[%s104] ss:$15 sm:$0x3] %vm103, %v102
  %s106 = scalar_lea.vmem %s1, 6
  %107 = vst.msk [vmem:[%s106] ss:$73 sm:$0xc] %vm103, %v102
  %s108 = scalar_lea.vmem %s1, 464
  %109 = vst.msk [vmem:[%s108] ss:$-56 sm:$0x30] %vm103, %v102
  %s110 = scalar_lea.vmem %s1, 210
  %111 = vst.msk [vmem:[%s110] sm:$0x40] %vm103, %v102
  %s112 = scalar_lea.vmem %s1, 241
  %113 = vst.msk [vmem:[%s112] sm:$0x80] %vm103, %v102
  %v114 = vld.sshfl [vmem:[%s0] sm:$0xff pattern:$0xb3a29180]
  %115 = vrot.lane.b32.xlu0 %v114, 96
  %v116 = vpop.permute.xlu0 %115
  %vm117 = vcmask 130048
  %s118 = scalar_lea.vmem %s1, 2
  %119 = vst.msk [vmem:[%s118] ss:$15 sm:$0x3] %vm117, %v116
  %s120 = scalar_lea.vmem %s1, 4
  %121 = vst.msk [vmem:[%s120] ss:$15 sm:$0xc] %vm117, %v116
  %s122 = scalar_lea.vmem %s1, 6
  %123 = vst.msk [vmem:[%s122] ss:$15 sm:$0x30] %vm117, %v116
  %s124 = scalar_lea.vmem %s1, 8
  %125 = vst.msk [vmem:[%s124] ss:$15 sm:$0xc0] %vm117, %v116
  %s126 = scalar_lea.vmem %s0, 4
  %v127 = vld.sshfl [vmem:[%s126] sm:$0xff pattern:$0xb3a29180]
  %128 = vrot.lane.b32.xlu0 %v127, 96
  %v129 = vpop.permute.xlu0 %128
  %vm130 = vcmask 130048
  %s131 = scalar_lea.vmem %s1, 130
  %132 = vst.msk [vmem:[%s131] ss:$15 sm:$0x3] %vm130, %v129
  %s133 = scalar_lea.vmem %s1, 132
  %134 = vst.msk [vmem:[%s133] ss:$15 sm:$0xc] %vm130, %v129
  %s135 = scalar_lea.vmem %s1, 134
  %136 = vst.msk [vmem:[%s135] ss:$15 sm:$0x30] %vm130, %v129
  %s137 = scalar_lea.vmem %s1, 136
  %138 = vst.msk [vmem:[%s137] ss:$15 sm:$0xc0] %vm130, %v129
  %v139 = vld.sshfl [vmem:[%s0] sm:$0xff pattern:$0xb3a29180]
  %140 = vrot.lane.b32.xlu0 %v139, 80
  %v141 = vpop.permute.xlu0 %140
  %vm142 = vcmask 130048
  %s143 = scalar_lea.vmem %s1, 3
  %144 = vst.msk [vmem:[%s143] ss:$15 sm:$0x3] %vm142, %v141
  %s145 = scalar_lea.vmem %s1, 5
  %146 = vst.msk [vmem:[%s145] ss:$15 sm:$0xc] %vm142, %v141
  %s147 = scalar_lea.vmem %s1, 7
  %148 = vst.msk [vmem:[%s147] ss:$15 sm:$0x30] %vm142, %v141
  %s149 = scalar_lea.vmem %s1, 9
  %150 = vst.msk [vmem:[%s149] ss:$15 sm:$0xc0] %vm142, %v141
  %s151 = scalar_lea.vmem %s0, 4
  %v152 = vld.sshfl [vmem:[%s151] sm:$0xff pattern:$0xb3a29180]
  %153 = vrot.lane.b32.xlu0 %v152, 80
  %v154 = vpop.permute.xlu0 %153
  %vm155 = vcmask 130048
  %s156 = scalar_lea.vmem %s1, 131
  %157 = vst.msk [vmem:[%s156] ss:$15 sm:$0x3] %vm155, %v154
  %s158 = scalar_lea.vmem %s1, 133
  %159 = vst.msk [vmem:[%s158] ss:$15 sm:$0xc] %vm155, %v154
  %s160 = scalar_lea.vmem %s1, 135
  %161 = vst.msk [vmem:[%s160] ss:$15 sm:$0x30] %vm155, %v154
  %s162 = scalar_lea.vmem %s1, 137
  %163 = vst.msk [vmem:[%s162] ss:$15 sm:$0xc0] %vm155, %v154
  %v164 = vld.sshfl [vmem:[%s0] sm:$0xff pattern:$0xb3a29180]
  %165 = vrot.lane.b32.xlu0 %v164, 64
  %v166 = vpop.permute.xlu0 %165
  %vm167 = vcmask 130048
  %s168 = scalar_lea.vmem %s1, 4
  %169 = vst.msk [vmem:[%s168] ss:$15 sm:$0x3] %vm167, %v166
  %s170 = scalar_lea.vmem %s1, 6
  %171 = vst.msk [vmem:[%s170] ss:$15 sm:$0xc] %vm167, %v166
  %s172 = scalar_lea.vmem %s1, 8
  %173 = vst.msk [vmem:[%s172] ss:$15 sm:$0x30] %vm167, %v166
  %s174 = scalar_lea.vmem %s1, 10
  %175 = vst.msk [vmem:[%s174] ss:$15 sm:$0xc0] %vm167, %v166
  %s176 = scalar_lea.vmem %s0, 4
  %v177 = vld.sshfl [vmem:[%s176] sm:$0xff pattern:$0xb3a29180]
  %178 = vrot.lane.b32.xlu0 %v177, 64
  %v179 = vpop.permute.xlu0 %178
  %vm180 = vcmask 130048
  %s181 = scalar_lea.vmem %s1, 132
  %182 = vst.msk [vmem:[%s181] ss:$15 sm:$0x3] %vm180, %v179
  %s183 = scalar_lea.vmem %s1, 134
  %184 = vst.msk [vmem:[%s183] ss:$15 sm:$0xc] %vm180, %v179
  %s185 = scalar_lea.vmem %s1, 136
  %186 = vst.msk [vmem:[%s185] ss:$15 sm:$0x30] %vm180, %v179
  %s187 = scalar_lea.vmem %s1, 138
  %188 = vst.msk [vmem:[%s187] ss:$15 sm:$0xc0] %vm180, %v179
  %v189 = vld.sshfl [vmem:[%s0] sm:$0xff pattern:$0xb3a29180]
  %190 = vrot.lane.b32.xlu0 %v189, 48
  %v191 = vpop.permute.xlu0 %190
  %vm192 = vcmask 130048
  %s193 = scalar_lea.vmem %s1, 5
  %194 = vst.msk [vmem:[%s193] ss:$15 sm:$0x3] %vm192, %v191
  %s195 = scalar_lea.vmem %s1, 7
  %196 = vst.msk [vmem:[%s195] ss:$15 sm:$0xc] %vm192, %v191
  %s197 = scalar_lea.vmem %s1, 9
  %198 = vst.msk [vmem:[%s197] ss:$15 sm:$0x30] %vm192, %v191
  %s199 = scalar_lea.vmem %s1, 11
  %200 = vst.msk [vmem:[%s199] ss:$15 sm:$0xc0] %vm192, %v191
  %s201 = scalar_lea.vmem %s0, 4
  %v202 = vld.sshfl [vmem:[%s201] sm:$0xff pattern:$0xb3a29180]
  %203 = vrot.lane.b32.xlu0 %v202, 48
  %v204 = vpop.permute.xlu0 %203
  %vm205 = vcmask 130048
  %s206 = scalar_lea.vmem %s1, 133
  %207 = vst.msk [vmem:[%s206] ss:$15 sm:$0x3] %vm205, %v204
  %s208 = scalar_lea.vmem %s1, 135
  %209 = vst.msk [vmem:[%s208] ss:$15 sm:$0xc] %vm205, %v204
  %s210 = scalar_lea.vmem %s1, 137
  %211 = vst.msk [vmem:[%s210] ss:$15 sm:$0x30] %vm205, %v204
  %s212 = scalar_lea.vmem %s1, 139
  %213 = vst.msk [vmem:[%s212] ss:$15 sm:$0xc0] %vm205, %v204
  %v214 = vld.sshfl [vmem:[%s0] sm:$0xff pattern:$0xb3a29180]
  %215 = vrot.lane.b32.xlu0 %v214, 32
  %v216 = vpop.permute.xlu0 %215
  %vm217 = vcmask 130048
  %s218 = scalar_lea.vmem %s1, 6
  %219 = vst.msk [vmem:[%s218] ss:$15 sm:$0x3] %vm217, %v216
  %s220 = scalar_lea.vmem %s1, 8
  %221 = vst.msk [vmem:[%s220] ss:$15 sm:$0xc] %vm217, %v216
  %s222 = scalar_lea.vmem %s1, 10
  %223 = vst.msk [vmem:[%s222] ss:$15 sm:$0x30] %vm217, %v216
  %s224 = scalar_lea.vmem %s1, 12
  %225 = vst.msk [vmem:[%s224] ss:$15 sm:$0xc0] %vm217, %v216
  %s226 = scalar_lea.vmem %s0, 4
  %v227 = vld.sshfl [vmem:[%s226] sm:$0xff pattern:$0xb3a29180]
  %228 = vrot.lane.b32.xlu0 %v227, 32
  %v229 = vpop.permute.xlu0 %228
  %vm230 = vcmask 130048
  %s231 = scalar_lea.vmem %s1, 134
  %232 = vst.msk [vmem:[%s231] ss:$15 sm:$0x3] %vm230, %v229
  %s233 = scalar_lea.vmem %s1, 136
  %234 = vst.msk [vmem:[%s233] ss:$15 sm:$0xc] %vm230, %v229
  %s235 = scalar_lea.vmem %s1, 138
  %236 = vst.msk [vmem:[%s235] ss:$15 sm:$0x30] %vm230, %v229
  %s237 = scalar_lea.vmem %s1, 140
  %238 = vst.msk [vmem:[%s237] ss:$15 sm:$0xc0] %vm230, %v229
  %v239 = vld.sshfl [vmem:[%s0] sm:$0xff pattern:$0xb3a29180]
  %240 = vrot.lane.b32.xlu0 %v239, 16
  %v241 = vpop.permute.xlu0 %240
  %vm242 = vcmask 130048
  %s243 = scalar_lea.vmem %s1, 7
  %244 = vst.msk [vmem:[%s243] ss:$15 sm:$0x3] %vm242, %v241
  %s245 = scalar_lea.vmem %s1, 9
  %246 = vst.msk [vmem:[%s245] ss:$15 sm:$0xc] %vm242, %v241
  %s247 = scalar_lea.vmem %s1, 11
  %248 = vst.msk [vmem:[%s247] ss:$15 sm:$0x30] %vm242, %v241
  %s249 = scalar_lea.vmem %s1, 13
  %250 = vst.msk [vmem:[%s249] ss:$15 sm:$0xc0] %vm242, %v241
  %s251 = scalar_lea.vmem %s0, 4
  %v252 = vld.sshfl [vmem:[%s251] sm:$0xff pattern:$0xb3a29180]
  %253 = vrot.lane.b32.xlu0 %v252, 16
  %v254 = vpop.permute.xlu0 %253
  %vm255 = vcmask 130048
  %s256 = scalar_lea.vmem %s1, 135
  %257 = vst.msk [vmem:[%s256] ss:$15 sm:$0x3] %vm255, %v254
  %s258 = scalar_lea.vmem %s1, 137
  %259 = vst.msk [vmem:[%s258] ss:$15 sm:$0xc] %vm255, %v254
  %s260 = scalar_lea.vmem %s1, 139
  %261 = vst.msk [vmem:[%s260] ss:$15 sm:$0x30] %vm255, %v254
  %s262 = scalar_lea.vmem %s1, 141
  %263 = vst.msk [vmem:[%s262] ss:$15 sm:$0xc0] %vm255, %v254

// kernel: squeeze.26
$region0: #{squeeze.26}
  %s0 = inlined_call_operand.vmem [shape: f32[1,8,144], index: 0, kind: input, shape index: {}]
  %s1 = inlined_call_operand.vmem [shape: f32[8,2,9,8], index: 1, kind: output, shape index: {}]
  %v2 = vld [vmem:[%s0] sm:$0xff]
  %vm3 = vcmask 64512
  %4 = vst.msk [vmem:[%s1] sm:$0x1] %vm3, %v2
  %s5 = scalar_lea.vmem %s1, 31
  %6 = vst.msk [vmem:[%s5] sm:$0x2] %vm3, %v2
  %s7 = scalar_lea.vmem %s1, 62
  %8 = vst.msk [vmem:[%s7] sm:$0x4] %vm3, %v2
  %s9 = scalar_lea.vmem %s1, 93
  %10 = vst.msk [vmem:[%s9] sm:$0x8] %vm3, %v2
  %s11 = scalar_lea.vmem %s1, 124
  %12 = vst.msk [vmem:[%s11] sm:$0x10] %vm3, %v2
  %s13 = scalar_lea.vmem %s1, 155
  %14 = vst.msk [vmem:[%s13] sm:$0x20] %vm3, %v2
  %s15 = scalar_lea.vmem %s1, 186
  %16 = vst.msk [vmem:[%s15] sm:$0x40] %vm3, %v2
  %s17 = scalar_lea.vmem %s1, 217
  %18 = vst.msk [vmem:[%s17] sm:$0x80] %vm3, %v2
  %s19 = scalar_lea.vmem %s0, 8
  %v20 = vld [vmem:[%s19] sm:$0xff]
  %vm21 = vcmask 64512
  %s22 = scalar_lea.vmem %s1, 23
  %23 = vst.msk [vmem:[%s22] sm:$0x1] %vm21, %v20
  %s24 = scalar_lea.vmem %s1, 54
  %25 = vst.msk [vmem:[%s24] sm:$0x2] %vm21, %v20
  %s26 = scalar_lea.vmem %s1, 85
  %27 = vst.msk [vmem:[%s26] sm:$0x4] %vm21, %v20
  %s28 = scalar_lea.vmem %s1, 116
  %29 = vst.msk [vmem:[%s28] sm:$0x8] %vm21, %v20
  %s30 = scalar_lea.vmem %s1, 147
  %31 = vst.msk [vmem:[%s30] sm:$0x10] %vm21, %v20
  %s32 = scalar_lea.vmem %s1, 178
  %33 = vst.msk [vmem:[%s32] sm:$0x20] %vm21, %v20
  %s34 = scalar_lea.vmem %s1, 209
  %35 = vst.msk [vmem:[%s34] sm:$0x40] %vm21, %v20
  %s36 = scalar_lea.vmem %s1, 240
  %37 = vst.msk [vmem:[%s36] sm:$0x80] %vm21, %v20
  %v38 = vld.sshfl [vmem:[%s0] sm:$0xff pattern:$0xb3a29180]
  %39 = vrot.lane.b32.xlu0 %v38, 120
  %v40 = vpop.permute.xlu0 %39
  %vm41 = vcmask 64512
  %s42 = scalar_lea.vmem %s1, 1
  %43 = vst.msk [vmem:[%s42] ss:$23 sm:$0x3] %vm41, %v40
  %s44 = scalar_lea.vmem %s1, 4294967283
  %45 = vst.msk [vmem:[%s44] ss:$23 sm:$0xc] %vm41, %v40
  %s46 = scalar_lea.vmem %s1, 4294967269
  %47 = vst.msk [vmem:[%s46] ss:$23 sm:$0x30] %vm41, %v40
  %s48 = scalar_lea.vmem %s1, 4294967255
  %49 = vst.msk [vmem:[%s48] ss:$23 sm:$0xc0] %vm41, %v40
  %s50 = scalar_lea.vmem %s0, 4
  %v51 = vld.sshfl [vmem:[%s50] sm:$0xff pattern:$0xb3a29180]
  %52 = vrot.lane.b32.xlu0 %v51, 120
  %v53 = vpop.permute.xlu0 %52
  %vm54 = vcmask 64512
  %s55 = scalar_lea.vmem %s1, 129
  %56 = vst.msk [vmem:[%s55] ss:$23 sm:$0x3] %vm54, %v53
  %s57 = scalar_lea.vmem %s1, 115
  %58 = vst.msk [vmem:[%s57] ss:$23 sm:$0xc] %vm54, %v53
  %s59 = scalar_lea.vmem %s1, 101
  %60 = vst.msk [vmem:[%s59] ss:$23 sm:$0x30] %vm54, %v53
  %s61 = scalar_lea.vmem %s1, 87
  %62 = vst.msk [vmem:[%s61] ss:$23 sm:$0xc0] %vm54, %v53
  %v63 = vld [vmem:[%s0] sm:$0xff]
  %64 = vrot.lane.b32.xlu0 %v63, 112
  %v65 = vpop.permute.xlu0 %64
  %vm66 = vcmask 64512
  %s67 = scalar_lea.vmem %s1, 2
  %68 = vst.msk [vmem:[%s67] sm:$0x1] %vm66, %v65
  %s69 = scalar_lea.vmem %s1, 33
  %70 = vst.msk [vmem:[%s69] sm:$0x2] %vm66, %v65
  %s71 = scalar_lea.vmem %s1, 64
  %72 = vst.msk [vmem:[%s71] sm:$0x4] %vm66, %v65
  %s73 = scalar_lea.vmem %s1, 95
  %74 = vst.msk [vmem:[%s73] sm:$0x8] %vm66, %v65
  %s75 = scalar_lea.vmem %s1, 126
  %76 = vst.msk [vmem:[%s75] sm:$0x10] %vm66, %v65
  %s77 = scalar_lea.vmem %s1, 157
  %78 = vst.msk [vmem:[%s77] sm:$0x20] %vm66, %v65
  %s79 = scalar_lea.vmem %s1, 188
  %80 = vst.msk [vmem:[%s79] sm:$0x40] %vm66, %v65
  %s81 = scalar_lea.vmem %s1, 219
  %82 = vst.msk [vmem:[%s81] sm:$0x80] %vm66, %v65
  %v83 = vld [vmem:[%s0] sm:$0xff]
  %84 = vrot.lane.b32.xlu0 %v83, 104
  %v85 = vpop.permute.xlu0 %84
  %vm86 = vcmask 64512
  %s87 = scalar_lea.vmem %s1, 3
  %88 = vst.msk [vmem:[%s87] sm:$0x1] %vm86, %v85
  %s89 = scalar_lea.vmem %s1, 34
  %90 = vst.msk [vmem:[%s89] sm:$0x2] %vm86, %v85
  %s91 = scalar_lea.vmem %s1, 65
  %92 = vst.msk [vmem:[%s91] sm:$0x4] %vm86, %v85
  %s93 = scalar_lea.vmem %s1, 96
  %94 = vst.msk [vmem:[%s93] sm:$0x8] %vm86, %v85
  %s95 = scalar_lea.vmem %s1, 127
  %96 = vst.msk [vmem:[%s95] sm:$0x10] %vm86, %v85
  %s97 = scalar_lea.vmem %s1, 158
  %98 = vst.msk [vmem:[%s97] sm:$0x20] %vm86, %v85
  %s99 = scalar_lea.vmem %s1, 189
  %100 = vst.msk [vmem:[%s99] sm:$0x40] %vm86, %v85
  %s101 = scalar_lea.vmem %s1, 220
  %102 = vst.msk [vmem:[%s101] sm:$0x80] %vm86, %v85
  %v103 = vld [vmem:[%s0] sm:$0xff]
  %104 = vrot.lane.b32.xlu0 %v103, 96
  %v105 = vpop.permute.xlu0 %104
  %vm106 = vcmask 64512
  %s107 = scalar_lea.vmem %s1, 4
  %108 = vst.msk [vmem:[%s107] sm:$0x1] %vm106, %v105
  %s109 = scalar_lea.vmem %s1, 35
  %110 = vst.msk [vmem:[%s109] sm:$0x2] %vm106, %v105
  %s111 = scalar_lea.vmem %s1, 66
  %112 = vst.msk [vmem:[%s111] sm:$0x4] %vm106, %v105
  %s113 = scalar_lea.vmem %s1, 97
  %114 = vst.msk [vmem:[%s113] sm:$0x8] %vm106, %v105
  %s115 = scalar_lea.vmem %s1, 128
  %116 = vst.msk [vmem:[%s115] sm:$0x10] %vm106, %v105
  %s117 = scalar_lea.vmem %s1, 159
  %118 = vst.msk [vmem:[%s117] sm:$0x20] %vm106, %v105
  %s119 = scalar_lea.vmem %s1, 190
  %120 = vst.msk [vmem:[%s119] sm:$0x40] %vm106, %v105
  %s121 = scalar_lea.vmem %s1, 221
  %122 = vst.msk [vmem:[%s121] sm:$0x80] %vm106, %v105
  %v123 = vld [vmem:[%s0] sm:$0xff]
  %124 = vrot.lane.b32.xlu0 %v123, 88
  %v125 = vpop.permute.xlu0 %124
  %vm126 = vcmask 64512
  %s127 = scalar_lea.vmem %s1, 5
  %128 = vst.msk [vmem:[%s127] sm:$0x1] %vm126, %v125
  %s129 = scalar_lea.vmem %s1, 36
  %130 = vst.msk [vmem:[%s129] sm:$0x2] %vm126, %v125
  %s131 = scalar_lea.vmem %s1, 67
  %132 = vst.msk [vmem:[%s131] sm:$0x4] %vm126, %v125
  %s133 = scalar_lea.vmem %s1, 98
  %134 = vst.msk [vmem:[%s133] sm:$0x8] %vm126, %v125
  %s135 = scalar_lea.vmem %s1, 129
  %136 = vst.msk [vmem:[%s135] sm:$0x10] %vm126, %v125
  %s137 = scalar_lea.vmem %s1, 160
  %138 = vst.msk [vmem:[%s137] sm:$0x20] %vm126, %v125
  %s139 = scalar_lea.vmem %s1, 191
  %140 = vst.msk [vmem:[%s139] sm:$0x40] %vm126, %v125
  %s141 = scalar_lea.vmem %s1, 222
  %142 = vst.msk [vmem:[%s141] sm:$0x80] %vm126, %v125
  %v143 = vld [vmem:[%s0] sm:$0xff]
  %144 = vrot.lane.b32.xlu0 %v143, 80
  %v145 = vpop.permute.xlu0 %144
  %vm146 = vcmask 64512
  %s147 = scalar_lea.vmem %s1, 6
  %148 = vst.msk [vmem:[%s147] sm:$0x1] %vm146, %v145
  %s149 = scalar_lea.vmem %s1, 37
  %150 = vst.msk [vmem:[%s149] sm:$0x2] %vm146, %v145
  %s151 = scalar_lea.vmem %s1, 68
  %152 = vst.msk [vmem:[%s151] sm:$0x4] %vm146, %v145
  %s153 = scalar_lea.vmem %s1, 99
  %154 = vst.msk [vmem:[%s153] sm:$0x8] %vm146, %v145
  %s155 = scalar_lea.vmem %s1, 130
  %156 = vst.msk [vmem:[%s155] sm:$0x10] %vm146, %v145
  %s157 = scalar_lea.vmem %s1, 161
  %158 = vst.msk [vmem:[%s157] sm:$0x20] %vm146, %v145
  %s159 = scalar_lea.vmem %s1, 192
  %160 = vst.msk [vmem:[%s159] sm:$0x40] %vm146, %v145
  %s161 = scalar_lea.vmem %s1, 223
  %162 = vst.msk [vmem:[%s161] sm:$0x80] %vm146, %v145
  %v163 = vld [vmem:[%s0] sm:$0xff]
  %164 = vrot.lane.b32.xlu0 %v163, 72
  %v165 = vpop.permute.xlu0 %164
  %vm166 = vcmask 64512
  %s167 = scalar_lea.vmem %s1, 7
  %168 = vst.msk [vmem:[%s167] sm:$0x1] %vm166, %v165
  %s169 = scalar_lea.vmem %s1, 38
  %170 = vst.msk [vmem:[%s169] sm:$0x2] %vm166, %v165
  %s171 = scalar_lea.vmem %s1, 69
  %172 = vst.msk [vmem:[%s171] sm:$0x4] %vm166, %v165
  %s173 = scalar_lea.vmem %s1, 100
  %174 = vst.msk [vmem:[%s173] sm:$0x8] %vm166, %v165
  %s175 = scalar_lea.vmem %s1, 131
  %176 = vst.msk [vmem:[%s175] sm:$0x10] %vm166, %v165
  %s177 = scalar_lea.vmem %s1, 162
  %178 = vst.msk [vmem:[%s177] sm:$0x20] %vm166, %v165
  %s179 = scalar_lea.vmem %s1, 193
  %180 = vst.msk [vmem:[%s179] sm:$0x40] %vm166, %v165
  %s181 = scalar_lea.vmem %s1, 224
  %182 = vst.msk [vmem:[%s181] sm:$0x80] %vm166, %v165
  %v183 = vld [vmem:[%s0] sm:$0xff]
  %184 = vrot.lane.b32.xlu0 %v183, 64
  %v185 = vpop.permute.xlu0 %184
  %vm186 = vcmask 64512
  %s187 = scalar_lea.vmem %s1, 8
  %188 = vst.msk [vmem:[%s187] sm:$0x1] %vm186, %v185
  %s189 = scalar_lea.vmem %s1, 39
  %190 = vst.msk [vmem:[%s189] sm:$0x2] %vm186, %v185
  %s191 = scalar_lea.vmem %s1, 70
  %192 = vst.msk [vmem:[%s191] sm:$0x4] %vm186, %v185
  %s193 = scalar_lea.vmem %s1, 101
  %194 = vst.msk [vmem:[%s193] sm:$0x8] %vm186, %v185
  %s195 = scalar_lea.vmem %s1, 132
  %196 = vst.msk [vmem:[%s195] sm:$0x10] %vm186, %v185
  %s197 = scalar_lea.vmem %s1, 163
  %198 = vst.msk [vmem:[%s197] sm:$0x20] %vm186, %v185
  %s199 = scalar_lea.vmem %s1, 194
  %200 = vst.msk [vmem:[%s199] sm:$0x40] %vm186, %v185
  %s201 = scalar_lea.vmem %s1, 225
  %202 = vst.msk [vmem:[%s201] sm:$0x80] %vm186, %v185
  %v203 = vld [vmem:[%s0] sm:$0xff]
  %204 = vrot.lane.b32.xlu0 %v203, 56
  %v205 = vpop.permute.xlu0 %204
  %vm206 = vcmask 64512
  %s207 = scalar_lea.vmem %s1, 16
  %208 = vst.msk [vmem:[%s207] sm:$0x1] %vm206, %v205
  %s209 = scalar_lea.vmem %s1, 47
  %210 = vst.msk [vmem:[%s209] sm:$0x2] %vm206, %v205
  %s211 = scalar_lea.vmem %s1, 78
  %212 = vst.msk [vmem:[%s211] sm:$0x4] %vm206, %v205
  %s213 = scalar_lea.vmem %s1, 109
  %214 = vst.msk [vmem:[%s213] sm:$0x8] %vm206, %v205
  %s215 = scalar_lea.vmem %s1, 140
  %216 = vst.msk [vmem:[%s215] sm:$0x10] %vm206, %v205
  %s217 = scalar_lea.vmem %s1, 171
  %218 = vst.msk [vmem:[%s217] sm:$0x20] %vm206, %v205
  %s219 = scalar_lea.vmem %s1, 202
  %220 = vst.msk [vmem:[%s219] sm:$0x40] %vm206, %v205
  %s221 = scalar_lea.vmem %s1, 233
  %222 = vst.msk [vmem:[%s221] sm:$0x80] %vm206, %v205
  %v223 = vld [vmem:[%s0] sm:$0xff]
  %224 = vrot.lane.b32.xlu0 %v223, 48
  %v225 = vpop.permute.xlu0 %224
  %vm226 = vcmask 64512
  %s227 = scalar_lea.vmem %s1, 17
  %228 = vst.msk [vmem:[%s227] sm:$0x1] %vm226, %v225
  %s229 = scalar_lea.vmem %s1, 48
  %230 = vst.msk [vmem:[%s229] sm:$0x2] %vm226, %v225
  %s231 = scalar_lea.vmem %s1, 79
  %232 = vst.msk [vmem:[%s231] sm:$0x4] %vm226, %v225
  %s233 = scalar_lea.vmem %s1, 110
  %234 = vst.msk [vmem:[%s233] sm:$0x8] %vm226, %v225
  %s235 = scalar_lea.vmem %s1, 141
  %236 = vst.msk [vmem:[%s235] sm:$0x10] %vm226, %v225
  %s237 = scalar_lea.vmem %s1, 172
  %238 = vst.msk [vmem:[%s237] sm:$0x20] %vm226, %v225
  %s239 = scalar_lea.vmem %s1, 203
  %240 = vst.msk [vmem:[%s239] sm:$0x40] %vm226, %v225
  %s241 = scalar_lea.vmem %s1, 234
  %242 = vst.msk [vmem:[%s241] sm:$0x80] %vm226, %v225
  %v243 = vld [vmem:[%s0] sm:$0xff]
  %244 = vrot.lane.b32.xlu0 %v243, 40
  %v245 = vpop.permute.xlu0 %244
  %vm246 = vcmask 64512
  %s247 = scalar_lea.vmem %s1, 18
  %248 = vst.msk [vmem:[%s247] sm:$0x1] %vm246, %v245
  %s249 = scalar_lea.vmem %s1, 49
  %250 = vst.msk [vmem:[%s249] sm:$0x2] %vm246, %v245
  %s251 = scalar_lea.vmem %s1, 80
  %252 = vst.msk [vmem:[%s251] sm:$0x4] %vm246, %v245
  %s253 = scalar_lea.vmem %s1, 111
  %254 = vst.msk [vmem:[%s253] sm:$0x8] %vm246, %v245
  %s255 = scalar_lea.vmem %s1, 142
  %256 = vst.msk [vmem:[%s255] sm:$0x10] %vm246, %v245
  %s257 = scalar_lea.vmem %s1, 173
  %258 = vst.msk [vmem:[%s257] sm:$0x20] %vm246, %v245
  %s259 = scalar_lea.vmem %s1, 204
  %260 = vst.msk [vmem:[%s259] sm:$0x40] %vm246, %v245
  %s261 = scalar_lea.vmem %s1, 235
  %262 = vst.msk [vmem:[%s261] sm:$0x80] %vm246, %v245
  %v263 = vld [vmem:[%s0] sm:$0xff]
  %264 = vrot.lane.b32.xlu0 %v263, 32
  %v265 = vpop.permute.xlu0 %264
  %vm266 = vcmask 64512
  %s267 = scalar_lea.vmem %s1, 19
  %268 = vst.msk [vmem:[%s267] sm:$0x1] %vm266, %v265
  %s269 = scalar_lea.vmem %s1, 50
  %270 = vst.msk [vmem:[%s269] sm:$0x2] %vm266, %v265
  %s271 = scalar_lea.vmem %s1, 81
  %272 = vst.msk [vmem:[%s271] sm:$0x4] %vm266, %v265
  %s273 = scalar_lea.vmem %s1, 112
  %274 = vst.msk [vmem:[%s273] sm:$0x8] %vm266, %v265
  %s275 = scalar_lea.vmem %s1, 143
  %276 = vst.msk [vmem:[%s275] sm:$0x10] %vm266, %v265
  %s277 = scalar_lea.vmem %s1, 174
  %278 = vst.msk [vmem:[%s277] sm:$0x20] %vm266, %v265
  %s279 = scalar_lea.vmem %s1, 205
  %280 = vst.msk [vmem:[%s279] sm:$0x40] %vm266, %v265
  %s281 = scalar_lea.vmem %s1, 236
  %282 = vst.msk [vmem:[%s281] sm:$0x80] %vm266, %v265
  %v283 = vld [vmem:[%s0] sm:$0xff]
  %284 = vrot.lane.b32.xlu0 %v283, 24
  %v285 = vpop.permute.xlu0 %284
  %vm286 = vcmask 64512
  %s287 = scalar_lea.vmem %s1, 20
  %288 = vst.msk [vmem:[%s287] sm:$0x1] %vm286, %v285
  %s289 = scalar_lea.vmem %s1, 51
  %290 = vst.msk [vmem:[%s289] sm:$0x2] %vm286, %v285
  %s291 = scalar_lea.vmem %s1, 82
  %292 = vst.msk [vmem:[%s291] sm:$0x4] %vm286, %v285
  %s293 = scalar_lea.vmem %s1, 113
  %294 = vst.msk [vmem:[%s293] sm:$0x8] %vm286, %v285
  %s295 = scalar_lea.vmem %s1, 144
  %296 = vst.msk [vmem:[%s295] sm:$0x10] %vm286, %v285
  %s297 = scalar_lea.vmem %s1, 175
  %298 = vst.msk [vmem:[%s297] sm:$0x20] %vm286, %v285
  %s299 = scalar_lea.vmem %s1, 206
  %300 = vst.msk [vmem:[%s299] sm:$0x40] %vm286, %v285
  %s301 = scalar_lea.vmem %s1, 237
  %302 = vst.msk [vmem:[%s301] sm:$0x80] %vm286, %v285
  %v303 = vld [vmem:[%s0] sm:$0xff]
  %304 = vrot.lane.b32.xlu0 %v303, 16
  %v305 = vpop.permute.xlu0 %304
  %vm306 = vcmask 64512
  %s307 = scalar_lea.vmem %s1, 21
  %308 = vst.msk [vmem:[%s307] sm:$0x1] %vm306, %v305
  %s309 = scalar_lea.vmem %s1, 52
  %310 = vst.msk [vmem:[%s309] sm:$0x2] %vm306, %v305
  %s311 = scalar_lea.vmem %s1, 83
  %312 = vst.msk [vmem:[%s311] sm:$0x4] %vm306, %v305
  %s313 = scalar_lea.vmem %s1, 114
  %314 = vst.msk [vmem:[%s313] sm:$0x8] %vm306, %v305
  %s315 = scalar_lea.vmem %s1, 145
  %316 = vst.msk [vmem:[%s315] sm:$0x10] %vm306, %v305
  %s317 = scalar_lea.vmem %s1, 176
  %318 = vst.msk [vmem:[%s317] sm:$0x20] %vm306, %v305
  %s319 = scalar_lea.vmem %s1, 207
  %320 = vst.msk [vmem:[%s319] sm:$0x40] %vm306, %v305
  %s321 = scalar_lea.vmem %s1, 238
  %322 = vst.msk [vmem:[%s321] sm:$0x80] %vm306, %v305
  %v323 = vld [vmem:[%s0] sm:$0xff]
  %324 = vrot.lane.b32.xlu0 %v323, 8
  %v325 = vpop.permute.xlu0 %324
  %vm326 = vcmask 64512
  %s327 = scalar_lea.vmem %s1, 22
  %328 = vst.msk [vmem:[%s327] sm:$0x1] %vm326, %v325
  %s329 = scalar_lea.vmem %s1, 53
  %330 = vst.msk [vmem:[%s329] sm:$0x2] %vm326, %v325
  %s331 = scalar_lea.vmem %s1, 84
  %332 = vst.msk [vmem:[%s331] sm:$0x4] %vm326, %v325
  %s333 = scalar_lea.vmem %s1, 115
  %334 = vst.msk [vmem:[%s333] sm:$0x8] %vm326, %v325
  %s335 = scalar_lea.vmem %s1, 146
  %336 = vst.msk [vmem:[%s335] sm:$0x10] %vm326, %v325
  %s337 = scalar_lea.vmem %s1, 177
  %338 = vst.msk [vmem:[%s337] sm:$0x20] %vm326, %v325
  %s339 = scalar_lea.vmem %s1, 208
  %340 = vst.msk [vmem:[%s339] sm:$0x40] %vm326, %v325
  %s341 = scalar_lea.vmem %s1, 239
  %342 = vst.msk [vmem:[%s341] sm:$0x80] %vm326, %v325

// kernel: _lambda_.17
$region0: #{_lambda_.17}
  #allocation0 [shape = 'u32[]', space=smem, size = 0x4, offset = 0x4, fixed_abs, tag = 'smem constant byte address 0x4 - core index']
  #allocation1 [shape = 'u32[144,128]{1,0:T(1,128)}', space=vmem, size = 0x12000, scoped, tag = 'internal scratch']
  %s0 = inlined_call_operand.vmem [shape: bf16[1,216,144], index: 0, kind: input, shape index: {}]
  %s1 = inlined_call_operand.vmem [shape: bf16[1,8,216], index: 1, kind: input, shape index: {}]
  %s2 = inlined_call_operand.vmem [shape: f32[1,8,1], index: 2, kind: input, shape index: {}]
  %s3 = inlined_call_operand.vmem [shape: f32[1,8,144], index: 3, kind: output, shape index: {}]
  %s4 = sld [smem:[#allocation0]]
  $region22: #{_lambda_.17} parent=0
    _
  %s6 = ssub.s32 1, %s4
  %s7 = scalar_select 0, %s6, %s4
  // Predicated region
  $region2: #{_lambda_.17} parent=0 // pred_check
    _
  $region3: #{_lambda_.17} parent=0 // pred_check_branch
    %9 = sbr.rel (0) target = $region5
  $region4: #{_lambda_.17} parent=0 // pred_region
    _
  $region5: #{_lambda_.17} parent=0 // pred_fallthru
    _
  // Predicated region
  $region6: #{_lambda_.17} parent=0 // pred_check
    _
  $region7: #{_lambda_.17} parent=0 // pred_check_branch
    %11 = sbr.rel (0) target = $region9
  $region8: #{_lambda_.17} parent=0 // pred_region
    _
  $region9: #{_lambda_.17} parent=0 // pred_fallthru
    _
  // Predicated region
  $region10: #{_lambda_.17} parent=0 // pred_check
    _
  $region11: #{_lambda_.17} parent=0 // pred_check_branch
    %13 = sbr.rel (0) target = $region13
  $region12: #{_lambda_.17} parent=0 // pred_region
    _
  $region13: #{_lambda_.17} parent=0 // pred_fallthru
    _
  %v15 = vld [vmem:[%s1] sm:$0xff]
  %v16 = vld [vmem:[%s0] sm:$0xff]
  %v17 = vld [vmem:[%s0 + $0x8] sm:$0xff]
  %v18 = vld [vmem:[%s0 + $0x10] sm:$0xff]
  %v19 = vld [vmem:[%s0 + $0x18] sm:$0xff]
  %v20 = vld [vmem:[%s0 + $0x20] sm:$0xff]
  %v21 = vld [vmem:[%s0 + $0x28] sm:$0xff]
  %v22 = vld [vmem:[%s0 + $0x30] sm:$0xff]
  %v23 = vld [vmem:[%s0 + $0x38] sm:$0xff]
  %v24 = vld [vmem:[%s0 + $0x40] sm:$0xff]
  %v25 = vld [vmem:[%s0 + $0x48] sm:$0xff]
  %v26 = vld [vmem:[%s0 + $0x50] sm:$0xff]
  %v27 = vld [vmem:[%s0 + $0x58] sm:$0xff]
  %v28 = vld [vmem:[%s0 + $0x60] sm:$0xff]
  %v29 = vld [vmem:[%s0 + $0x68] sm:$0xff]
  %v30 = vld [vmem:[%s0 + $0x70] sm:$0xff]
  %v31 = vld [vmem:[%s0 + $0x78] sm:$0xff]
  %v32 = vld [vmem:[%s0 + $0x80] sm:$0xff]
  %v33 = vld [vmem:[%s0 + $0x88] sm:$0xff]
  %v34 = vld [vmem:[%s0 + $0x90] sm:$0xff]
  %v35 = vld [vmem:[%s0 + $0x98] sm:$0xff]
  %v36 = vld [vmem:[%s0 + $0xa0] sm:$0xff]
  %v37 = vld [vmem:[%s0 + $0xa8] sm:$0xff]
  %v38 = vld [vmem:[%s0 + $0xb0] sm:$0xff]
  %v39 = vld [vmem:[%s0 + $0xb8] sm:$0xff]
  %v40 = vld [vmem:[%s0 + $0xc0] sm:$0xff]
  %v41 = vld [vmem:[%s0 + $0xc8] sm:$0xff]
  %v42 = vld [vmem:[%s0 + $0xd0] sm:$0xff]
  %v43 = vld [vmem:[%s2] sm:$0xff]
  %45 = vset.pattern.permute.xlu0 0
  %46 = vperm.xlu0 %45, %v43
  %v47 = vpop.permute.xlu0 %46
  %v50 = vunpack.c.l.b16 %v15
  %v51 = vunpack.c.h.b16 %v15
  %v52 = vpack.c.b16 %v50, %v50
  %v53 = vpack.c.b16 %v51, %v51
  %v82 = vunpack.c.l.b16 %v16
  %v83 = vunpack.c.h.b16 %v16
  %v84 = vunpack.c.l.b16 %v17
  %v85 = vunpack.c.h.b16 %v17
  %v86 = vunpack.c.l.b16 %v18
  %v87 = vunpack.c.h.b16 %v18
  %v88 = vunpack.c.l.b16 %v19
  %v89 = vunpack.c.h.b16 %v19
  %v90 = vunpack.c.l.b16 %v20
  %v91 = vunpack.c.h.b16 %v20
  %v92 = vunpack.c.l.b16 %v21
  %v93 = vunpack.c.h.b16 %v21
  %v94 = vunpack.c.l.b16 %v22
  %v95 = vunpack.c.h.b16 %v22
  %v96 = vunpack.c.l.b16 %v23
  %v97 = vunpack.c.h.b16 %v23
  %v98 = vunpack.c.l.b16 %v24
  %v99 = vunpack.c.h.b16 %v24
  %v100 = vunpack.c.l.b16 %v25
  %v101 = vunpack.c.h.b16 %v25
  %v102 = vunpack.c.l.b16 %v26
  %v103 = vunpack.c.h.b16 %v26
  %v104 = vunpack.c.l.b16 %v27
  %v105 = vunpack.c.h.b16 %v27
  %v106 = vunpack.c.l.b16 %v28
  %v107 = vunpack.c.h.b16 %v28
  %v108 = vunpack.c.l.b16 %v29
  %v109 = vunpack.c.h.b16 %v29
  %v110 = vunpack.c.l.b16 %v30
  %v111 = vunpack.c.h.b16 %v30
  %v112 = vunpack.c.l.b16 %v31
  %v113 = vunpack.c.h.b16 %v31
  %v114 = vunpack.c.l.b16 %v32
  %v115 = vunpack.c.h.b16 %v32
  %v116 = vunpack.c.l.b16 %v33
  %v117 = vunpack.c.h.b16 %v33
  %v118 = vunpack.c.l.b16 %v34
  %v119 = vunpack.c.h.b16 %v34
  %v120 = vunpack.c.l.b16 %v35
  %v121 = vunpack.c.h.b16 %v35
  %v122 = vunpack.c.l.b16 %v36
  %v123 = vunpack.c.h.b16 %v36
  %v124 = vunpack.c.l.b16 %v37
  %v125 = vunpack.c.h.b16 %v37
  %v126 = vunpack.c.l.b16 %v38
  %v127 = vunpack.c.h.b16 %v38
  %v128 = vunpack.c.l.b16 %v39
  %v129 = vunpack.c.h.b16 %v39
  %v130 = vunpack.c.l.b16 %v40
  %v131 = vunpack.c.h.b16 %v40
  %v132 = vunpack.c.l.b16 %v41
  %v133 = vunpack.c.h.b16 %v41
  %v134 = vunpack.c.l.b16 %v42
  %v135 = vunpack.c.h.b16 %v42
  %v136 = vpack.c.b16 %v84, %v82
  %v137 = vpack.c.b16 %v85, %v83
  %v138 = vpack.c.b16 %v88, %v86
  %v139 = vpack.c.b16 %v89, %v87
  %v140 = vpack.c.b16 %v92, %v90
  %v141 = vpack.c.b16 %v93, %v91
  %v142 = vpack.c.b16 %v96, %v94
  %v143 = vpack.c.b16 %v97, %v95
  %v144 = vpack.c.b16 %v100, %v98
  %v145 = vpack.c.b16 %v101, %v99
  %v146 = vpack.c.b16 %v104, %v102
  %v147 = vpack.c.b16 %v105, %v103
  %v148 = vpack.c.b16 %v108, %v106
  %v149 = vpack.c.b16 %v109, %v107
  %v150 = vpack.c.b16 %v112, %v110
  %v151 = vpack.c.b16 %v113, %v111
  %v152 = vpack.c.b16 %v116, %v114
  %v153 = vpack.c.b16 %v117, %v115
  %v154 = vpack.c.b16 %v120, %v118
  %v155 = vpack.c.b16 %v121, %v119
  %v156 = vpack.c.b16 %v124, %v122
  %v157 = vpack.c.b16 %v125, %v123
  %v158 = vpack.c.b16 %v128, %v126
  %v159 = vpack.c.b16 %v129, %v127
  %v160 = vpack.c.b16 %v132, %v130
  %v161 = vpack.c.b16 %v133, %v131
  %v162 = vpack.c.b16 %v134, %v134
  %v163 = vpack.c.b16 %v135, %v135
  %vm190 = vcmask 719872
  %v192 = vsel %vm190, %v53, 0
  %vm194 = vcmask 1043456
  %v196 = vsel %vm194, %v162, 0
  %v199 = vsel %vm194, %v163, 0
  %201 = vmatprep.subr.bf16.mxu0 %v137
  %202 = vmatpush1.bf16.msra.mxu0 %v136
  %203 = vmatprep.subr.bf16.mxu0 %v139
  %204 = vmatpush1.bf16.msra.mxu0 %v138
  %205 = vmatprep.subr.bf16.mxu0 %v141
  %206 = vmatpush1.bf16.msra.mxu0 %v140
  %207 = vmatprep.subr.bf16.mxu0 %v143
  %208 = vmatpush1.bf16.msra.mxu0 %v142
  %209 = vmatprep.subr.bf16.mxu0 %v145
  %210 = vmatpush1.bf16.msra.mxu0 %v144
  %211 = vmatprep.subr.bf16.mxu0 %v147
  %212 = vmatpush1.bf16.msra.mxu0 %v146
  %213 = vmatprep.subr.bf16.mxu0 %v149
  %214 = vmatpush1.bf16.msra.mxu0 %v148
  %215 = vmatprep.subr.bf16.mxu0 %v151
  %216 = vmatpush1.bf16.msra.mxu0 %v150
  %217 = vmatprep.subr.bf16.mxu0 %v153
  %218 = vmatpush1.bf16.msra.mxu0 %v152
  %219 = vmatprep.subr.bf16.mxu0 %v155
  %220 = vmatpush1.bf16.msra.mxu0 %v154
  %221 = vmatprep.subr.bf16.mxu0 %v157
  %222 = vmatpush1.bf16.msra.mxu0 %v156
  %223 = vmatprep.subr.bf16.mxu0 %v159
  %224 = vmatpush1.bf16.msra.mxu0 %v158
  %225 = vmatprep.subr.bf16.mxu0 %v161
  %226 = vmatpush1.bf16.msra.mxu0 %v160
  %227 = vmatprep.subr.bf16.mxu0 %v199
  %228 = vmatpush1.bf16.msra.mxu0 %v196
  %229 = vmatprep.subr.bf16.mxu0 0
  %230 = vmatpush1.bf16.msra.mxu0 0
  %231 = vmatprep.subr.bf16.mxu0 0
  %232 = vmatpush1.bf16.msra.mxu0 0
  %233 = vmatprep.mubr.bf16.mxu0 %v192
  %234 = vmatmul.mubr.bf16.gmra.mrb[0].mxu0 %v52
  %v235 = vpop.f32.mrb[0].mxu0
  %v236 = vadd.f32 %v47, %v235
  %v237 = vpop.f32.mrb[0].mxu0
  %v238 = vadd.f32 %v47, %v237
  %v239 = vpop.f32.mrb[0].mxu0
  %v240 = vpop.f32.mrb[0].mxu0
  %241 = vdwg.mxu0
  %vm242 = vcmp.ge.f32.partialorder %v236, 0.0
  %vm243 = vcmp.ge.f32.partialorder %v238, 0.0
  %v244 = vmul.f32 %v236, 0.1
  %v245 = vmul.f32 %v238, 0.1
  %v246 = vsel %vm242, %v236, %v244
  %v247 = vsel %vm243, %v238, %v245
  %248 = vst [vmem:[%s3] sm:$0xff] %v246
  %vm249 = vcmask 130048
  %250 = vst.msk [vmem:[%s3 + $0x8] sm:$0xff] %vm249, %v247
  // Predicated region
  $region14: #{_lambda_.17} parent=0 // pred_check
    _
  $region15: #{_lambda_.17} parent=0 // pred_check_branch
    %252 = sbr.rel (0) target = $region17
  $region16: #{_lambda_.17} parent=0 // pred_region
    _
  $region17: #{_lambda_.17} parent=0 // pred_fallthru
    _
  // Predicated region
  $region18: #{_lambda_.17} parent=0 // pred_check
    _
  $region19: #{_lambda_.17} parent=0 // pred_check_branch
    %254 = sbr.rel (0) target = $region21
  $region20: #{_lambda_.17} parent=0 // pred_region
    _
  $region21: #{_lambda_.17} parent=0 // pred_fallthru
    _

// kernel: _lambda_.18
$region0: #{_lambda_.18}
  #allocation0 [shape = 'u32[]', space=smem, size = 0x4, offset = 0x4, fixed_abs, tag = 'smem constant byte address 0x4 - core index']
  #allocation1 [shape = 'u32[144,128]{1,0:T(1,128)}', space=vmem, size = 0x12000, scoped, tag = 'internal scratch']
  %s0 = inlined_call_operand.vmem [shape: bf16[1,216,72], index: 0, kind: input, shape index: {}]
  %s1 = inlined_call_operand.vmem [shape: bf16[1,8,216], index: 1, kind: input, shape index: {}]
  %s2 = inlined_call_operand.vmem [shape: f32[1,8,1], index: 2, kind: input, shape index: {}]
  %s3 = inlined_call_operand.vmem [shape: f32[1,8,72], index: 3, kind: output, shape index: {}]
  %s4 = sld [smem:[#allocation0]]
  $region22: #{_lambda_.18} parent=0
    _
  %s6 = ssub.s32 1, %s4
  %s7 = scalar_select 0, %s6, %s4
  // Predicated region
  $region2: #{_lambda_.18} parent=0 // pred_check
    _
  $region3: #{_lambda_.18} parent=0 // pred_check_branch
    %9 = sbr.rel (0) target = $region5
  $region4: #{_lambda_.18} parent=0 // pred_region
    _
  $region5: #{_lambda_.18} parent=0 // pred_fallthru
    _
  // Predicated region
  $region6: #{_lambda_.18} parent=0 // pred_check
    _
  $region7: #{_lambda_.18} parent=0 // pred_check_branch
    %11 = sbr.rel (0) target = $region9
  $region8: #{_lambda_.18} parent=0 // pred_region
    _
  $region9: #{_lambda_.18} parent=0 // pred_fallthru
    _
  // Predicated region
  $region10: #{_lambda_.18} parent=0 // pred_check
    _
  $region11: #{_lambda_.18} parent=0 // pred_check_branch
    %13 = sbr.rel (0) target = $region13
  $region12: #{_lambda_.18} parent=0 // pred_region
    _
  $region13: #{_lambda_.18} parent=0 // pred_fallthru
    _
  %v15 = vld [vmem:[%s1] sm:$0xff]
  %v16 = vld [vmem:[%s0] sm:$0xf]
  %v17 = vld [vmem:[%s0 + $0x4] sm:$0xf]
  %v18 = vld [vmem:[%s0 + $0x8] sm:$0xf]
  %v19 = vld [vmem:[%s0 + $0xc] sm:$0xf]
  %v20 = vld [vmem:[%s0 + $0x10] sm:$0xf]
  %v21 = vld [vmem:[%s0 + $0x14] sm:$0xf]
  %v22 = vld [vmem:[%s0 + $0x18] sm:$0xf]
  %v23 = vld [vmem:[%s0 + $0x1c] sm:$0xf]
  %v24 = vld [vmem:[%s0 + $0x20] sm:$0xf]
  %v25 = vld [vmem:[%s0 + $0x24] sm:$0xf]
  %v26 = vld [vmem:[%s0 + $0x28] sm:$0xf]
  %v27 = vld [vmem:[%s0 + $0x2c] sm:$0xf]
  %v28 = vld [vmem:[%s0 + $0x30] sm:$0xf]
  %v29 = vld [vmem:[%s0 + $0x34] sm:$0xf]
  %v30 = vld [vmem:[%s0 + $0x38] sm:$0xf]
  %v31 = vld [vmem:[%s0 + $0x3c] sm:$0xf]
  %v32 = vld [vmem:[%s0 + $0x40] sm:$0xf]
  %v33 = vld [vmem:[%s0 + $0x44] sm:$0xf]
  %v34 = vld [vmem:[%s0 + $0x48] sm:$0xf]
  %v35 = vld [vmem:[%s0 + $0x4c] sm:$0xf]
  %v36 = vld [vmem:[%s0 + $0x50] sm:$0xf]
  %v37 = vld [vmem:[%s0 + $0x54] sm:$0xf]
  %v38 = vld [vmem:[%s0 + $0x58] sm:$0xf]
  %v39 = vld [vmem:[%s0 + $0x5c] sm:$0xf]
  %v40 = vld [vmem:[%s0 + $0x60] sm:$0xf]
  %v41 = vld [vmem:[%s0 + $0x64] sm:$0xf]
  %v42 = vld [vmem:[%s0 + $0x68] sm:$0xf]
  %v43 = vld [vmem:[%s2] sm:$0xff]
  %45 = vset.pattern.permute.xlu0 0
  %46 = vperm.xlu0 %45, %v43
  %v47 = vpop.permute.xlu0 %46
  %v50 = vunpack.c.l.b16 %v15
  %v51 = vunpack.c.h.b16 %v15
  %v52 = vpack.c.b16 %v50, %v50
  %v53 = vpack.c.b16 %v51, %v51
  %v82 = vunpack.c.l.b16 %v16
  %v83 = vunpack.c.l.b16 %v17
  %v84 = vunpack.c.l.b16 %v18
  %v85 = vunpack.c.l.b16 %v19
  %v86 = vunpack.c.l.b16 %v20
  %v87 = vunpack.c.l.b16 %v21
  %v88 = vunpack.c.l.b16 %v22
  %v89 = vunpack.c.l.b16 %v23
  %v90 = vunpack.c.l.b16 %v24
  %v91 = vunpack.c.l.b16 %v25
  %v92 = vunpack.c.l.b16 %v26
  %v93 = vunpack.c.l.b16 %v27
  %v94 = vunpack.c.l.b16 %v28
  %v95 = vunpack.c.l.b16 %v29
  %v96 = vunpack.c.l.b16 %v30
  %v97 = vunpack.c.l.b16 %v31
  %v98 = vunpack.c.l.b16 %v32
  %v99 = vunpack.c.l.b16 %v33
  %v100 = vunpack.c.l.b16 %v34
  %v101 = vunpack.c.l.b16 %v35
  %v102 = vunpack.c.l.b16 %v36
  %v103 = vunpack.c.l.b16 %v37
  %v104 = vunpack.c.l.b16 %v38
  %v105 = vunpack.c.l.b16 %v39
  %v106 = vunpack.c.l.b16 %v40
  %v107 = vunpack.c.l.b16 %v41
  %v108 = vunpack.c.l.b16 %v42
  %v109 = vpack.c.b16 %v83, %v82
  %v110 = vpack.c.b16 %v85, %v84
  %v111 = vpack.c.b16 %v87, %v86
  %v112 = vpack.c.b16 %v89, %v88
  %v113 = vpack.c.b16 %v91, %v90
  %v114 = vpack.c.b16 %v93, %v92
  %v115 = vpack.c.b16 %v95, %v94
  %v116 = vpack.c.b16 %v97, %v96
  %v117 = vpack.c.b16 %v99, %v98
  %v118 = vpack.c.b16 %v101, %v100
  %v119 = vpack.c.b16 %v103, %v102
  %v120 = vpack.c.b16 %v105, %v104
  %v121 = vpack.c.b16 %v107, %v106
  %v122 = vpack.c.b16 %v108, %v108
  %vm136 = vcmask 719872
  %v138 = vsel %vm136, %v53, 0
  %vm140 = vcmask 1043456
  %v142 = vsel %vm140, %v122, 0
  %144 = vmatprep.subr.bf16.mxu0 0
  %145 = vmatpush1.bf16.msra.mxu0 %v109
  %146 = vmatprep.subr.bf16.mxu0 0
  %147 = vmatpush1.bf16.msra.mxu0 %v110
  %148 = vmatprep.subr.bf16.mxu0 0
  %149 = vmatpush1.bf16.msra.mxu0 %v111
  %150 = vmatprep.subr.bf16.mxu0 0
  %151 = vmatpush1.bf16.msra.mxu0 %v112
  %152 = vmatprep.subr.bf16.mxu0 0
  %153 = vmatpush1.bf16.msra.mxu0 %v113
  %154 = vmatprep.subr.bf16.mxu0 0
  %155 = vmatpush1.bf16.msra.mxu0 %v114
  %156 = vmatprep.subr.bf16.mxu0 0
  %157 = vmatpush1.bf16.msra.mxu0 %v115
  %158 = vmatprep.subr.bf16.mxu0 0
  %159 = vmatpush1.bf16.msra.mxu0 %v116
  %160 = vmatprep.subr.bf16.mxu0 0
  %161 = vmatpush1.bf16.msra.mxu0 %v117
  %162 = vmatprep.subr.bf16.mxu0 0
  %163 = vmatpush1.bf16.msra.mxu0 %v118
  %164 = vmatprep.subr.bf16.mxu0 0
  %165 = vmatpush1.bf16.msra.mxu0 %v119
  %166 = vmatprep.subr.bf16.mxu0 0
  %167 = vmatpush1.bf16.msra.mxu0 %v120
  %168 = vmatprep.subr.bf16.mxu0 0
  %169 = vmatpush1.bf16.msra.mxu0 %v121
  %170 = vmatprep.subr.bf16.mxu0 0
  %171 = vmatpush1.bf16.msra.mxu0 %v142
  %172 = vmatprep.subr.bf16.mxu0 0
  %173 = vmatpush1.bf16.msra.mxu0 0
  %174 = vmatprep.subr.bf16.mxu0 0
  %175 = vmatpush1.bf16.msra.mxu0 0
  %176 = vmatprep.mubr.bf16.mxu0 %v138
  %177 = vmatmul.mubr.bf16.gmra.mrb[0].mxu0 %v52
  %v178 = vpop.f32.mrb[0].mxu0
  %v179 = vadd.f32 %v47, %v178
  %v180 = vpop.f32.mrb[0].mxu0
  %v181 = vpop.f32.mrb[0].mxu0
  %v182 = vpop.f32.mrb[0].mxu0
  %183 = vdwg.mxu0
  %vm184 = vcmp.ge.f32.partialorder %v179, 0.0
  %v185 = vmul.f32 %v179, 0.1
  %v186 = vsel %vm184, %v179, %v185
  %vm187 = vcmask 588800
  %188 = vst.msk [vmem:[%s3] sm:$0xff] %vm187, %v186
  // Predicated region
  $region14: #{_lambda_.18} parent=0 // pred_check
    _
  $region15: #{_lambda_.18} parent=0 // pred_check_branch
    %190 = sbr.rel (0) target = $region17
  $region16: #{_lambda_.18} parent=0 // pred_region
    _
  $region17: #{_lambda_.18} parent=0 // pred_fallthru
    _
  // Predicated region
  $region18: #{_lambda_.18} parent=0 // pred_check
    _
  $region19: #{_lambda_.18} parent=0 // pred_check_branch
    %192 = sbr.rel (0) target = $region21
  $region20: #{_lambda_.18} parent=0 // pred_region
    _
  $region21: #{_lambda_.18} parent=0 // pred_fallthru
    _

// kernel: _lambda_.19
$region0: #{_lambda_.19}
  #allocation0 [shape = 'u32[]', space=smem, size = 0x4, offset = 0x4, fixed_abs, tag = 'smem constant byte address 0x4 - core index']
  #allocation1 [shape = 'u32[144,128]{1,0:T(1,128)}', space=vmem, size = 0x12000, scoped, tag = 'internal scratch']
  %s0 = inlined_call_operand.vmem [shape: bf16[1,72,72], index: 0, kind: input, shape index: {}]
  %s1 = inlined_call_operand.vmem [shape: bf16[1,8,72], index: 1, kind: input, shape index: {}]
  %s2 = inlined_call_operand.vmem [shape: f32[1,8,1], index: 2, kind: input, shape index: {}]
  %s3 = inlined_call_operand.vmem [shape: f32[1,8,72], index: 3, kind: output, shape index: {}]
  %s4 = sld [smem:[#allocation0]]
  $region22: #{_lambda_.19} parent=0
    _
  %s6 = ssub.s32 1, %s4
  %s7 = scalar_select 0, %s6, %s4
  // Predicated region
  $region2: #{_lambda_.19} parent=0 // pred_check
    _
  $region3: #{_lambda_.19} parent=0 // pred_check_branch
    %9 = sbr.rel (0) target = $region5
  $region4: #{_lambda_.19} parent=0 // pred_region
    _
  $region5: #{_lambda_.19} parent=0 // pred_fallthru
    _
  // Predicated region
  $region6: #{_lambda_.19} parent=0 // pred_check
    _
  $region7: #{_lambda_.19} parent=0 // pred_check_branch
    %11 = sbr.rel (0) target = $region9
  $region8: #{_lambda_.19} parent=0 // pred_region
    _
  $region9: #{_lambda_.19} parent=0 // pred_fallthru
    _
  // Predicated region
  $region10: #{_lambda_.19} parent=0 // pred_check
    _
  $region11: #{_lambda_.19} parent=0 // pred_check_branch
    %13 = sbr.rel (0) target = $region13
  $region12: #{_lambda_.19} parent=0 // pred_region
    _
  $region13: #{_lambda_.19} parent=0 // pred_fallthru
    _
  %v15 = vld [vmem:[%s1] sm:$0xf]
  %v16 = vld [vmem:[%s0] sm:$0xf]
  %v17 = vld [vmem:[%s0 + $0x4] sm:$0xf]
  %v18 = vld [vmem:[%s0 + $0x8] sm:$0xf]
  %v19 = vld [vmem:[%s0 + $0xc] sm:$0xf]
  %v20 = vld [vmem:[%s0 + $0x10] sm:$0xf]
  %v21 = vld [vmem:[%s0 + $0x14] sm:$0xf]
  %v22 = vld [vmem:[%s0 + $0x18] sm:$0xf]
  %v23 = vld [vmem:[%s0 + $0x1c] sm:$0xf]
  %v24 = vld [vmem:[%s0 + $0x20] sm:$0xf]
  %v25 = vld [vmem:[%s2] sm:$0xff]
  %27 = vset.pattern.permute.xlu0 0
  %28 = vperm.xlu0 %27, %v25
  %v29 = vpop.permute.xlu0 %28
  %v40 = vunpack.c.l.b16 %v16
  %v41 = vunpack.c.l.b16 %v17
  %v42 = vunpack.c.l.b16 %v18
  %v43 = vunpack.c.l.b16 %v19
  %v44 = vunpack.c.l.b16 %v20
  %v45 = vunpack.c.l.b16 %v21
  %v46 = vunpack.c.l.b16 %v22
  %v47 = vunpack.c.l.b16 %v23
  %v48 = vunpack.c.l.b16 %v24
  %v49 = vpack.c.b16 %v41, %v40
  %v50 = vpack.c.b16 %v43, %v42
  %v51 = vpack.c.b16 %v45, %v44
  %v52 = vpack.c.b16 %v47, %v46
  %v53 = vpack.c.b16 %v48, %v48
  %vm58 = vcmask 588800
  %v60 = vsel %vm58, %v15, 0
  %vm62 = vcmask 1043456
  %v64 = vsel %vm62, %v53, 0
  %66 = vmatprep.subr.bf16.mxu0 0
  %67 = vmatpush1.bf16.msra.mxu0 %v49
  %68 = vmatprep.subr.bf16.mxu0 0
  %69 = vmatpush1.bf16.msra.mxu0 %v50
  %70 = vmatprep.subr.bf16.mxu0 0
  %71 = vmatpush1.bf16.msra.mxu0 %v51
  %72 = vmatprep.subr.bf16.mxu0 0
  %73 = vmatpush1.bf16.msra.mxu0 %v52
  %74 = vmatprep.subr.bf16.mxu0 0
  %75 = vmatpush1.bf16.msra.mxu0 %v64
  %76 = vmatprep.subr.bf16.mxu0 0
  %77 = vmatpush1.bf16.msra.mxu0 0
  %78 = vmatprep.subr.bf16.mxu0 0
  %79 = vmatpush1.bf16.msra.mxu0 0
  %80 = vmatprep.subr.bf16.mxu0 0
  %81 = vmatpush1.bf16.msra.mxu0 0
  %82 = vmatprep.subr.bf16.mxu0 0
  %83 = vmatpush1.bf16.msra.mxu0 0
  %84 = vmatprep.subr.bf16.mxu0 0
  %85 = vmatpush1.bf16.msra.mxu0 0
  %86 = vmatprep.subr.bf16.mxu0 0
  %87 = vmatpush1.bf16.msra.mxu0 0
  %88 = vmatprep.subr.bf16.mxu0 0
  %89 = vmatpush1.bf16.msra.mxu0 0
  %90 = vmatprep.subr.bf16.mxu0 0
  %91 = vmatpush1.bf16.msra.mxu0 0
  %92 = vmatprep.subr.bf16.mxu0 0
  %93 = vmatpush1.bf16.msra.mxu0 0
  %94 = vmatprep.subr.bf16.mxu0 0
  %95 = vmatpush1.bf16.msra.mxu0 0
  %96 = vmatprep.subr.bf16.mxu0 0
  %97 = vmatpush1.bf16.msra.mxu0 0
  %98 = vmatprep.mubr.bf16.mxu0 0
  %99 = vmatmul.mubr.bf16.gmra.mrb[0].mxu0 %v60
  %v100 = vpop.f32.mrb[0].mxu0
  %v101 = vadd.f32 %v29, %v100
  %v102 = vpop.f32.mrb[0].mxu0
  %v103 = vpop.f32.mrb[0].mxu0
  %v104 = vpop.f32.mrb[0].mxu0
  %105 = vdwg.mxu0
  %vm106 = vcmp.ge.f32.partialorder %v101, 0.0
  %v107 = vmul.f32 %v101, 0.1
  %v108 = vsel %vm106, %v101, %v107
  %109 = vst.msk [vmem:[%s3] sm:$0xff] %vm58, %v108
  // Predicated region
  $region14: #{_lambda_.19} parent=0 // pred_check
    _
  $region15: #{_lambda_.19} parent=0 // pred_check_branch
    %111 = sbr.rel (0) target = $region17
  $region16: #{_lambda_.19} parent=0 // pred_region
    _
  $region17: #{_lambda_.19} parent=0 // pred_fallthru
    _
  // Predicated region
  $region18: #{_lambda_.19} parent=0 // pred_check
    _
  $region19: #{_lambda_.19} parent=0 // pred_check_branch
    %113 = sbr.rel (0) target = $region21
  $region20: #{_lambda_.19} parent=0 // pred_region
    _
  $region21: #{_lambda_.19} parent=0 // pred_fallthru
    _

// kernel: squeeze.29
$region0: #{squeeze.29}
  %s0 = inlined_call_operand.vmem [shape: f32[72], index: 0, kind: input, shape index: {}]
  %s1 = inlined_call_operand.vmem [shape: f32[2,1,9,4], index: 1, kind: output, shape index: {}]
  $region1: #{squeeze.29} parent=0
    #allocation0 [shape = 'u8[4096]{0}', space=vmem, size = 0x1000, scoped, tag = 'scoped mem for input reshape']
    %s3 = sshllo.u32 0, 1
    %v4 = vld [vmem:[%s0] sm:%s3]
    %5 = vst [vmem:[#allocation0] sm:%s3] %v4
    %v6 = vld [vmem:[#allocation0] sm:$0x1]
    %vm7 = vcmask 31744
    %8 = vst.msk [vmem:[%s1] sm:$0x1] %vm7, %v6
    %v9 = vld [vmem:[#allocation0] sm:$0x1]
    %10 = vrot.lane.b32.xlu0 %v9, 124
    %v11 = vpop.permute.xlu0 %10
    %vm12 = vcmask 31744
    %s13 = scalar_lea.vmem %s1, 1
    %14 = vst.msk [vmem:[%s13] sm:$0x1] %vm12, %v11
    %v15 = vld [vmem:[#allocation0] sm:$0x1]
    %16 = vrot.lane.b32.xlu0 %v15, 120
    %v17 = vpop.permute.xlu0 %16
    %vm18 = vcmask 31744
    %s19 = scalar_lea.vmem %s1, 2
    %20 = vst.msk [vmem:[%s19] sm:$0x1] %vm18, %v17
    %v21 = vld [vmem:[#allocation0] sm:$0x1]
    %22 = vrot.lane.b32.xlu0 %v21, 116
    %v23 = vpop.permute.xlu0 %22
    %vm24 = vcmask 31744
    %s25 = scalar_lea.vmem %s1, 3
    %26 = vst.msk [vmem:[%s25] sm:$0x1] %vm24, %v23
    %v27 = vld [vmem:[#allocation0] sm:$0x1]
    %28 = vrot.lane.b32.xlu0 %v27, 112
    %v29 = vpop.permute.xlu0 %28
    %vm30 = vcmask 31744
    %s31 = scalar_lea.vmem %s1, 4
    %32 = vst.msk [vmem:[%s31] sm:$0x1] %vm30, %v29
    %v33 = vld [vmem:[#allocation0] sm:$0x1]
    %34 = vrot.lane.b32.xlu0 %v33, 108
    %v35 = vpop.permute.xlu0 %34
    %vm36 = vcmask 31744
    %s37 = scalar_lea.vmem %s1, 5
    %38 = vst.msk [vmem:[%s37] sm:$0x1] %vm36, %v35
    %v39 = vld [vmem:[#allocation0] sm:$0x1]
    %40 = vrot.lane.b32.xlu0 %v39, 104
    %v41 = vpop.permute.xlu0 %40
    %vm42 = vcmask 31744
    %s43 = scalar_lea.vmem %s1, 6
    %44 = vst.msk [vmem:[%s43] sm:$0x1] %vm42, %v41
    %v45 = vld [vmem:[#allocation0] sm:$0x1]
    %46 = vrot.lane.b32.xlu0 %v45, 100
    %v47 = vpop.permute.xlu0 %46
    %vm48 = vcmask 31744
    %s49 = scalar_lea.vmem %s1, 7
    %50 = vst.msk [vmem:[%s49] sm:$0x1] %vm48, %v47
    %v51 = vld [vmem:[#allocation0] sm:$0x1]
    %52 = vrot.lane.b32.xlu0 %v51, 96
    %v53 = vpop.permute.xlu0 %52
    %vm54 = vcmask 31744
    %s55 = scalar_lea.vmem %s1, 8
    %56 = vst.msk [vmem:[%s55] sm:$0x1] %vm54, %v53
    %v57 = vld [vmem:[#allocation0] sm:$0x1]
    %58 = vrot.lane.b32.xlu0 %v57, 92
    %v59 = vpop.permute.xlu0 %58
    %vm60 = vcmask 31744
    %s61 = scalar_lea.vmem %s1, 16
    %62 = vst.msk [vmem:[%s61] sm:$0x1] %vm60, %v59
    %v63 = vld [vmem:[#allocation0] sm:$0x1]
    %64 = vrot.lane.b32.xlu0 %v63, 88
    %v65 = vpop.permute.xlu0 %64
    %vm66 = vcmask 31744
    %s67 = scalar_lea.vmem %s1, 17
    %68 = vst.msk [vmem:[%s67] sm:$0x1] %vm66, %v65
    %v69 = vld [vmem:[#allocation0] sm:$0x1]
    %70 = vrot.lane.b32.xlu0 %v69, 84
    %v71 = vpop.permute.xlu0 %70
    %vm72 = vcmask 31744
    %s73 = scalar_lea.vmem %s1, 18
    %74 = vst.msk [vmem:[%s73] sm:$0x1] %vm72, %v71
    %v75 = vld [vmem:[#allocation0] sm:$0x1]
    %76 = vrot.lane.b32.xlu0 %v75, 80
    %v77 = vpop.permute.xlu0 %76
    %vm78 = vcmask 31744
    %s79 = scalar_lea.vmem %s1, 19
    %80 = vst.msk [vmem:[%s79] sm:$0x1] %vm78, %v77
    %v81 = vld [vmem:[#allocation0] sm:$0x1]
    %82 = vrot.lane.b32.xlu0 %v81, 76
    %v83 = vpop.permute.xlu0 %82
    %vm84 = vcmask 31744
    %s85 = scalar_lea.vmem %s1, 20
    %86 = vst.msk [vmem:[%s85] sm:$0x1] %vm84, %v83
    %v87 = vld [vmem:[#allocation0] sm:$0x1]
    %88 = vrot.lane.b32.xlu0 %v87, 72
    %v89 = vpop.permute.xlu0 %88
    %vm90 = vcmask 31744
    %s91 = scalar_lea.vmem %s1, 21
    %92 = vst.msk [vmem:[%s91] sm:$0x1] %vm90, %v89
    %v93 = vld [vmem:[#allocation0] sm:$0x1]
    %94 = vrot.lane.b32.xlu0 %v93, 68
    %v95 = vpop.permute.xlu0 %94
    %vm96 = vcmask 31744
    %s97 = scalar_lea.vmem %s1, 22
    %98 = vst.msk [vmem:[%s97] sm:$0x1] %vm96, %v95
    %v99 = vld [vmem:[#allocation0] sm:$0x1]
    %100 = vrot.lane.b32.xlu0 %v99, 64
    %v101 = vpop.permute.xlu0 %100
    %vm102 = vcmask 31744
    %s103 = scalar_lea.vmem %s1, 23
    %104 = vst.msk [vmem:[%s103] sm:$0x1] %vm102, %v101
    %v105 = vld [vmem:[#allocation0] sm:$0x1]
    %106 = vrot.lane.b32.xlu0 %v105, 60
    %v107 = vpop.permute.xlu0 %106
    %vm108 = vcmask 31744
    %s109 = scalar_lea.vmem %s1, 24
    %110 = vst.msk [vmem:[%s109] sm:$0x1] %vm108, %v107

// kernel: _lambda_.20
$region0: #{_lambda_.20}
  #allocation0 [shape = 'u32[]', space=smem, size = 0x4, offset = 0x4, fixed_abs, tag = 'smem constant byte address 0x4 - core index']
  #allocation1 [shape = 'u32[144,128]{1,0:T(1,128)}', space=vmem, size = 0x12000, scoped, tag = 'internal scratch']
  #allocation2 [shape = 'f32[1,1,1]{2,1,0:T(1,128)S(1)}', space=vmem, size = 0x200, scoped, tag = 'scoped memory for _lambda_.20']
  %s0 = inlined_call_operand.vmem [shape: bf16[1,72,72], index: 0, kind: input, shape index: {}]
  %s1 = inlined_call_operand.vmem [shape: bf16[1,1,72], index: 1, kind: input, shape index: {}]
  %s2 = inlined_call_operand.<no memory space> [shape: f32[1,1,1], index: 2, kind: input, shape index: {}]
  %s3 = inlined_call_operand.vmem [shape: f32[1,1,72], index: 3, kind: output, shape index: {}]
  %s4 = sld [smem:[#allocation0]]
  $region22: #{_lambda_.20} parent=0
    _
  %s6 = ssub.s32 1, %s4
  %s7 = scalar_select 0, %s6, %s4
  %v8 = vstv %s2
  %9 = vst [vmem:[#allocation2] sm:$0x1] %v8
  // Predicated region
  $region2: #{_lambda_.20} parent=0 // pred_check
    _
  $region3: #{_lambda_.20} parent=0 // pred_check_branch
    %11 = sbr.rel (0) target = $region5
  $region4: #{_lambda_.20} parent=0 // pred_region
    _
  $region5: #{_lambda_.20} parent=0 // pred_fallthru
    _
  // Predicated region
  $region6: #{_lambda_.20} parent=0 // pred_check
    _
  $region7: #{_lambda_.20} parent=0 // pred_check_branch
    %13 = sbr.rel (0) target = $region9
  $region8: #{_lambda_.20} parent=0 // pred_region
    _
  $region9: #{_lambda_.20} parent=0 // pred_fallthru
    _
  // Predicated region
  $region10: #{_lambda_.20} parent=0 // pred_check
    _
  $region11: #{_lambda_.20} parent=0 // pred_check_branch
    %15 = sbr.rel (0) target = $region13
  $region12: #{_lambda_.20} parent=0 // pred_region
    _
  $region13: #{_lambda_.20} parent=0 // pred_fallthru
    _
  %v17 = vld [vmem:[%s1] sm:$0x1]
  %v18 = vld [vmem:[%s0] sm:$0xf]
  %v19 = vld [vmem:[%s0 + $0x4] sm:$0xf]
  %v20 = vld [vmem:[%s0 + $0x8] sm:$0xf]
  %v21 = vld [vmem:[%s0 + $0xc] sm:$0xf]
  %v22 = vld [vmem:[%s0 + $0x10] sm:$0xf]
  %v23 = vld [vmem:[%s0 + $0x14] sm:$0xf]
  %v24 = vld [vmem:[%s0 + $0x18] sm:$0xf]
  %v25 = vld [vmem:[%s0 + $0x1c] sm:$0xf]
  %v26 = vld [vmem:[%s0 + $0x20] sm:$0xf]
  %v27 = vld [vmem:[#allocation2] sm:$0x1]
  %29 = vset.pattern.permute.xlu0 0
  %30 = vperm.xlu0 %29, %v27
  %v31 = vpop.permute.xlu0 %30
  %v33 = vlaneseq
  %v34 = vshrl.u32 %v33, 7
  %v35 = vsub.s32 0, %v34
  %v36 = vrot.slane %v31, %v35
  %v46 = vunpack.c.l.b16 %v18
  %v47 = vunpack.c.l.b16 %v19
  %v48 = vunpack.c.l.b16 %v20
  %v49 = vunpack.c.l.b16 %v21
  %v50 = vunpack.c.l.b16 %v22
  %v51 = vunpack.c.l.b16 %v23
  %v52 = vunpack.c.l.b16 %v24
  %v53 = vunpack.c.l.b16 %v25
  %v54 = vunpack.c.l.b16 %v26
  %v55 = vpack.c.b16 %v47, %v46
  %v56 = vpack.c.b16 %v49, %v48
  %v57 = vpack.c.b16 %v51, %v50
  %v58 = vpack.c.b16 %v53, %v52
  %v59 = vpack.c.b16 %v54, %v54
  %vm64 = vcmask 588800
  %v66 = vsel %vm64, %v17, 0
  %vm68 = vcmask 1043456
  %v70 = vsel %vm68, %v59, 0
  %72 = vmatprep.subr.bf16.mxu0 0
  %73 = vmatpush1.bf16.msra.mxu0 %v55
  %74 = vmatprep.subr.bf16.mxu0 0
  %75 = vmatpush1.bf16.msra.mxu0 %v56
  %76 = vmatprep.subr.bf16.mxu0 0
  %77 = vmatpush1.bf16.msra.mxu0 %v57
  %78 = vmatprep.subr.bf16.mxu0 0
  %79 = vmatpush1.bf16.msra.mxu0 %v58
  %80 = vmatprep.subr.bf16.mxu0 0
  %81 = vmatpush1.bf16.msra.mxu0 %v70
  %82 = vmatprep.subr.bf16.mxu0 0
  %83 = vmatpush1.bf16.msra.mxu0 0
  %84 = vmatprep.subr.bf16.mxu0 0
  %85 = vmatpush1.bf16.msra.mxu0 0
  %86 = vmatprep.subr.bf16.mxu0 0
  %87 = vmatpush1.bf16.msra.mxu0 0
  %88 = vmatprep.subr.bf16.mxu0 0
  %89 = vmatpush1.bf16.msra.mxu0 0
  %90 = vmatprep.subr.bf16.mxu0 0
  %91 = vmatpush1.bf16.msra.mxu0 0
  %92 = vmatprep.subr.bf16.mxu0 0
  %93 = vmatpush1.bf16.msra.mxu0 0
  %94 = vmatprep.subr.bf16.mxu0 0
  %95 = vmatpush1.bf16.msra.mxu0 0
  %96 = vmatprep.subr.bf16.mxu0 0
  %97 = vmatpush1.bf16.msra.mxu0 0
  %98 = vmatprep.subr.bf16.mxu0 0
  %99 = vmatpush1.bf16.msra.mxu0 0
  %100 = vmatprep.subr.bf16.mxu0 0
  %101 = vmatpush1.bf16.msra.mxu0 0
  %102 = vmatprep.subr.bf16.mxu0 0
  %103 = vmatpush1.bf16.msra.mxu0 0
  %104 = vmatprep.mubr.bf16.mxu0 0
  %105 = vmatmul.mubr.bf16.gmra.mrb[0].mxu0 %v66
  %v106 = vpop.f32.mrb[0].mxu0
  %v107 = vadd.f32 %v36, %v106
  %v108 = vpop.f32.mrb[0].mxu0
  %v109 = vpop.f32.mrb[0].mxu0
  %v110 = vpop.f32.mrb[0].mxu0
  %111 = vdwg.mxu0
  %vm112 = vcmask 581632
  %113 = vst.msk [vmem:[%s3] sm:$0x1] %vm112, %v107
  // Predicated region
  $region14: #{_lambda_.20} parent=0 // pred_check
    _
  $region15: #{_lambda_.20} parent=0 // pred_check_branch
    %115 = sbr.rel (0) target = $region17
  $region16: #{_lambda_.20} parent=0 // pred_region
    _
  $region17: #{_lambda_.20} parent=0 // pred_fallthru
    _
  // Predicated region
  $region18: #{_lambda_.20} parent=0 // pred_check
    _
  $region19: #{_lambda_.20} parent=0 // pred_check_branch
    %117 = sbr.rel (0) target = $region21
  $region20: #{_lambda_.20} parent=0 // pred_region
    _
  $region21: #{_lambda_.20} parent=0 // pred_fallthru
    _

</llo_original>
